<compile_context>
chip_gen: v7x
topology: tpu7x:2x2x1
jax: 0.10.0
libtpu: 0.0.40
codegen_flags: <defaults>
</compile_context>

<pallas_src>
import math

import jax
import jax.numpy as jnp
from jax.experimental import pallas as pl
from jax.experimental.pallas import tpu as pltpu


# ---------------------------------------------------------------------------
# Tiled matmul (in_proj / out_proj):  (M, K) @ (K, N) -> (M, N)
# ---------------------------------------------------------------------------
def _matmul_kernel(x_ref, w_ref, o_ref, acc_ref):
    @pl.when(pl.program_id(2) == 0)
    def _():
        acc_ref[...] = jnp.zeros_like(acc_ref)

    # bf16 operands + f32 accumulation: full-rate MXU on v6e/v7x, fine on v5e.
    acc_ref[...] += jnp.dot(x_ref[...].astype(jnp.bfloat16),
                            w_ref[...].astype(jnp.bfloat16),
                            preferred_element_type=jnp.float32)

    @pl.when(pl.program_id(2) == pl.num_programs(2) - 1)
    def _():
        o_ref[...] = acc_ref[...].astype(o_ref.dtype)


def _pick_tile(dim, prefs):
    for t in prefs:
        if dim % t == 0:
            return t
    # TODO(synk): ragged dims would need cdiv + edge masking; single block here.
    return dim


def pallas_matmul(x, w):
    M, K = x.shape
    K2, N = w.shape
    assert K == K2
    tm = _pick_tile(M, (256, 128))
    tn = _pick_tile(N, (512, 256, 128))
    tk = _pick_tile(K, (512, 256, 128))
    return pl.pallas_call(
        _matmul_kernel,
        out_shape=jax.ShapeDtypeStruct((M, N), jnp.float32),
        grid=(M // tm, N // tn, K // tk),
        in_specs=[pl.BlockSpec((tm, tk), lambda i, j, k: (i, k)),
                  pl.BlockSpec((tk, tn), lambda i, j, k: (k, j))],
        out_specs=pl.BlockSpec((tm, tn), lambda i, j, k: (i, j)),
        scratch_shapes=[pltpu.VMEM((tm, tn), jnp.float32)],
        compiler_params=pltpu.CompilerParams(
            dimension_semantics=("parallel", "parallel", "arbitrary")),
    )(x, w)


# ---------------------------------------------------------------------------
# Fused conv1d + x_proj + dt_proj + selective scan + gating, both directions.
# ---------------------------------------------------------------------------
_CONV_PAD = 8   # >= kernel_size - 1 and a multiple of 8 (tile-aligned padding)


def _mamba_kernel(xz_ref, convw_ref, convb_ref, wx_ref, wdtp_ref, dtb_ref,
                  At_ref, Dsk_ref, out_ref,
                  xpad_buf, dA_buf, dBu_buf, Cb_buf, y_buf):
    L, D_in = out_ref.shape
    K = convw_ref.shape[0]
    R = wdtp_ref.shape[0]
    N = At_ref.shape[0]

    d = pl.program_id(1)
    is_flip = d == 1            # direction 1 == 'h_flip': scan tokens in reverse

    x = xz_ref[:, :D_in]        # first half of in_proj output
    z = xz_ref[:, D_in:]        # gate half

    # ---- depthwise conv1d (causal for 'h', anti-causal for 'h_flip') + SiLU --
    xpad_buf[0:_CONV_PAD, :] = jnp.zeros((_CONV_PAD, D_in), jnp.float32)
    xpad_buf[_CONV_PAD + L:_CONV_PAD + L + _CONV_PAD, :] = jnp.zeros(
        (_CONV_PAD, D_in), jnp.float32)
    xpad_buf[_CONV_PAD:_CONV_PAD + L, :] = x

    acc = jnp.broadcast_to(convb_ref[...], (L, D_in))
    for k in range(K):                               # K is small & static
        t = K - 1 - k
        off = _CONV_PAD + jnp.where(is_flip, t, -t)  # look forward when flipped
        acc = acc + convw_ref[k:k + 1, :] * xpad_buf[pl.ds(off, L), :]
    xc = acc * jax.nn.sigmoid(acc)                   # SiLU

    # ---- fused x_proj: one lane-padded matmul producing [dt | B | C | pad] ---
    xdbl = jnp.dot(xc.astype(jnp.bfloat16), wx_ref[...].astype(jnp.bfloat16),
                   preferred_element_type=jnp.float32)

    # ---- dt_proj: tiny contraction R -> VPU broadcast FMAs (no MXU pass) -----
    if R <= 16:
        dpre = jnp.broadcast_to(dtb_ref[...], (L, D_in))
        for r in range(R):
            dpre = dpre + xdbl[:, r:r + 1] * wdtp_ref[r:r + 1, :]
    else:
        dpre = jnp.dot(xdbl[:, :R].astype(jnp.bfloat16),
                       wdtp_ref[...].astype(jnp.bfloat16),
                       preferred_element_type=jnp.float32) + dtb_ref[...]
    # softplus (F.softplus threshold=20 convention), no inf on the dead branch
    delta = jnp.where(dpre > 20.0, dpre,
                      jnp.log(1.0 + jnp.exp(jnp.minimum(dpre, 20.0))))

    # ---- selective scan -------------------------------------------------------
    # Build per-token operands once as N contiguous (L, D_in) slabs (row n*L+l),
    # then run ONE sequential loop over L carrying all N states as a dense
    # (N, D_in) tile; per step: 3 sublane-strided loads + VPU FMAs + a sublane
    # reduce + one lane-dense (1, D_in) output-row store.
    u2 = delta * xc
    for n in range(N):                               # N is small & static
        sl = pl.ds(n * L, L)
        dA_buf[sl, :] = jnp.exp(delta * At_ref[n:n + 1, :])
        dBu_buf[sl, :] = xdbl[:, R + n:R + n + 1] * u2
        Cb_buf[sl, :] = jnp.broadcast_to(xdbl[:, R + N + n:R + N + n + 1],
                                         (L, D_in))

    def body(l, h):
        idx = jnp.where(is_flip, L - 1 - l, l)       # reversed traversal for dir 1
        dA_l = dA_buf[pl.ds(idx, N, stride=L), :]    # (N, D_in)
        dBu_l = dBu_buf[pl.ds(idx, N, stride=L), :]
        Cb_l = Cb_buf[pl.ds(idx, N, stride=L), :]
        h = dA_l * h + dBu_l
        y_buf[pl.ds(idx, 1), :] = jnp.sum(Cb_l * h, axis=0, keepdims=True)
        return h

    jax.lax.fori_loop(0, L, body, jnp.zeros((N, D_in), jnp.float32),
                      unroll=(L <= 64))

    contrib = (y_buf[...] + xc * Dsk_ref[...]) * (z * jax.nn.sigmoid(z))

    # ---- accumulate both scan directions straight into the output block ------
    @pl.when(d == 0)
    def _():
        out_ref[...] = jnp.zeros_like(out_ref)
    out_ref[...] += contrib


def mamba_directions(xz, conv_w_t, conv_b, w_xproj, w_dtp, dt_b, A_t, Dskip):
    ndirs, K, D_in = conv_w_t.shape
    B, L, two_d = xz.shape
    assert two_d == 2 * D_in
    assert K - 1 <= _CONV_PAD
    N = A_t.shape[1]
    R = w_dtp.shape[1]
    Pp = w_xproj.shape[2]

    b_map = lambda b, d: (b, 0, 0)   # per-batch activation / output
    d_map = lambda b, d: (d, 0, 0)   # per-direction parameters

    return pl.pallas_call(
        _mamba_kernel,
        out_shape=jax.ShapeDtypeStruct((B, L, D_in), jnp.float32),
        grid=(B, ndirs),
        in_specs=[
            pl.BlockSpec((None, L, 2 * D_in), b_map),   # xz = [x | z]
            pl.BlockSpec((None, K, D_in), d_map),       # conv weight (tap-major)
            pl.BlockSpec((None, 1, D_in), d_map),       # conv bias
            pl.BlockSpec((None, D_in, Pp), d_map),      # fused x_proj weight
            pl.BlockSpec((None, R, D_in), d_map),       # dt_proj weight
            pl.BlockSpec((None, 1, D_in), d_map),       # dt_proj bias
            pl.BlockSpec((None, N, D_in), d_map),       # A^T
            pl.BlockSpec((None, 1, D_in), d_map),       # D skip
        ],
        out_specs=pl.BlockSpec((None, L, D_in), b_map),
        scratch_shapes=[
            pltpu.VMEM((L + 2 * _CONV_PAD, D_in), jnp.float32),  # padded x
            pltpu.VMEM((N * L, D_in), jnp.float32),              # exp(dt * A)
            pltpu.VMEM((N * L, D_in), jnp.float32),              # dt * B * u
            pltpu.VMEM((N * L, D_in), jnp.float32),              # C broadcast
            pltpu.VMEM((L, D_in), jnp.float32),                  # y rows
        ],
        compiler_params=pltpu.CompilerParams(
            dimension_semantics=("parallel", "arbitrary"),
            vmem_limit_bytes=32 * 1024 * 1024),
    )(xz, conv_w_t, conv_b, w_xproj, w_dtp, dt_b, A_t, Dskip)


# ---------------------------------------------------------------------------
# Full Super_MultiMamba forward (Pallas path)
# ---------------------------------------------------------------------------
def super_multi_mamba_forward(hidden, P, d_inner):
    B, L, E = hidden.shape
    xz = pallas_matmul(hidden.reshape(B * L, E), P["w_in"])
    xz = xz.reshape(B, L, 2 * d_inner)
    y = mamba_directions(xz, P["conv_w_t"], P["conv_b"], P["w_xproj"],
                         P["w_dtp"], P["dt_b"], P["A_t"], P["Dskip"])
    out = pallas_matmul(y.reshape(B * L, d_inner), P["w_out"]).reshape(B, L, E)
    return out


# ---------------------------------------------------------------------------
# Pure-JAX reference (same math, f32, no Pallas) for a correctness check
# ---------------------------------------------------------------------------
def _ref_one_direction(x, z, cw, cb, wdt, wB, wC, wdtp, dtb, A_t, Dsk):
    Bsz, L, D_in = x.shape
    K = cw.shape[0]
    xpad = jnp.concatenate([jnp.zeros((Bsz, K - 1, D_in)), x], axis=1)
    acc = cb[None]
    for k in range(K):
        acc = acc + cw[k][None, None, :] * xpad[:, k:k + L, :]
    xc = acc * jax.nn.sigmoid(acc)
    dt_low = xc @ wdt
    Bm = xc @ wB
    Cm = xc @ wC
    dpre = dt_low @ wdtp + dtb[None]
    delta = jnp.where(dpre > 20.0, dpre, jnp.log(1.0 + jnp.exp(dpre)))
    N = A_t.shape[0]
    dA = jnp.exp(delta[:, :, None, :] * A_t[None, None, :, :])       # B L N D
    dBu = Bm[:, :, :, None] * (delta * xc)[:, :, None, :]            # B L N D
    h = jnp.zeros((Bsz, N, D_in))
    ys = []
    for l in range(L):
        h = dA[:, l] * h + dBu[:, l]
        ys.append(jnp.sum(Cm[:, l, :, None] * h, axis=1))
    y = jnp.stack(ys, axis=1)
    y = y + xc * Dsk[None]
    return y * (z * jax.nn.sigmoid(z))


def reference_forward(hidden, P, d_inner, ndirs):
    xz = hidden @ P["w_in"]
    x_all, z_all = xz[..., :d_inner], xz[..., d_inner:]
    outs = []
    for i in range(ndirs):
        flip = (i == 1)
        x = x_all[:, ::-1] if flip else x_all
        z = z_all[:, ::-1] if flip else z_all
        y = _ref_one_direction(x, z, P["conv_w_t"][i], P["conv_b"][i],
                               P["w_dt"][i], P["w_B"][i], P["w_C"][i],
                               P["w_dtp"][i], P["dt_b"][i], P["A_t"][i],
                               P["Dskip"][i])
        if flip:
            y = y[:, ::-1]
        outs.append(y)
    return sum(outs) @ P["w_out"]


# ---------------------------------------------------------------------------
# Deterministic parameter construction (shapes follow Super_MultiMamba.__init__)
# ---------------------------------------------------------------------------
def make_params(key, E, d_inner, d_state, K, R, ndirs):
    k_in, k_out, k_dirs = jax.random.split(key, 3)
    w_in = jax.random.normal(k_in, (E, 2 * d_inner), jnp.float32) / math.sqrt(E)
    w_out = jax.random.normal(k_out, (d_inner, E), jnp.float32) / math.sqrt(d_inner)

    A_log = jnp.log(jnp.arange(1, d_state + 1, dtype=jnp.float32))
    A = -jnp.exp(jnp.broadcast_to(A_log, (d_inner, d_state)))     # (D_in, N)
    A_t = A.T                                                     # (N, D_in)

    pad_to = ((R + 2 * d_state + 127) // 128) * 128               # lane-dense fused w

    dirs = []
    for kd in jax.random.split(k_dirs, ndirs):
        ks = jax.random.split(kd, 5)
        a = 1.0 / math.sqrt(K)
        conv_w_t = jax.random.uniform(ks[0], (K, d_inner), minval=-a, maxval=a)
        conv_b = jax.random.uniform(ks[1], (1, d_inner), minval=-a, maxval=a)
        xproj = jax.random.normal(ks[2], (d_inner, R + 2 * d_state),
                                  jnp.float32) / math.sqrt(d_inner)
        dt_std = R ** -0.5
        w_dtp = jax.random.uniform(ks[3], (R, d_inner), minval=-dt_std,
                                   maxval=dt_std)
        dt = jnp.exp(jax.random.uniform(ks[4], (d_inner,)) *
                     (math.log(0.1) - math.log(0.001)) + math.log(0.001))
        dt = jnp.maximum(dt, 1e-4)
        inv_dt = dt + jnp.log(-jnp.expm1(-dt))
        w_xproj = jnp.pad(xproj, ((0, 0), (0, pad_to - (R + 2 * d_state))))
        dirs.append(dict(conv_w_t=conv_w_t, conv_b=conv_b,
                         w_dt=xproj[:, :R], w_B=xproj[:, R:R + d_state],
                         w_C=xproj[:, R + d_state:], w_xproj=w_xproj,
                         w_dtp=w_dtp, dt_b=inv_dt.reshape(1, d_inner),
                         A_t=A_t, Dskip=jnp.ones((1, d_inner), jnp.float32)))

    names = ["conv_w_t", "conv_b", "w_dt", "w_B", "w_C", "w_xproj",
             "w_dtp", "dt_b", "A_t", "Dskip"]
    P = {n: jnp.stack([dd[n] for dd in dirs], axis=0) for n in names}
    P.update(w_in=w_in, w_out=w_out)
    return P


if __name__ == "__main__":
    # small config consistent with the module: embed_dim=64, expand=2 ->
    # d_inner=128 (lane-dense), d_state=8, kernel_size=4,
    # dt_rank=ceil(64/16)=4, directions=('h', 'h_flip')
    B, L, E = 2, 16, 64
    expand_ratio = 2.0
    d_inner = int(expand_ratio * E)      # 128
    d_state = 8
    K = 4
    R = math.ceil(E / 16)                # 4
    ndirs = 2

    key = jax.random.PRNGKey(0)
    k_param, k_x = jax.random.split(key)
    P = make_params(k_param, E, d_inner, d_state, K, R, ndirs)
    hidden = jax.random.normal(k_x, (B, L, E), jnp.float32)

    fwd = jax.jit(lambda h, p: super_multi_mamba_forward(h, p, d_inner))
    out = jax.block_until_ready(fwd(hidden, P))

    ref = reference_forward(hidden, P, d_inner, ndirs)
    err = float(jnp.max(jnp.abs(out - ref)))
    scale = float(jnp.max(jnp.abs(ref)))
    # relative-to-scale tolerance: matmuls use bf16 operands (f32 accumulate)
    if not (err <= 2e-2 * max(1.0, scale)):
        raise SystemExit(f"mismatch: max abs err = {err} (ref scale {scale})")
    print("KERNEL_OK")
</pallas_src>

<mosaic_0001>
module attributes {stable_mosaic.version = 11 : i64} {
  func.func @_matmul_kernel(%arg0: i32, %arg1: i32, %arg2: i32, %arg3: memref<32x64xf32, #tpu.memory_space<vmem>>, %arg4: memref<64x256xf32, #tpu.memory_space<vmem>>, %arg5: memref<32x256xf32, #tpu.memory_space<vmem>>, %arg6: memref<32x256xf32, #tpu.memory_space<vmem>>) attributes {dimension_semantics = [#tpu.dimension_semantics<parallel>, #tpu.dimension_semantics<parallel>, #tpu.dimension_semantics<arbitrary>], iteration_bounds = array<i64: 1, 1, 1>, scalar_prefetch = 0 : i64, scratch_operands = 1 : i64, tpu.core_type = #tpu.core_type<tc>, window_params = [{transform_indices = @transform_0, window_bounds = array<i64: 32, 64>}, {transform_indices = @transform_1, window_bounds = array<i64: 64, 256>}, {transform_indices = @transform_2, window_bounds = array<i64: 32, 256>}]} {
    %c0_i32 = arith.constant 0 : i32
    %0 = arith.cmpi eq, %arg2, %c0_i32 : i32
    %1 = arith.extui %0 : i1 to i32
    %c0_i32_0 = arith.constant 0 : i32
    %2 = arith.cmpi ne, %1, %c0_i32_0 : i32
    scf.if %2 {
      %cst_10 = arith.constant 0.000000e+00 : f32
      %14 = vector.broadcast %cst_10 : f32 to vector<32x256xf32>
      %c0_11 = arith.constant 0 : index
      %c0_12 = arith.constant 0 : index
      %15 = vector.load %arg6[%c0_11, %c0_12] : memref<32x256xf32, #tpu.memory_space<vmem>>, vector<32x256xf32>
      tpu.vector_store %arg6[%c0_11, %c0_12], %14 {strides = array<i32>} : memref<32x256xf32, #tpu.memory_space<vmem>>, vector<32x256xf32>,
    } else {
    }
    %c0 = arith.constant 0 : index
    %c0_1 = arith.constant 0 : index
    %3 = vector.load %arg6[%c0, %c0_1] : memref<32x256xf32, #tpu.memory_space<vmem>>, vector<32x256xf32>
    %c0_2 = arith.constant 0 : index
    %c0_3 = arith.constant 0 : index
    %4 = vector.load %arg3[%c0_2, %c0_3] : memref<32x64xf32, #tpu.memory_space<vmem>>, vector<32x64xf32>
    %5 = arith.truncf %4 : vector<32x64xf32> to vector<32x64xbf16>
    %c0_4 = arith.constant 0 : index
    %c0_5 = arith.constant 0 : index
    %6 = vector.load %arg4[%c0_4, %c0_5] : memref<64x256xf32, #tpu.memory_space<vmem>>, vector<64x256xf32>
    %7 = arith.truncf %6 : vector<64x256xf32> to vector<64x256xbf16>
    %cst = arith.constant dense<0.000000e+00> : vector<32x256xf32>
    %8 = tpu.matmul %5, %7, %cst {dimension_numbers = #tpu.dot_dimension_numbers<[1], [0], [0], [1], [0, 0, 1, 1], [], []>} : vector<32x64xbf16>, vector<64x256xbf16>, vector<32x256xf32> -> vector<32x256xf32>
    %9 = arith.addf %3, %8 : vector<32x256xf32>
    %c0_6 = arith.constant 0 : index
    %c0_7 = arith.constant 0 : index
    %10 = vector.load %arg6[%c0_6, %c0_7] : memref<32x256xf32, #tpu.memory_space<vmem>>, vector<32x256xf32>
    tpu.vector_store %arg6[%c0_6, %c0_7], %9 {strides = array<i32>} : memref<32x256xf32, #tpu.memory_space<vmem>>, vector<32x256xf32>,
    %c0_i32_8 = arith.constant 0 : i32
    %11 = arith.cmpi eq, %arg2, %c0_i32_8 : i32
    %12 = arith.extui %11 : i1 to i32
    %c0_i32_9 = arith.constant 0 : i32
    %13 = arith.cmpi ne, %12, %c0_i32_9 : i32
    scf.if %13 {
      %c0_10 = arith.constant 0 : index
      %c0_11 = arith.constant 0 : index
      %14 = vector.load %arg6[%c0_10, %c0_11] : memref<32x256xf32, #tpu.memory_space<vmem>>, vector<32x256xf32>
      %c0_12 = arith.constant 0 : index
      %c0_13 = arith.constant 0 : index
      %15 = vector.load %arg5[%c0_12, %c0_13] : memref<32x256xf32, #tpu.memory_space<vmem>>, vector<32x256xf32>
      tpu.vector_store %arg5[%c0_12, %c0_13], %14 {strides = array<i32>} : memref<32x256xf32, #tpu.memory_space<vmem>>, vector<32x256xf32>,
    } else {
    }
    return
  }
  func.func @transform_0(%arg0: i32, %arg1: i32, %arg2: i32) -> (i32, i32) {
    %c0_i32 = arith.constant 0 : i32
    return %arg0, %arg2 : i32, i32
  }
  func.func @transform_1(%arg0: i32, %arg1: i32, %arg2: i32) -> (i32, i32) {
    %c0_i32 = arith.constant 0 : i32
    return %arg2, %arg1 : i32, i32
  }
  func.func @transform_2(%arg0: i32, %arg1: i32, %arg2: i32) -> (i32, i32) {
    %c0_i32 = arith.constant 0 : i32
    return %arg0, %arg1 : i32, i32
  }
}

module attributes {stable_mosaic.version = 11 : i64} {
  func.func @_matmul_kernel(%arg0: i32, %arg1: i32, %arg2: i32, %arg3: memref<32x128xf32, #tpu.memory_space<vmem>>, %arg4: memref<128x64xf32, #tpu.memory_space<vmem>>, %arg5: memref<32x64xf32, #tpu.memory_space<vmem>>, %arg6: memref<32x64xf32, #tpu.memory_space<vmem>>) attributes {dimension_semantics = [#tpu.dimension_semantics<parallel>, #tpu.dimension_semantics<parallel>, #tpu.dimension_semantics<arbitrary>], iteration_bounds = array<i64: 1, 1, 1>, scalar_prefetch = 0 : i64, scratch_operands = 1 : i64, tpu.core_type = #tpu.core_type<tc>, window_params = [{transform_indices = @transform_0, window_bounds = array<i64: 32, 128>}, {transform_indices = @transform_1, window_bounds = array<i64: 128, 64>}, {transform_indices = @transform_2, window_bounds = array<i64: 32, 64>}]} {
    %c0_i32 = arith.constant 0 : i32
    %0 = arith.cmpi eq, %arg2, %c0_i32 : i32
    %1 = arith.extui %0 : i1 to i32
    %c0_i32_0 = arith.constant 0 : i32
    %2 = arith.cmpi ne, %1, %c0_i32_0 : i32
    scf.if %2 {
      %cst_10 = arith.constant 0.000000e+00 : f32
      %14 = vector.broadcast %cst_10 : f32 to vector<32x64xf32>
      %c0_11 = arith.constant 0 : index
      %c0_12 = arith.constant 0 : index
      %15 = vector.load %arg6[%c0_11, %c0_12] : memref<32x64xf32, #tpu.memory_space<vmem>>, vector<32x64xf32>
      tpu.vector_store %arg6[%c0_11, %c0_12], %14 {strides = array<i32>} : memref<32x64xf32, #tpu.memory_space<vmem>>, vector<32x64xf32>,
    } else {
    }
    %c0 = arith.constant 0 : index
    %c0_1 = arith.constant 0 : index
    %3 = vector.load %arg6[%c0, %c0_1] : memref<32x64xf32, #tpu.memory_space<vmem>>, vector<32x64xf32>
    %c0_2 = arith.constant 0 : index
    %c0_3 = arith.constant 0 : index
    %4 = vector.load %arg3[%c0_2, %c0_3] : memref<32x128xf32, #tpu.memory_space<vmem>>, vector<32x128xf32>
    %5 = arith.truncf %4 : vector<32x128xf32> to vector<32x128xbf16>
    %c0_4 = arith.constant 0 : index
    %c0_5 = arith.constant 0 : index
    %6 = vector.load %arg4[%c0_4, %c0_5] : memref<128x64xf32, #tpu.memory_space<vmem>>, vector<128x64xf32>
    %7 = arith.truncf %6 : vector<128x64xf32> to vector<128x64xbf16>
    %cst = arith.constant dense<0.000000e+00> : vector<32x64xf32>
    %8 = tpu.matmul %5, %7, %cst {dimension_numbers = #tpu.dot_dimension_numbers<[1], [0], [0], [1], [0, 0, 1, 1], [], []>} : vector<32x128xbf16>, vector<128x64xbf16>, vector<32x64xf32> -> vector<32x64xf32>
    %9 = arith.addf %3, %8 : vector<32x64xf32>
    %c0_6 = arith.constant 0 : index
    %c0_7 = arith.constant 0 : index
    %10 = vector.load %arg6[%c0_6, %c0_7] : memref<32x64xf32, #tpu.memory_space<vmem>>, vector<32x64xf32>
    tpu.vector_store %arg6[%c0_6, %c0_7], %9 {strides = array<i32>} : memref<32x64xf32, #tpu.memory_space<vmem>>, vector<32x64xf32>,
    %c0_i32_8 = arith.constant 0 : i32
    %11 = arith.cmpi eq, %arg2, %c0_i32_8 : i32
    %12 = arith.extui %11 : i1 to i32
    %c0_i32_9 = arith.constant 0 : i32
    %13 = arith.cmpi ne, %12, %c0_i32_9 : i32
    scf.if %13 {
      %c0_10 = arith.constant 0 : index
      %c0_11 = arith.constant 0 : index
      %14 = vector.load %arg6[%c0_10, %c0_11] : memref<32x64xf32, #tpu.memory_space<vmem>>, vector<32x64xf32>
      %c0_12 = arith.constant 0 : index
      %c0_13 = arith.constant 0 : index
      %15 = vector.load %arg5[%c0_12, %c0_13] : memref<32x64xf32, #tpu.memory_space<vmem>>, vector<32x64xf32>
      tpu.vector_store %arg5[%c0_12, %c0_13], %14 {strides = array<i32>} : memref<32x64xf32, #tpu.memory_space<vmem>>, vector<32x64xf32>,
    } else {
    }
    return
  }
  func.func @transform_0(%arg0: i32, %arg1: i32, %arg2: i32) -> (i32, i32) {
    %c0_i32 = arith.constant 0 : i32
    return %arg0, %arg2 : i32, i32
  }
  func.func @transform_1(%arg0: i32, %arg1: i32, %arg2: i32) -> (i32, i32) {
    %c0_i32 = arith.constant 0 : i32
    return %arg2, %arg1 : i32, i32
  }
  func.func @transform_2(%arg0: i32, %arg1: i32, %arg2: i32) -> (i32, i32) {
    %c0_i32 = arith.constant 0 : i32
    return %arg0, %arg1 : i32, i32
  }
}

module attributes {stable_mosaic.version = 11 : i64} {
  func.func @_mamba_kernel(%arg0: i32, %arg1: i32, %arg2: memref<1x16x256xf32, #tpu.memory_space<vmem>>, %arg3: memref<1x4x128xf32, #tpu.memory_space<vmem>>, %arg4: memref<1x1x128xf32, #tpu.memory_space<vmem>>, %arg5: memref<1x128x128xf32, #tpu.memory_space<vmem>>, %arg6: memref<1x4x128xf32, #tpu.memory_space<vmem>>, %arg7: memref<1x1x128xf32, #tpu.memory_space<vmem>>, %arg8: memref<1x8x128xf32, #tpu.memory_space<vmem>>, %arg9: memref<1x1x128xf32, #tpu.memory_space<vmem>>, %arg10: memref<1x16x128xf32, #tpu.memory_space<vmem>>, %arg11: memref<32x128xf32, #tpu.memory_space<vmem>>, %arg12: memref<128x128xf32, #tpu.memory_space<vmem>>, %arg13: memref<128x128xf32, #tpu.memory_space<vmem>>, %arg14: memref<128x128xf32, #tpu.memory_space<vmem>>, %arg15: memref<16x128xf32, #tpu.memory_space<vmem>>) attributes {dimension_semantics = [#tpu.dimension_semantics<parallel>, #tpu.dimension_semantics<arbitrary>], iteration_bounds = array<i64: 2, 2>, scalar_prefetch = 0 : i64, scratch_operands = 5 : i64, tpu.core_type = #tpu.core_type<tc>, window_params = [{transform_indices = @transform_0, window_bounds = array<i64: 1, 16, 256>}, {transform_indices = @transform_1, window_bounds = array<i64: 1, 4, 128>}, {transform_indices = @transform_2, window_bounds = array<i64: 1, 1, 128>}, {transform_indices = @transform_3, window_bounds = array<i64: 1, 128, 128>}, {transform_indices = @transform_4, window_bounds = array<i64: 1, 4, 128>}, {transform_indices = @transform_5, window_bounds = array<i64: 1, 1, 128>}, {transform_indices = @transform_6, window_bounds = array<i64: 1, 8, 128>}, {transform_indices = @transform_7, window_bounds = array<i64: 1, 1, 128>}, {transform_indices = @transform_8, window_bounds = array<i64: 1, 16, 128>}]} {
    %c1_i32 = arith.constant 1 : i32
    %0 = arith.cmpi eq, %arg1, %c1_i32 : i32
    %c0 = arith.constant 0 : index
    %c0_0 = arith.constant 0 : index
    %c0_1 = arith.constant 0 : index
    %1 = vector.load %arg2[%c0, %c0_0, %c0_1] : memref<1x16x256xf32, #tpu.memory_space<vmem>>, vector<1x16x128xf32>
    %2 = vector.shape_cast %1 : vector<1x16x128xf32> to vector<16x128xf32>
    %c0_2 = arith.constant 0 : index
    %c0_3 = arith.constant 0 : index
    %c128 = arith.constant 128 : index
    %3 = vector.load %arg2[%c0_2, %c0_3, %c128] : memref<1x16x256xf32, #tpu.memory_space<vmem>>, vector<1x16x128xf32>
    %4 = vector.shape_cast %3 : vector<1x16x128xf32> to vector<16x128xf32>
    %cst = arith.constant 0.000000e+00 : f32
    %5 = vector.broadcast %cst : f32 to vector<8x128xf32>
    %c0_4 = arith.constant 0 : index
    %c0_5 = arith.constant 0 : index
    %6 = vector.load %arg11[%c0_4, %c0_5] : memref<32x128xf32, #tpu.memory_space<vmem>>, vector<8x128xf32>
    tpu.vector_store %arg11[%c0_4, %c0_5], %5 {strides = array<i32>} : memref<32x128xf32, #tpu.memory_space<vmem>>, vector<8x128xf32>,
    %cst_6 = arith.constant 0.000000e+00 : f32
    %7 = vector.broadcast %cst_6 : f32 to vector<8x128xf32>
    %c24 = arith.constant 24 : index
    %c0_7 = arith.constant 0 : index
    %8 = vector.load %arg11[%c24, %c0_7] : memref<32x128xf32, #tpu.memory_space<vmem>>, vector<8x128xf32>
    tpu.vector_store %arg11[%c24, %c0_7], %7 {strides = array<i32>} : memref<32x128xf32, #tpu.memory_space<vmem>>, vector<8x128xf32>,
    %c8 = arith.constant 8 : index
    %c0_8 = arith.constant 0 : index
    %9 = vector.load %arg11[%c8, %c0_8] : memref<32x128xf32, #tpu.memory_space<vmem>>, vector<16x128xf32>
    tpu.vector_store %arg11[%c8, %c0_8], %2 {strides = array<i32>} : memref<32x128xf32, #tpu.memory_space<vmem>>, vector<16x128xf32>,
    %c0_9 = arith.constant 0 : index
    %c0_10 = arith.constant 0 : index
    %c0_11 = arith.constant 0 : index
    %10 = vector.load %arg4[%c0_9, %c0_10, %c0_11] : memref<1x1x128xf32, #tpu.memory_space<vmem>>, vector<1x1x128xf32>
    %11 = vector.shape_cast %10 : vector<1x1x128xf32> to vector<1x128xf32>
    %12 = vector.shape_cast %11 : vector<1x128xf32> to vector<1x128xf32>
    %13 = vector.broadcast %12 : vector<1x128xf32> to vector<16x128xf32>
    %c3_i32 = arith.constant 3 : i32
    %c-3_i32 = arith.constant -3 : i32
    %14 = arith.select %0, %c3_i32, %c-3_i32 : i32
    %c8_i32 = arith.constant 8 : i32
    %15 = arith.addi %c8_i32, %14 : i32
    %c0_12 = arith.constant 0 : index
    %c0_13 = arith.constant 0 : index
    %c0_14 = arith.constant 0 : index
    %16 = vector.load %arg3[%c0_12, %c0_13, %c0_14] : memref<1x4x128xf32, #tpu.memory_space<vmem>>, vector<1x1x128xf32>
    %17 = vector.shape_cast %16 : vector<1x1x128xf32> to vector<1x128xf32>
    %18 = arith.index_cast %15 : i32 to index
    %c0_15 = arith.constant 0 : index
    %19 = vector.load %arg11[%18, %c0_15] : memref<32x128xf32, #tpu.memory_space<vmem>>, vector<16x128xf32>
    %20 = vector.broadcast %17 : vector<1x128xf32> to vector<16x128xf32>
    %21 = arith.mulf %20, %19 : vector<16x128xf32>
    %22 = arith.addf %13, %21 : vector<16x128xf32>
    %c2_i32 = arith.constant 2 : i32
    %c-2_i32 = arith.constant -2 : i32
    %23 = arith.select %0, %c2_i32, %c-2_i32 : i32
    %c8_i32_16 = arith.constant 8 : i32
    %24 = arith.addi %c8_i32_16, %23 : i32
    %c0_17 = arith.constant 0 : index
    %c1 = arith.constant 1 : index
    %c0_18 = arith.constant 0 : index
    %25 = vector.load %arg3[%c0_17, %c1, %c0_18] : memref<1x4x128xf32, #tpu.memory_space<vmem>>, vector<1x1x128xf32>
    %26 = vector.shape_cast %25 : vector<1x1x128xf32> to vector<1x128xf32>
    %27 = arith.index_cast %24 : i32 to index
    %c0_19 = arith.constant 0 : index
    %28 = vector.load %arg11[%27, %c0_19] : memref<32x128xf32, #tpu.memory_space<vmem>>, vector<16x128xf32>
    %29 = vector.broadcast %26 : vector<1x128xf32> to vector<16x128xf32>
    %30 = arith.mulf %29, %28 : vector<16x128xf32>
    %31 = arith.addf %22, %30 : vector<16x128xf32>
    %c1_i32_20 = arith.constant 1 : i32
    %c-1_i32 = arith.constant -1 : i32
    %32 = arith.select %0, %c1_i32_20, %c-1_i32 : i32
    %c8_i32_21 = arith.constant 8 : i32
    %33 = arith.addi %c8_i32_21, %32 : i32
    %c0_22 = arith.constant 0 : index
    %c2 = arith.constant 2 : index
    %c0_23 = arith.constant 0 : index
    %34 = vector.load %arg3[%c0_22, %c2, %c0_23] : memref<1x4x128xf32, #tpu.memory_space<vmem>>, vector<1x1x128xf32>
    %35 = vector.shape_cast %34 : vector<1x1x128xf32> to vector<1x128xf32>
    %36 = arith.index_cast %33 : i32 to index
    %c0_24 = arith.constant 0 : index
    %37 = vector.load %arg11[%36, %c0_24] : memref<32x128xf32, #tpu.memory_space<vmem>>, vector<16x128xf32>
    %38 = vector.broadcast %35 : vector<1x128xf32> to vector<16x128xf32>
    %39 = arith.mulf %38, %37 : vector<16x128xf32>
    %40 = arith.addf %31, %39 : vector<16x128xf32>
    %c0_i32 = arith.constant 0 : i32
    %c0_i32_25 = arith.constant 0 : i32
    %41 = arith.select %0, %c0_i32, %c0_i32_25 : i32
    %c8_i32_26 = arith.constant 8 : i32
    %42 = arith.addi %c8_i32_26, %41 : i32
    %c0_27 = arith.constant 0 : index
    %c3 = arith.constant 3 : index
    %c0_28 = arith.constant 0 : index
    %43 = vector.load %arg3[%c0_27, %c3, %c0_28] : memref<1x4x128xf32, #tpu.memory_space<vmem>>, vector<1x1x128xf32>
    %44 = vector.shape_cast %43 : vector<1x1x128xf32> to vector<1x128xf32>
    %45 = arith.index_cast %42 : i32 to index
    %c0_29 = arith.constant 0 : index
    %46 = vector.load %arg11[%45, %c0_29] : memref<32x128xf32, #tpu.memory_space<vmem>>, vector<16x128xf32>
    %47 = vector.broadcast %44 : vector<1x128xf32> to vector<16x128xf32>
    %48 = arith.mulf %47, %46 : vector<16x128xf32>
    %49 = arith.addf %40, %48 : vector<16x128xf32>
    %50 = arith.negf %49 : vector<16x128xf32>
    %51 = math.exp %50 : vector<16x128xf32>
    %cst_30 = arith.constant 1.000000e+00 : f32
    %52 = vector.broadcast %cst_30 : f32 to vector<16x128xf32>
    %53 = arith.addf %52, %51 : vector<16x128xf32>
    %54 = arith.divf %52, %53 : vector<16x128xf32>
    %55 = arith.mulf %49, %54 : vector<16x128xf32>
    %56 = arith.truncf %55 : vector<16x128xf32> to vector<16x128xbf16>
    %c0_31 = arith.constant 0 : index
    %c0_32 = arith.constant 0 : index
    %c0_33 = arith.constant 0 : index
    %57 = vector.load %arg5[%c0_31, %c0_32, %c0_33] : memref<1x128x128xf32, #tpu.memory_space<vmem>>, vector<1x128x128xf32>
    %58 = vector.shape_cast %57 : vector<1x128x128xf32> to vector<128x128xf32>
    %59 = arith.truncf %58 : vector<128x128xf32> to vector<128x128xbf16>
    %cst_34 = arith.constant dense<0.000000e+00> : vector<16x128xf32>
    %60 = tpu.matmul %56, %59, %cst_34 {dimension_numbers = #tpu.dot_dimension_numbers<[1], [0], [0], [1], [0, 0, 1, 1], [], []>} : vector<16x128xbf16>, vector<128x128xbf16>, vector<16x128xf32> -> vector<16x128xf32>
    %c0_35 = arith.constant 0 : index
    %c0_36 = arith.constant 0 : index
    %c0_37 = arith.constant 0 : index
    %61 = vector.load %arg7[%c0_35, %c0_36, %c0_37] : memref<1x1x128xf32, #tpu.memory_space<vmem>>, vector<1x1x128xf32>
    %62 = vector.shape_cast %61 : vector<1x1x128xf32> to vector<1x128xf32>
    %63 = vector.shape_cast %62 : vector<1x128xf32> to vector<1x128xf32>
    %64 = vector.broadcast %63 : vector<1x128xf32> to vector<16x128xf32>
    %65 = vector.extract_strided_slice %60 {offsets = [0, 0], sizes = [16, 1], strides = [1, 1]} : vector<16x128xf32> to vector<16x1xf32>
    %c0_38 = arith.constant 0 : index
    %c0_39 = arith.constant 0 : index
    %c0_40 = arith.constant 0 : index
    %66 = vector.load %arg6[%c0_38, %c0_39, %c0_40] : memref<1x4x128xf32, #tpu.memory_space<vmem>>, vector<1x1x128xf32>
    %67 = vector.shape_cast %66 : vector<1x1x128xf32> to vector<1x128xf32>
    %68 = vector.broadcast %65 : vector<16x1xf32> to vector<16x128xf32>
    %69 = vector.broadcast %67 : vector<1x128xf32> to vector<16x128xf32>
    %70 = arith.mulf %68, %69 : vector<16x128xf32>
    %71 = arith.addf %64, %70 : vector<16x128xf32>
    %72 = vector.extract_strided_slice %60 {offsets = [0, 1], sizes = [16, 1], strides = [1, 1]} : vector<16x128xf32> to vector<16x1xf32>
    %c0_41 = arith.constant 0 : index
    %c1_42 = arith.constant 1 : index
    %c0_43 = arith.constant 0 : index
    %73 = vector.load %arg6[%c0_41, %c1_42, %c0_43] : memref<1x4x128xf32, #tpu.memory_space<vmem>>, vector<1x1x128xf32>
    %74 = vector.shape_cast %73 : vector<1x1x128xf32> to vector<1x128xf32>
    %75 = vector.broadcast %72 : vector<16x1xf32> to vector<16x128xf32>
    %76 = vector.broadcast %74 : vector<1x128xf32> to vector<16x128xf32>
    %77 = arith.mulf %75, %76 : vector<16x128xf32>
    %78 = arith.addf %71, %77 : vector<16x128xf32>
    %79 = vector.extract_strided_slice %60 {offsets = [0, 2], sizes = [16, 1], strides = [1, 1]} : vector<16x128xf32> to vector<16x1xf32>
    %c0_44 = arith.constant 0 : index
    %c2_45 = arith.constant 2 : index
    %c0_46 = arith.constant 0 : index
    %80 = vector.load %arg6[%c0_44, %c2_45, %c0_46] : memref<1x4x128xf32, #tpu.memory_space<vmem>>, vector<1x1x128xf32>
    %81 = vector.shape_cast %80 : vector<1x1x128xf32> to vector<1x128xf32>
    %82 = vector.broadcast %79 : vector<16x1xf32> to vector<16x128xf32>
    %83 = vector.broadcast %81 : vector<1x128xf32> to vector<16x128xf32>
    %84 = arith.mulf %82, %83 : vector<16x128xf32>
    %85 = arith.addf %78, %84 : vector<16x128xf32>
    %86 = vector.extract_strided_slice %60 {offsets = [0, 3], sizes = [16, 1], strides = [1, 1]} : vector<16x128xf32> to vector<16x1xf32>
    %c0_47 = arith.constant 0 : index
    %c3_48 = arith.constant 3 : index
    %c0_49 = arith.constant 0 : index
    %87 = vector.load %arg6[%c0_47, %c3_48, %c0_49] : memref<1x4x128xf32, #tpu.memory_space<vmem>>, vector<1x1x128xf32>
    %88 = vector.shape_cast %87 : vector<1x1x128xf32> to vector<1x128xf32>
    %89 = vector.broadcast %86 : vector<16x1xf32> to vector<16x128xf32>
    %90 = vector.broadcast %88 : vector<1x128xf32> to vector<16x128xf32>
    %91 = arith.mulf %89, %90 : vector<16x128xf32>
    %92 = arith.addf %85, %91 : vector<16x128xf32>
    %cst_50 = arith.constant 2.000000e+01 : f32
    %93 = vector.broadcast %cst_50 : f32 to vector<16x128xf32>
    %94 = arith.cmpf ogt, %92, %93 : vector<16x128xf32>
    %cst_51 = arith.constant 2.000000e+01 : f32
    %95 = vector.broadcast %cst_51 : f32 to vector<16x128xf32>
    %96 = arith.minimumf %92, %95 : vector<16x128xf32>
    %97 = math.exp %96 : vector<16x128xf32>
    %cst_52 = arith.constant 1.000000e+00 : f32
    %98 = vector.broadcast %cst_52 : f32 to vector<16x128xf32>
    %99 = arith.addf %98, %97 : vector<16x128xf32>
    %100 = math.log %99 : vector<16x128xf32>
    %101 = arith.select %94, %92, %100 : vector<16x128xi1>, vector<16x128xf32>
    %102 = arith.mulf %101, %55 : vector<16x128xf32>
    %c0_53 = arith.constant 0 : index
    %c0_54 = arith.constant 0 : index
    %c0_55 = arith.constant 0 : index
    %103 = vector.load %arg8[%c0_53, %c0_54, %c0_55] : memref<1x8x128xf32, #tpu.memory_space<vmem>>, vector<1x1x128xf32>
    %104 = vector.shape_cast %103 : vector<1x1x128xf32> to vector<1x128xf32>
    %105 = vector.broadcast %104 : vector<1x128xf32> to vector<16x128xf32>
    %106 = arith.mulf %101, %105 : vector<16x128xf32>
    %107 = math.exp %106 : vector<16x128xf32>
    %c0_56 = arith.constant 0 : index
    %c0_57 = arith.constant 0 : index
    %108 = vector.load %arg12[%c0_56, %c0_57] : memref<128x128xf32, #tpu.memory_space<vmem>>, vector<16x128xf32>
    tpu.vector_store %arg12[%c0_56, %c0_57], %107 {strides = array<i32>} : memref<128x128xf32, #tpu.memory_space<vmem>>, vector<16x128xf32>,
    %109 = vector.extract_strided_slice %60 {offsets = [0, 4], sizes = [16, 1], strides = [1, 1]} : vector<16x128xf32> to vector<16x1xf32>
    %110 = vector.broadcast %109 : vector<16x1xf32> to vector<16x128xf32>
    %111 = arith.mulf %110, %102 : vector<16x128xf32>
    %c0_58 = arith.constant 0 : index
    %c0_59 = arith.constant 0 : index
    %112 = vector.load %arg13[%c0_58, %c0_59] : memref<128x128xf32, #tpu.memory_space<vmem>>, vector<16x128xf32>
    tpu.vector_store %arg13[%c0_58, %c0_59], %111 {strides = array<i32>} : memref<128x128xf32, #tpu.memory_space<vmem>>, vector<16x128xf32>,
    %113 = vector.extract_strided_slice %60 {offsets = [0, 12], sizes = [16, 1], strides = [1, 1]} : vector<16x128xf32> to vector<16x1xf32>
    %114 = vector.shape_cast %113 : vector<16x1xf32> to vector<16x1xf32>
    %115 = vector.broadcast %114 : vector<16x1xf32> to vector<16x128xf32>
    %c0_60 = arith.constant 0 : index
    %c0_61 = arith.constant 0 : index
    %116 = vector.load %arg14[%c0_60, %c0_61] : memref<128x128xf32, #tpu.memory_space<vmem>>, vector<16x128xf32>
    tpu.vector_store %arg14[%c0_60, %c0_61], %115 {strides = array<i32>} : memref<128x128xf32, #tpu.memory_space<vmem>>, vector<16x128xf32>,
    %c0_62 = arith.constant 0 : index
    %c1_63 = arith.constant 1 : index
    %c0_64 = arith.constant 0 : index
    %117 = vector.load %arg8[%c0_62, %c1_63, %c0_64] : memref<1x8x128xf32, #tpu.memory_space<vmem>>, vector<1x1x128xf32>
    %118 = vector.shape_cast %117 : vector<1x1x128xf32> to vector<1x128xf32>
    %119 = vector.broadcast %118 : vector<1x128xf32> to vector<16x128xf32>
    %120 = arith.mulf %101, %119 : vector<16x128xf32>
    %121 = math.exp %120 : vector<16x128xf32>
    %c16 = arith.constant 16 : index
    %c0_65 = arith.constant 0 : index
    %122 = vector.load %arg12[%c16, %c0_65] : memref<128x128xf32, #tpu.memory_space<vmem>>, vector<16x128xf32>
    tpu.vector_store %arg12[%c16, %c0_65], %121 {strides = array<i32>} : memref<128x128xf32, #tpu.memory_space<vmem>>, vector<16x128xf32>,
    %123 = vector.extract_strided_slice %60 {offsets = [0, 5], sizes = [16, 1], strides = [1, 1]} : vector<16x128xf32> to vector<16x1xf32>
    %124 = vector.broadcast %123 : vector<16x1xf32> to vector<16x128xf32>
    %125 = arith.mulf %124, %102 : vector<16x128xf32>
    %c16_66 = arith.constant 16 : index
    %c0_67 = arith.constant 0 : index
    %126 = vector.load %arg13[%c16_66, %c0_67] : memref<128x128xf32, #tpu.memory_space<vmem>>, vector<16x128xf32>
    tpu.vector_store %arg13[%c16_66, %c0_67], %125 {strides = array<i32>} : memref<128x128xf32, #tpu.memory_space<vmem>>, vector<16x128xf32>,
    %127 = vector.extract_strided_slice %60 {offsets = [0, 13], sizes = [16, 1], strides = [1, 1]} : vector<16x128xf32> to vector<16x1xf32>
    %128 = vector.shape_cast %127 : vector<16x1xf32> to vector<16x1xf32>
    %129 = vector.broadcast %128 : vector<16x1xf32> to vector<16x128xf32>
    %c16_68 = arith.constant 16 : index
    %c0_69 = arith.constant 0 : index
    %130 = vector.load %arg14[%c16_68, %c0_69] : memref<128x128xf32, #tpu.memory_space<vmem>>, vector<16x128xf32>
    tpu.vector_store %arg14[%c16_68, %c0_69], %129 {strides = array<i32>} : memref<128x128xf32, #tpu.memory_space<vmem>>, vector<16x128xf32>,
    %c0_70 = arith.constant 0 : index
    %c2_71 = arith.constant 2 : index
    %c0_72 = arith.constant 0 : index
    %131 = vector.load %arg8[%c0_70, %c2_71, %c0_72] : memref<1x8x128xf32, #tpu.memory_space<vmem>>, vector<1x1x128xf32>
    %132 = vector.shape_cast %131 : vector<1x1x128xf32> to vector<1x128xf32>
    %133 = vector.broadcast %132 : vector<1x128xf32> to vector<16x128xf32>
    %134 = arith.mulf %101, %133 : vector<16x128xf32>
    %135 = math.exp %134 : vector<16x128xf32>
    %c32 = arith.constant 32 : index
    %c0_73 = arith.constant 0 : index
    %136 = vector.load %arg12[%c32, %c0_73] : memref<128x128xf32, #tpu.memory_space<vmem>>, vector<16x128xf32>
    tpu.vector_store %arg12[%c32, %c0_73], %135 {strides = array<i32>} : memref<128x128xf32, #tpu.memory_space<vmem>>, vector<16x128xf32>,
    %137 = vector.extract_strided_slice %60 {offsets = [0, 6], sizes = [16, 1], strides = [1, 1]} : vector<16x128xf32> to vector<16x1xf32>
    %138 = vector.broadcast %137 : vector<16x1xf32> to vector<16x128xf32>
    %139 = arith.mulf %138, %102 : vector<16x128xf32>
    %c32_74 = arith.constant 32 : index
    %c0_75 = arith.constant 0 : index
    %140 = vector.load %arg13[%c32_74, %c0_75] : memref<128x128xf32, #tpu.memory_space<vmem>>, vector<16x128xf32>
    tpu.vector_store %arg13[%c32_74, %c0_75], %139 {strides = array<i32>} : memref<128x128xf32, #tpu.memory_space<vmem>>, vector<16x128xf32>,
    %141 = vector.extract_strided_slice %60 {offsets = [0, 14], sizes = [16, 1], strides = [1, 1]} : vector<16x128xf32> to vector<16x1xf32>
    %142 = vector.shape_cast %141 : vector<16x1xf32> to vector<16x1xf32>
    %143 = vector.broadcast %142 : vector<16x1xf32> to vector<16x128xf32>
    %c32_76 = arith.constant 32 : index
    %c0_77 = arith.constant 0 : index
    %144 = vector.load %arg14[%c32_76, %c0_77] : memref<128x128xf32, #tpu.memory_space<vmem>>, vector<16x128xf32>
    tpu.vector_store %arg14[%c32_76, %c0_77], %143 {strides = array<i32>} : memref<128x128xf32, #tpu.memory_space<vmem>>, vector<16x128xf32>,
    %c0_78 = arith.constant 0 : index
    %c3_79 = arith.constant 3 : index
    %c0_80 = arith.constant 0 : index
    %145 = vector.load %arg8[%c0_78, %c3_79, %c0_80] : memref<1x8x128xf32, #tpu.memory_space<vmem>>, vector<1x1x128xf32>
    %146 = vector.shape_cast %145 : vector<1x1x128xf32> to vector<1x128xf32>
    %147 = vector.broadcast %146 : vector<1x128xf32> to vector<16x128xf32>
    %148 = arith.mulf %101, %147 : vector<16x128xf32>
    %149 = math.exp %148 : vector<16x128xf32>
    %c48 = arith.constant 48 : index
    %c0_81 = arith.constant 0 : index
    %150 = vector.load %arg12[%c48, %c0_81] : memref<128x128xf32, #tpu.memory_space<vmem>>, vector<16x128xf32>
    tpu.vector_store %arg12[%c48, %c0_81], %149 {strides = array<i32>} : memref<128x128xf32, #tpu.memory_space<vmem>>, vector<16x128xf32>,
    %151 = vector.extract_strided_slice %60 {offsets = [0, 7], sizes = [16, 1], strides = [1, 1]} : vector<16x128xf32> to vector<16x1xf32>
    %152 = vector.broadcast %151 : vector<16x1xf32> to vector<16x128xf32>
    %153 = arith.mulf %152, %102 : vector<16x128xf32>
    %c48_82 = arith.constant 48 : index
    %c0_83 = arith.constant 0 : index
    %154 = vector.load %arg13[%c48_82, %c0_83] : memref<128x128xf32, #tpu.memory_space<vmem>>, vector<16x128xf32>
    tpu.vector_store %arg13[%c48_82, %c0_83], %153 {strides = array<i32>} : memref<128x128xf32, #tpu.memory_space<vmem>>, vector<16x128xf32>,
    %155 = vector.extract_strided_slice %60 {offsets = [0, 15], sizes = [16, 1], strides = [1, 1]} : vector<16x128xf32> to vector<16x1xf32>
    %156 = vector.shape_cast %155 : vector<16x1xf32> to vector<16x1xf32>
    %157 = vector.broadcast %156 : vector<16x1xf32> to vector<16x128xf32>
    %c48_84 = arith.constant 48 : index
    %c0_85 = arith.constant 0 : index
    %158 = vector.load %arg14[%c48_84, %c0_85] : memref<128x128xf32, #tpu.memory_space<vmem>>, vector<16x128xf32>
    tpu.vector_store %arg14[%c48_84, %c0_85], %157 {strides = array<i32>} : memref<128x128xf32, #tpu.memory_space<vmem>>, vector<16x128xf32>,
    %c0_86 = arith.constant 0 : index
    %c4 = arith.constant 4 : index
    %c0_87 = arith.constant 0 : index
    %159 = vector.load %arg8[%c0_86, %c4, %c0_87] : memref<1x8x128xf32, #tpu.memory_space<vmem>>, vector<1x1x128xf32>
    %160 = vector.shape_cast %159 : vector<1x1x128xf32> to vector<1x128xf32>
    %161 = vector.broadcast %160 : vector<1x128xf32> to vector<16x128xf32>
    %162 = arith.mulf %101, %161 : vector<16x128xf32>
    %163 = math.exp %162 : vector<16x128xf32>
    %c64 = arith.constant 64 : index
    %c0_88 = arith.constant 0 : index
    %164 = vector.load %arg12[%c64, %c0_88] : memref<128x128xf32, #tpu.memory_space<vmem>>, vector<16x128xf32>
    tpu.vector_store %arg12[%c64, %c0_88], %163 {strides = array<i32>} : memref<128x128xf32, #tpu.memory_space<vmem>>, vector<16x128xf32>,
    %165 = vector.extract_strided_slice %60 {offsets = [0, 8], sizes = [16, 1], strides = [1, 1]} : vector<16x128xf32> to vector<16x1xf32>
    %166 = vector.broadcast %165 : vector<16x1xf32> to vector<16x128xf32>
    %167 = arith.mulf %166, %102 : vector<16x128xf32>
    %c64_89 = arith.constant 64 : index
    %c0_90 = arith.constant 0 : index
    %168 = vector.load %arg13[%c64_89, %c0_90] : memref<128x128xf32, #tpu.memory_space<vmem>>, vector<16x128xf32>
    tpu.vector_store %arg13[%c64_89, %c0_90], %167 {strides = array<i32>} : memref<128x128xf32, #tpu.memory_space<vmem>>, vector<16x128xf32>,
    %169 = vector.extract_strided_slice %60 {offsets = [0, 16], sizes = [16, 1], strides = [1, 1]} : vector<16x128xf32> to vector<16x1xf32>
    %170 = vector.shape_cast %169 : vector<16x1xf32> to vector<16x1xf32>
    %171 = vector.broadcast %170 : vector<16x1xf32> to vector<16x128xf32>
    %c64_91 = arith.constant 64 : index
    %c0_92 = arith.constant 0 : index
    %172 = vector.load %arg14[%c64_91, %c0_92] : memref<128x128xf32, #tpu.memory_space<vmem>>, vector<16x128xf32>
    tpu.vector_store %arg14[%c64_91, %c0_92], %171 {strides = array<i32>} : memref<128x128xf32, #tpu.memory_space<vmem>>, vector<16x128xf32>,
    %c0_93 = arith.constant 0 : index
    %c5 = arith.constant 5 : index
    %c0_94 = arith.constant 0 : index
    %173 = vector.load %arg8[%c0_93, %c5, %c0_94] : memref<1x8x128xf32, #tpu.memory_space<vmem>>, vector<1x1x128xf32>
    %174 = vector.shape_cast %173 : vector<1x1x128xf32> to vector<1x128xf32>
    %175 = vector.broadcast %174 : vector<1x128xf32> to vector<16x128xf32>
    %176 = arith.mulf %101, %175 : vector<16x128xf32>
    %177 = math.exp %176 : vector<16x128xf32>
    %c80 = arith.constant 80 : index
    %c0_95 = arith.constant 0 : index
    %178 = vector.load %arg12[%c80, %c0_95] : memref<128x128xf32, #tpu.memory_space<vmem>>, vector<16x128xf32>
    tpu.vector_store %arg12[%c80, %c0_95], %177 {strides = array<i32>} : memref<128x128xf32, #tpu.memory_space<vmem>>, vector<16x128xf32>,
    %179 = vector.extract_strided_slice %60 {offsets = [0, 9], sizes = [16, 1], strides = [1, 1]} : vector<16x128xf32> to vector<16x1xf32>
    %180 = vector.broadcast %179 : vector<16x1xf32> to vector<16x128xf32>
    %181 = arith.mulf %180, %102 : vector<16x128xf32>
    %c80_96 = arith.constant 80 : index
    %c0_97 = arith.constant 0 : index
    %182 = vector.load %arg13[%c80_96, %c0_97] : memref<128x128xf32, #tpu.memory_space<vmem>>, vector<16x128xf32>
    tpu.vector_store %arg13[%c80_96, %c0_97], %181 {strides = array<i32>} : memref<128x128xf32, #tpu.memory_space<vmem>>, vector<16x128xf32>,
    %183 = vector.extract_strided_slice %60 {offsets = [0, 17], sizes = [16, 1], strides = [1, 1]} : vector<16x128xf32> to vector<16x1xf32>
    %184 = vector.shape_cast %183 : vector<16x1xf32> to vector<16x1xf32>
    %185 = vector.broadcast %184 : vector<16x1xf32> to vector<16x128xf32>
    %c80_98 = arith.constant 80 : index
    %c0_99 = arith.constant 0 : index
    %186 = vector.load %arg14[%c80_98, %c0_99] : memref<128x128xf32, #tpu.memory_space<vmem>>, vector<16x128xf32>
    tpu.vector_store %arg14[%c80_98, %c0_99], %185 {strides = array<i32>} : memref<128x128xf32, #tpu.memory_space<vmem>>, vector<16x128xf32>,
    %c0_100 = arith.constant 0 : index
    %c6 = arith.constant 6 : index
    %c0_101 = arith.constant 0 : index
    %187 = vector.load %arg8[%c0_100, %c6, %c0_101] : memref<1x8x128xf32, #tpu.memory_space<vmem>>, vector<1x1x128xf32>
    %188 = vector.shape_cast %187 : vector<1x1x128xf32> to vector<1x128xf32>
    %189 = vector.broadcast %188 : vector<1x128xf32> to vector<16x128xf32>
    %190 = arith.mulf %101, %189 : vector<16x128xf32>
    %191 = math.exp %190 : vector<16x128xf32>
    %c96 = arith.constant 96 : index
    %c0_102 = arith.constant 0 : index
    %192 = vector.load %arg12[%c96, %c0_102] : memref<128x128xf32, #tpu.memory_space<vmem>>, vector<16x128xf32>
    tpu.vector_store %arg12[%c96, %c0_102], %191 {strides = array<i32>} : memref<128x128xf32, #tpu.memory_space<vmem>>, vector<16x128xf32>,
    %193 = vector.extract_strided_slice %60 {offsets = [0, 10], sizes = [16, 1], strides = [1, 1]} : vector<16x128xf32> to vector<16x1xf32>
    %194 = vector.broadcast %193 : vector<16x1xf32> to vector<16x128xf32>
    %195 = arith.mulf %194, %102 : vector<16x128xf32>
    %c96_103 = arith.constant 96 : index
    %c0_104 = arith.constant 0 : index
    %196 = vector.load %arg13[%c96_103, %c0_104] : memref<128x128xf32, #tpu.memory_space<vmem>>, vector<16x128xf32>
    tpu.vector_store %arg13[%c96_103, %c0_104], %195 {strides = array<i32>} : memref<128x128xf32, #tpu.memory_space<vmem>>, vector<16x128xf32>,
    %197 = vector.extract_strided_slice %60 {offsets = [0, 18], sizes = [16, 1], strides = [1, 1]} : vector<16x128xf32> to vector<16x1xf32>
    %198 = vector.shape_cast %197 : vector<16x1xf32> to vector<16x1xf32>
    %199 = vector.broadcast %198 : vector<16x1xf32> to vector<16x128xf32>
    %c96_105 = arith.constant 96 : index
    %c0_106 = arith.constant 0 : index
    %200 = vector.load %arg14[%c96_105, %c0_106] : memref<128x128xf32, #tpu.memory_space<vmem>>, vector<16x128xf32>
    tpu.vector_store %arg14[%c96_105, %c0_106], %199 {strides = array<i32>} : memref<128x128xf32, #tpu.memory_space<vmem>>, vector<16x128xf32>,
    %c0_107 = arith.constant 0 : index
    %c7 = arith.constant 7 : index
    %c0_108 = arith.constant 0 : index
    %201 = vector.load %arg8[%c0_107, %c7, %c0_108] : memref<1x8x128xf32, #tpu.memory_space<vmem>>, vector<1x1x128xf32>
    %202 = vector.shape_cast %201 : vector<1x1x128xf32> to vector<1x128xf32>
    %203 = vector.broadcast %202 : vector<1x128xf32> to vector<16x128xf32>
    %204 = arith.mulf %101, %203 : vector<16x128xf32>
    %205 = math.exp %204 : vector<16x128xf32>
    %c112 = arith.constant 112 : index
    %c0_109 = arith.constant 0 : index
    %206 = vector.load %arg12[%c112, %c0_109] : memref<128x128xf32, #tpu.memory_space<vmem>>, vector<16x128xf32>
    tpu.vector_store %arg12[%c112, %c0_109], %205 {strides = array<i32>} : memref<128x128xf32, #tpu.memory_space<vmem>>, vector<16x128xf32>,
    %207 = vector.extract_strided_slice %60 {offsets = [0, 11], sizes = [16, 1], strides = [1, 1]} : vector<16x128xf32> to vector<16x1xf32>
    %208 = vector.broadcast %207 : vector<16x1xf32> to vector<16x128xf32>
    %209 = arith.mulf %208, %102 : vector<16x128xf32>
    %c112_110 = arith.constant 112 : index
    %c0_111 = arith.constant 0 : index
    %210 = vector.load %arg13[%c112_110, %c0_111] : memref<128x128xf32, #tpu.memory_space<vmem>>, vector<16x128xf32>
    tpu.vector_store %arg13[%c112_110, %c0_111], %209 {strides = array<i32>} : memref<128x128xf32, #tpu.memory_space<vmem>>, vector<16x128xf32>,
    %211 = vector.extract_strided_slice %60 {offsets = [0, 19], sizes = [16, 1], strides = [1, 1]} : vector<16x128xf32> to vector<16x1xf32>
    %212 = vector.shape_cast %211 : vector<16x1xf32> to vector<16x1xf32>
    %213 = vector.broadcast %212 : vector<16x1xf32> to vector<16x128xf32>
    %c112_112 = arith.constant 112 : index
    %c0_113 = arith.constant 0 : index
    %214 = vector.load %arg14[%c112_112, %c0_113] : memref<128x128xf32, #tpu.memory_space<vmem>>, vector<16x128xf32>
    tpu.vector_store %arg14[%c112_112, %c0_113], %213 {strides = array<i32>} : memref<128x128xf32, #tpu.memory_space<vmem>>, vector<16x128xf32>,
    %cst_114 = arith.constant 0.000000e+00 : f32
    %215 = vector.broadcast %cst_114 : f32 to vector<8x128xf32>
    %c0_i32_115 = arith.constant 0 : i32
    %c15_i32 = arith.constant 15 : i32
    %216 = arith.subi %c15_i32, %c0_i32_115 : i32
    %217 = arith.select %0, %216, %c0_i32_115 : i32
    %218 = arith.index_cast %217 : i32 to index
    %c0_116 = arith.constant 0 : index
    %219 = tpu.strided_load %arg12[%218, %c0_116] {strides = array<i32: 16, 1>} : memref<128x128xf32, #tpu.memory_space<vmem>>, vector<8x128xf32>
    %220 = arith.index_cast %217 : i32 to index
    %c0_117 = arith.constant 0 : index
    %221 = tpu.strided_load %arg13[%220, %c0_117] {strides = array<i32: 16, 1>} : memref<128x128xf32, #tpu.memory_space<vmem>>, vector<8x128xf32>
    %222 = arith.index_cast %217 : i32 to index
    %c0_118 = arith.constant 0 : index
    %223 = tpu.strided_load %arg14[%222, %c0_118] {strides = array<i32: 16, 1>} : memref<128x128xf32, #tpu.memory_space<vmem>>, vector<8x128xf32>
    %224 = arith.mulf %219, %215 : vector<8x128xf32>
    %225 = arith.addf %224, %221 : vector<8x128xf32>
    %226 = arith.mulf %223, %225 : vector<8x128xf32>
    %cst_119 = arith.constant dense<0.000000e+00> : vector<128xf32>
    %227 = vector.multi_reduction <add>, %226, %cst_119 [0] : vector<8x128xf32> to vector<128xf32>
    %228 = vector.shape_cast %227 : vector<128xf32> to vector<1x128xf32>
    %229 = arith.index_cast %217 : i32 to index
    %c0_120 = arith.constant 0 : index
    %230 = vector.load %arg15[%229, %c0_120] : memref<16x128xf32, #tpu.memory_space<vmem>>, vector<1x128xf32>
    tpu.vector_store %arg15[%229, %c0_120], %228 {strides = array<i32>} : memref<16x128xf32, #tpu.memory_space<vmem>>, vector<1x128xf32>,
    %c1_i32_121 = arith.constant 1 : i32
    %c15_i32_122 = arith.constant 15 : i32
    %231 = arith.subi %c15_i32_122, %c1_i32_121 : i32
    %232 = arith.select %0, %231, %c1_i32_121 : i32
    %233 = arith.index_cast %232 : i32 to index
    %c0_123 = arith.constant 0 : index
    %234 = tpu.strided_load %arg12[%233, %c0_123] {strides = array<i32: 16, 1>} : memref<128x128xf32, #tpu.memory_space<vmem>>, vector<8x128xf32>
    %235 = arith.index_cast %232 : i32 to index
    %c0_124 = arith.constant 0 : index
    %236 = tpu.strided_load %arg13[%235, %c0_124] {strides = array<i32: 16, 1>} : memref<128x128xf32, #tpu.memory_space<vmem>>, vector<8x128xf32>
    %237 = arith.index_cast %232 : i32 to index
    %c0_125 = arith.constant 0 : index
    %238 = tpu.strided_load %arg14[%237, %c0_125] {strides = array<i32: 16, 1>} : memref<128x128xf32, #tpu.memory_space<vmem>>, vector<8x128xf32>
    %239 = arith.mulf %234, %225 : vector<8x128xf32>
    %240 = arith.addf %239, %236 : vector<8x128xf32>
    %241 = arith.mulf %238, %240 : vector<8x128xf32>
    %cst_126 = arith.constant dense<0.000000e+00> : vector<128xf32>
    %242 = vector.multi_reduction <add>, %241, %cst_126 [0] : vector<8x128xf32> to vector<128xf32>
    %243 = vector.shape_cast %242 : vector<128xf32> to vector<1x128xf32>
    %244 = arith.index_cast %232 : i32 to index
    %c0_127 = arith.constant 0 : index
    %245 = vector.load %arg15[%244, %c0_127] : memref<16x128xf32, #tpu.memory_space<vmem>>, vector<1x128xf32>
    tpu.vector_store %arg15[%244, %c0_127], %243 {strides = array<i32>} : memref<16x128xf32, #tpu.memory_space<vmem>>, vector<1x128xf32>,
    %c2_i32_128 = arith.constant 2 : i32
    %c15_i32_129 = arith.constant 15 : i32
    %246 = arith.subi %c15_i32_129, %c2_i32_128 : i32
    %247 = arith.select %0, %246, %c2_i32_128 : i32
    %248 = arith.index_cast %247 : i32 to index
    %c0_130 = arith.constant 0 : index
    %249 = tpu.strided_load %arg12[%248, %c0_130] {strides = array<i32: 16, 1>} : memref<128x128xf32, #tpu.memory_space<vmem>>, vector<8x128xf32>
    %250 = arith.index_cast %247 : i32 to index
    %c0_131 = arith.constant 0 : index
    %251 = tpu.strided_load %arg13[%250, %c0_131] {strides = array<i32: 16, 1>} : memref<128x128xf32, #tpu.memory_space<vmem>>, vector<8x128xf32>
    %252 = arith.index_cast %247 : i32 to index
    %c0_132 = arith.constant 0 : index
    %253 = tpu.strided_load %arg14[%252, %c0_132] {strides = array<i32: 16, 1>} : memref<128x128xf32, #tpu.memory_space<vmem>>, vector<8x128xf32>
    %254 = arith.mulf %249, %240 : vector<8x128xf32>
    %255 = arith.addf %254, %251 : vector<8x128xf32>
    %256 = arith.mulf %253, %255 : vector<8x128xf32>
    %cst_133 = arith.constant dense<0.000000e+00> : vector<128xf32>
    %257 = vector.multi_reduction <add>, %256, %cst_133 [0] : vector<8x128xf32> to vector<128xf32>
    %258 = vector.shape_cast %257 : vector<128xf32> to vector<1x128xf32>
    %259 = arith.index_cast %247 : i32 to index
    %c0_134 = arith.constant 0 : index
    %260 = vector.load %arg15[%259, %c0_134] : memref<16x128xf32, #tpu.memory_space<vmem>>, vector<1x128xf32>
    tpu.vector_store %arg15[%259, %c0_134], %258 {strides = array<i32>} : memref<16x128xf32, #tpu.memory_space<vmem>>, vector<1x128xf32>,
    %c3_i32_135 = arith.constant 3 : i32
    %c15_i32_136 = arith.constant 15 : i32
    %261 = arith.subi %c15_i32_136, %c3_i32_135 : i32
    %262 = arith.select %0, %261, %c3_i32_135 : i32
    %263 = arith.index_cast %262 : i32 to index
    %c0_137 = arith.constant 0 : index
    %264 = tpu.strided_load %arg12[%263, %c0_137] {strides = array<i32: 16, 1>} : memref<128x128xf32, #tpu.memory_space<vmem>>, vector<8x128xf32>
    %265 = arith.index_cast %262 : i32 to index
    %c0_138 = arith.constant 0 : index
    %266 = tpu.strided_load %arg13[%265, %c0_138] {strides = array<i32: 16, 1>} : memref<128x128xf32, #tpu.memory_space<vmem>>, vector<8x128xf32>
    %267 = arith.index_cast %262 : i32 to index
    %c0_139 = arith.constant 0 : index
    %268 = tpu.strided_load %arg14[%267, %c0_139] {strides = array<i32: 16, 1>} : memref<128x128xf32, #tpu.memory_space<vmem>>, vector<8x128xf32>
    %269 = arith.mulf %264, %255 : vector<8x128xf32>
    %270 = arith.addf %269, %266 : vector<8x128xf32>
    %271 = arith.mulf %268, %270 : vector<8x128xf32>
    %cst_140 = arith.constant dense<0.000000e+00> : vector<128xf32>
    %272 = vector.multi_reduction <add>, %271, %cst_140 [0] : vector<8x128xf32> to vector<128xf32>
    %273 = vector.shape_cast %272 : vector<128xf32> to vector<1x128xf32>
    %274 = arith.index_cast %262 : i32 to index
    %c0_141 = arith.constant 0 : index
    %275 = vector.load %arg15[%274, %c0_141] : memref<16x128xf32, #tpu.memory_space<vmem>>, vector<1x128xf32>
    tpu.vector_store %arg15[%274, %c0_141], %273 {strides = array<i32>} : memref<16x128xf32, #tpu.memory_space<vmem>>, vector<1x128xf32>,
    %c4_i32 = arith.constant 4 : i32
    %c15_i32_142 = arith.constant 15 : i32
    %276 = arith.subi %c15_i32_142, %c4_i32 : i32
    %277 = arith.select %0, %276, %c4_i32 : i32
    %278 = arith.index_cast %277 : i32 to index
    %c0_143 = arith.constant 0 : index
    %279 = tpu.strided_load %arg12[%278, %c0_143] {strides = array<i32: 16, 1>} : memref<128x128xf32, #tpu.memory_space<vmem>>, vector<8x128xf32>
    %280 = arith.index_cast %277 : i32 to index
    %c0_144 = arith.constant 0 : index
    %281 = tpu.strided_load %arg13[%280, %c0_144] {strides = array<i32: 16, 1>} : memref<128x128xf32, #tpu.memory_space<vmem>>, vector<8x128xf32>
    %282 = arith.index_cast %277 : i32 to index
    %c0_145 = arith.constant 0 : index
    %283 = tpu.strided_load %arg14[%282, %c0_145] {strides = array<i32: 16, 1>} : memref<128x128xf32, #tpu.memory_space<vmem>>, vector<8x128xf32>
    %284 = arith.mulf %279, %270 : vector<8x128xf32>
    %285 = arith.addf %284, %281 : vector<8x128xf32>
    %286 = arith.mulf %283, %285 : vector<8x128xf32>
    %cst_146 = arith.constant dense<0.000000e+00> : vector<128xf32>
    %287 = vector.multi_reduction <add>, %286, %cst_146 [0] : vector<8x128xf32> to vector<128xf32>
    %288 = vector.shape_cast %287 : vector<128xf32> to vector<1x128xf32>
    %289 = arith.index_cast %277 : i32 to index
    %c0_147 = arith.constant 0 : index
    %290 = vector.load %arg15[%289, %c0_147] : memref<16x128xf32, #tpu.memory_space<vmem>>, vector<1x128xf32>
    tpu.vector_store %arg15[%289, %c0_147], %288 {strides = array<i32>} : memref<16x128xf32, #tpu.memory_space<vmem>>, vector<1x128xf32>,
    %c5_i32 = arith.constant 5 : i32
    %c15_i32_148 = arith.constant 15 : i32
    %291 = arith.subi %c15_i32_148, %c5_i32 : i32
    %292 = arith.select %0, %291, %c5_i32 : i32
    %293 = arith.index_cast %292 : i32 to index
    %c0_149 = arith.constant 0 : index
    %294 = tpu.strided_load %arg12[%293, %c0_149] {strides = array<i32: 16, 1>} : memref<128x128xf32, #tpu.memory_space<vmem>>, vector<8x128xf32>
    %295 = arith.index_cast %292 : i32 to index
    %c0_150 = arith.constant 0 : index
    %296 = tpu.strided_load %arg13[%295, %c0_150] {strides = array<i32: 16, 1>} : memref<128x128xf32, #tpu.memory_space<vmem>>, vector<8x128xf32>
    %297 = arith.index_cast %292 : i32 to index
    %c0_151 = arith.constant 0 : index
    %298 = tpu.strided_load %arg14[%297, %c0_151] {strides = array<i32: 16, 1>} : memref<128x128xf32, #tpu.memory_space<vmem>>, vector<8x128xf32>
    %299 = arith.mulf %294, %285 : vector<8x128xf32>
    %300 = arith.addf %299, %296 : vector<8x128xf32>
    %301 = arith.mulf %298, %300 : vector<8x128xf32>
    %cst_152 = arith.constant dense<0.000000e+00> : vector<128xf32>
    %302 = vector.multi_reduction <add>, %301, %cst_152 [0] : vector<8x128xf32> to vector<128xf32>
    %303 = vector.shape_cast %302 : vector<128xf32> to vector<1x128xf32>
    %304 = arith.index_cast %292 : i32 to index
    %c0_153 = arith.constant 0 : index
    %305 = vector.load %arg15[%304, %c0_153] : memref<16x128xf32, #tpu.memory_space<vmem>>, vector<1x128xf32>
    tpu.vector_store %arg15[%304, %c0_153], %303 {strides = array<i32>} : memref<16x128xf32, #tpu.memory_space<vmem>>, vector<1x128xf32>,
    %c6_i32 = arith.constant 6 : i32
    %c15_i32_154 = arith.constant 15 : i32
    %306 = arith.subi %c15_i32_154, %c6_i32 : i32
    %307 = arith.select %0, %306, %c6_i32 : i32
    %308 = arith.index_cast %307 : i32 to index
    %c0_155 = arith.constant 0 : index
    %309 = tpu.strided_load %arg12[%308, %c0_155] {strides = array<i32: 16, 1>} : memref<128x128xf32, #tpu.memory_space<vmem>>, vector<8x128xf32>
    %310 = arith.index_cast %307 : i32 to index
    %c0_156 = arith.constant 0 : index
    %311 = tpu.strided_load %arg13[%310, %c0_156] {strides = array<i32: 16, 1>} : memref<128x128xf32, #tpu.memory_space<vmem>>, vector<8x128xf32>
    %312 = arith.index_cast %307 : i32 to index
    %c0_157 = arith.constant 0 : index
    %313 = tpu.strided_load %arg14[%312, %c0_157] {strides = array<i32: 16, 1>} : memref<128x128xf32, #tpu.memory_space<vmem>>, vector<8x128xf32>
    %314 = arith.mulf %309, %300 : vector<8x128xf32>
    %315 = arith.addf %314, %311 : vector<8x128xf32>
    %316 = arith.mulf %313, %315 : vector<8x128xf32>
    %cst_158 = arith.constant dense<0.000000e+00> : vector<128xf32>
    %317 = vector.multi_reduction <add>, %316, %cst_158 [0] : vector<8x128xf32> to vector<128xf32>
    %318 = vector.shape_cast %317 : vector<128xf32> to vector<1x128xf32>
    %319 = arith.index_cast %307 : i32 to index
    %c0_159 = arith.constant 0 : index
    %320 = vector.load %arg15[%319, %c0_159] : memref<16x128xf32, #tpu.memory_space<vmem>>, vector<1x128xf32>
    tpu.vector_store %arg15[%319, %c0_159], %318 {strides = array<i32>} : memref<16x128xf32, #tpu.memory_space<vmem>>, vector<1x128xf32>,
    %c7_i32 = arith.constant 7 : i32
    %c15_i32_160 = arith.constant 15 : i32
    %321 = arith.subi %c15_i32_160, %c7_i32 : i32
    %322 = arith.select %0, %321, %c7_i32 : i32
    %323 = arith.index_cast %322 : i32 to index
    %c0_161 = arith.constant 0 : index
    %324 = tpu.strided_load %arg12[%323, %c0_161] {strides = array<i32: 16, 1>} : memref<128x128xf32, #tpu.memory_space<vmem>>, vector<8x128xf32>
    %325 = arith.index_cast %322 : i32 to index
    %c0_162 = arith.constant 0 : index
    %326 = tpu.strided_load %arg13[%325, %c0_162] {strides = array<i32: 16, 1>} : memref<128x128xf32, #tpu.memory_space<vmem>>, vector<8x128xf32>
    %327 = arith.index_cast %322 : i32 to index
    %c0_163 = arith.constant 0 : index
    %328 = tpu.strided_load %arg14[%327, %c0_163] {strides = array<i32: 16, 1>} : memref<128x128xf32, #tpu.memory_space<vmem>>, vector<8x128xf32>
    %329 = arith.mulf %324, %315 : vector<8x128xf32>
    %330 = arith.addf %329, %326 : vector<8x128xf32>
    %331 = arith.mulf %328, %330 : vector<8x128xf32>
    %cst_164 = arith.constant dense<0.000000e+00> : vector<128xf32>
    %332 = vector.multi_reduction <add>, %331, %cst_164 [0] : vector<8x128xf32> to vector<128xf32>
    %333 = vector.shape_cast %332 : vector<128xf32> to vector<1x128xf32>
    %334 = arith.index_cast %322 : i32 to index
    %c0_165 = arith.constant 0 : index
    %335 = vector.load %arg15[%334, %c0_165] : memref<16x128xf32, #tpu.memory_space<vmem>>, vector<1x128xf32>
    tpu.vector_store %arg15[%334, %c0_165], %333 {strides = array<i32>} : memref<16x128xf32, #tpu.memory_space<vmem>>, vector<1x128xf32>,
    %c8_i32_166 = arith.constant 8 : i32
    %c15_i32_167 = arith.constant 15 : i32
    %336 = arith.subi %c15_i32_167, %c8_i32_166 : i32
    %337 = arith.select %0, %336, %c8_i32_166 : i32
    %338 = arith.index_cast %337 : i32 to index
    %c0_168 = arith.constant 0 : index
    %339 = tpu.strided_load %arg12[%338, %c0_168] {strides = array<i32: 16, 1>} : memref<128x128xf32, #tpu.memory_space<vmem>>, vector<8x128xf32>
    %340 = arith.index_cast %337 : i32 to index
    %c0_169 = arith.constant 0 : index
    %341 = tpu.strided_load %arg13[%340, %c0_169] {strides = array<i32: 16, 1>} : memref<128x128xf32, #tpu.memory_space<vmem>>, vector<8x128xf32>
    %342 = arith.index_cast %337 : i32 to index
    %c0_170 = arith.constant 0 : index
    %343 = tpu.strided_load %arg14[%342, %c0_170] {strides = array<i32: 16, 1>} : memref<128x128xf32, #tpu.memory_space<vmem>>, vector<8x128xf32>
    %344 = arith.mulf %339, %330 : vector<8x128xf32>
    %345 = arith.addf %344, %341 : vector<8x128xf32>
    %346 = arith.mulf %343, %345 : vector<8x128xf32>
    %cst_171 = arith.constant dense<0.000000e+00> : vector<128xf32>
    %347 = vector.multi_reduction <add>, %346, %cst_171 [0] : vector<8x128xf32> to vector<128xf32>
    %348 = vector.shape_cast %347 : vector<128xf32> to vector<1x128xf32>
    %349 = arith.index_cast %337 : i32 to index
    %c0_172 = arith.constant 0 : index
    %350 = vector.load %arg15[%349, %c0_172] : memref<16x128xf32, #tpu.memory_space<vmem>>, vector<1x128xf32>
    tpu.vector_store %arg15[%349, %c0_172], %348 {strides = array<i32>} : memref<16x128xf32, #tpu.memory_space<vmem>>, vector<1x128xf32>,
    %c9_i32 = arith.constant 9 : i32
    %c15_i32_173 = arith.constant 15 : i32
    %351 = arith.subi %c15_i32_173, %c9_i32 : i32
    %352 = arith.select %0, %351, %c9_i32 : i32
    %353 = arith.index_cast %352 : i32 to index
    %c0_174 = arith.constant 0 : index
    %354 = tpu.strided_load %arg12[%353, %c0_174] {strides = array<i32: 16, 1>} : memref<128x128xf32, #tpu.memory_space<vmem>>, vector<8x128xf32>
    %355 = arith.index_cast %352 : i32 to index
    %c0_175 = arith.constant 0 : index
    %356 = tpu.strided_load %arg13[%355, %c0_175] {strides = array<i32: 16, 1>} : memref<128x128xf32, #tpu.memory_space<vmem>>, vector<8x128xf32>
    %357 = arith.index_cast %352 : i32 to index
    %c0_176 = arith.constant 0 : index
    %358 = tpu.strided_load %arg14[%357, %c0_176] {strides = array<i32: 16, 1>} : memref<128x128xf32, #tpu.memory_space<vmem>>, vector<8x128xf32>
    %359 = arith.mulf %354, %345 : vector<8x128xf32>
    %360 = arith.addf %359, %356 : vector<8x128xf32>
    %361 = arith.mulf %358, %360 : vector<8x128xf32>
    %cst_177 = arith.constant dense<0.000000e+00> : vector<128xf32>
    %362 = vector.multi_reduction <add>, %361, %cst_177 [0] : vector<8x128xf32> to vector<128xf32>
    %363 = vector.shape_cast %362 : vector<128xf32> to vector<1x128xf32>
    %364 = arith.index_cast %352 : i32 to index
    %c0_178 = arith.constant 0 : index
    %365 = vector.load %arg15[%364, %c0_178] : memref<16x128xf32, #tpu.memory_space<vmem>>, vector<1x128xf32>
    tpu.vector_store %arg15[%364, %c0_178], %363 {strides = array<i32>} : memref<16x128xf32, #tpu.memory_space<vmem>>, vector<1x128xf32>,
    %c10_i32 = arith.constant 10 : i32
    %c15_i32_179 = arith.constant 15 : i32
    %366 = arith.subi %c15_i32_179, %c10_i32 : i32
    %367 = arith.select %0, %366, %c10_i32 : i32
    %368 = arith.index_cast %367 : i32 to index
    %c0_180 = arith.constant 0 : index
    %369 = tpu.strided_load %arg12[%368, %c0_180] {strides = array<i32: 16, 1>} : memref<128x128xf32, #tpu.memory_space<vmem>>, vector<8x128xf32>
    %370 = arith.index_cast %367 : i32 to index
    %c0_181 = arith.constant 0 : index
    %371 = tpu.strided_load %arg13[%370, %c0_181] {strides = array<i32: 16, 1>} : memref<128x128xf32, #tpu.memory_space<vmem>>, vector<8x128xf32>
    %372 = arith.index_cast %367 : i32 to index
    %c0_182 = arith.constant 0 : index
    %373 = tpu.strided_load %arg14[%372, %c0_182] {strides = array<i32: 16, 1>} : memref<128x128xf32, #tpu.memory_space<vmem>>, vector<8x128xf32>
    %374 = arith.mulf %369, %360 : vector<8x128xf32>
    %375 = arith.addf %374, %371 : vector<8x128xf32>
    %376 = arith.mulf %373, %375 : vector<8x128xf32>
    %cst_183 = arith.constant dense<0.000000e+00> : vector<128xf32>
    %377 = vector.multi_reduction <add>, %376, %cst_183 [0] : vector<8x128xf32> to vector<128xf32>
    %378 = vector.shape_cast %377 : vector<128xf32> to vector<1x128xf32>
    %379 = arith.index_cast %367 : i32 to index
    %c0_184 = arith.constant 0 : index
    %380 = vector.load %arg15[%379, %c0_184] : memref<16x128xf32, #tpu.memory_space<vmem>>, vector<1x128xf32>
    tpu.vector_store %arg15[%379, %c0_184], %378 {strides = array<i32>} : memref<16x128xf32, #tpu.memory_space<vmem>>, vector<1x128xf32>,
    %c11_i32 = arith.constant 11 : i32
    %c15_i32_185 = arith.constant 15 : i32
    %381 = arith.subi %c15_i32_185, %c11_i32 : i32
    %382 = arith.select %0, %381, %c11_i32 : i32
    %383 = arith.index_cast %382 : i32 to index
    %c0_186 = arith.constant 0 : index
    %384 = tpu.strided_load %arg12[%383, %c0_186] {strides = array<i32: 16, 1>} : memref<128x128xf32, #tpu.memory_space<vmem>>, vector<8x128xf32>
    %385 = arith.index_cast %382 : i32 to index
    %c0_187 = arith.constant 0 : index
    %386 = tpu.strided_load %arg13[%385, %c0_187] {strides = array<i32: 16, 1>} : memref<128x128xf32, #tpu.memory_space<vmem>>, vector<8x128xf32>
    %387 = arith.index_cast %382 : i32 to index
    %c0_188 = arith.constant 0 : index
    %388 = tpu.strided_load %arg14[%387, %c0_188] {strides = array<i32: 16, 1>} : memref<128x128xf32, #tpu.memory_space<vmem>>, vector<8x128xf32>
    %389 = arith.mulf %384, %375 : vector<8x128xf32>
    %390 = arith.addf %389, %386 : vector<8x128xf32>
    %391 = arith.mulf %388, %390 : vector<8x128xf32>
    %cst_189 = arith.constant dense<0.000000e+00> : vector<128xf32>
    %392 = vector.multi_reduction <add>, %391, %cst_189 [0] : vector<8x128xf32> to vector<128xf32>
    %393 = vector.shape_cast %392 : vector<128xf32> to vector<1x128xf32>
    %394 = arith.index_cast %382 : i32 to index
    %c0_190 = arith.constant 0 : index
    %395 = vector.load %arg15[%394, %c0_190] : memref<16x128xf32, #tpu.memory_space<vmem>>, vector<1x128xf32>
    tpu.vector_store %arg15[%394, %c0_190], %393 {strides = array<i32>} : memref<16x128xf32, #tpu.memory_space<vmem>>, vector<1x128xf32>,
    %c12_i32 = arith.constant 12 : i32
    %c15_i32_191 = arith.constant 15 : i32
    %396 = arith.subi %c15_i32_191, %c12_i32 : i32
    %397 = arith.select %0, %396, %c12_i32 : i32
    %398 = arith.index_cast %397 : i32 to index
    %c0_192 = arith.constant 0 : index
    %399 = tpu.strided_load %arg12[%398, %c0_192] {strides = array<i32: 16, 1>} : memref<128x128xf32, #tpu.memory_space<vmem>>, vector<8x128xf32>
    %400 = arith.index_cast %397 : i32 to index
    %c0_193 = arith.constant 0 : index
    %401 = tpu.strided_load %arg13[%400, %c0_193] {strides = array<i32: 16, 1>} : memref<128x128xf32, #tpu.memory_space<vmem>>, vector<8x128xf32>
    %402 = arith.index_cast %397 : i32 to index
    %c0_194 = arith.constant 0 : index
    %403 = tpu.strided_load %arg14[%402, %c0_194] {strides = array<i32: 16, 1>} : memref<128x128xf32, #tpu.memory_space<vmem>>, vector<8x128xf32>
    %404 = arith.mulf %399, %390 : vector<8x128xf32>
    %405 = arith.addf %404, %401 : vector<8x128xf32>
    %406 = arith.mulf %403, %405 : vector<8x128xf32>
    %cst_195 = arith.constant dense<0.000000e+00> : vector<128xf32>
    %407 = vector.multi_reduction <add>, %406, %cst_195 [0] : vector<8x128xf32> to vector<128xf32>
    %408 = vector.shape_cast %407 : vector<128xf32> to vector<1x128xf32>
    %409 = arith.index_cast %397 : i32 to index
    %c0_196 = arith.constant 0 : index
    %410 = vector.load %arg15[%409, %c0_196] : memref<16x128xf32, #tpu.memory_space<vmem>>, vector<1x128xf32>
    tpu.vector_store %arg15[%409, %c0_196], %408 {strides = array<i32>} : memref<16x128xf32, #tpu.memory_space<vmem>>, vector<1x128xf32>,
    %c13_i32 = arith.constant 13 : i32
    %c15_i32_197 = arith.constant 15 : i32
    %411 = arith.subi %c15_i32_197, %c13_i32 : i32
    %412 = arith.select %0, %411, %c13_i32 : i32
    %413 = arith.index_cast %412 : i32 to index
    %c0_198 = arith.constant 0 : index
    %414 = tpu.strided_load %arg12[%413, %c0_198] {strides = array<i32: 16, 1>} : memref<128x128xf32, #tpu.memory_space<vmem>>, vector<8x128xf32>
    %415 = arith.index_cast %412 : i32 to index
    %c0_199 = arith.constant 0 : index
    %416 = tpu.strided_load %arg13[%415, %c0_199] {strides = array<i32: 16, 1>} : memref<128x128xf32, #tpu.memory_space<vmem>>, vector<8x128xf32>
    %417 = arith.index_cast %412 : i32 to index
    %c0_200 = arith.constant 0 : index
    %418 = tpu.strided_load %arg14[%417, %c0_200] {strides = array<i32: 16, 1>} : memref<128x128xf32, #tpu.memory_space<vmem>>, vector<8x128xf32>
    %419 = arith.mulf %414, %405 : vector<8x128xf32>
    %420 = arith.addf %419, %416 : vector<8x128xf32>
    %421 = arith.mulf %418, %420 : vector<8x128xf32>
    %cst_201 = arith.constant dense<0.000000e+00> : vector<128xf32>
    %422 = vector.multi_reduction <add>, %421, %cst_201 [0] : vector<8x128xf32> to vector<128xf32>
    %423 = vector.shape_cast %422 : vector<128xf32> to vector<1x128xf32>
    %424 = arith.index_cast %412 : i32 to index
    %c0_202 = arith.constant 0 : index
    %425 = vector.load %arg15[%424, %c0_202] : memref<16x128xf32, #tpu.memory_space<vmem>>, vector<1x128xf32>
    tpu.vector_store %arg15[%424, %c0_202], %423 {strides = array<i32>} : memref<16x128xf32, #tpu.memory_space<vmem>>, vector<1x128xf32>,
    %c14_i32 = arith.constant 14 : i32
    %c15_i32_203 = arith.constant 15 : i32
    %426 = arith.subi %c15_i32_203, %c14_i32 : i32
    %427 = arith.select %0, %426, %c14_i32 : i32
    %428 = arith.index_cast %427 : i32 to index
    %c0_204 = arith.constant 0 : index
    %429 = tpu.strided_load %arg12[%428, %c0_204] {strides = array<i32: 16, 1>} : memref<128x128xf32, #tpu.memory_space<vmem>>, vector<8x128xf32>
    %430 = arith.index_cast %427 : i32 to index
    %c0_205 = arith.constant 0 : index
    %431 = tpu.strided_load %arg13[%430, %c0_205] {strides = array<i32: 16, 1>} : memref<128x128xf32, #tpu.memory_space<vmem>>, vector<8x128xf32>
    %432 = arith.index_cast %427 : i32 to index
    %c0_206 = arith.constant 0 : index
    %433 = tpu.strided_load %arg14[%432, %c0_206] {strides = array<i32: 16, 1>} : memref<128x128xf32, #tpu.memory_space<vmem>>, vector<8x128xf32>
    %434 = arith.mulf %429, %420 : vector<8x128xf32>
    %435 = arith.addf %434, %431 : vector<8x128xf32>
    %436 = arith.mulf %433, %435 : vector<8x128xf32>
    %cst_207 = arith.constant dense<0.000000e+00> : vector<128xf32>
    %437 = vector.multi_reduction <add>, %436, %cst_207 [0] : vector<8x128xf32> to vector<128xf32>
    %438 = vector.shape_cast %437 : vector<128xf32> to vector<1x128xf32>
    %439 = arith.index_cast %427 : i32 to index
    %c0_208 = arith.constant 0 : index
    %440 = vector.load %arg15[%439, %c0_208] : memref<16x128xf32, #tpu.memory_space<vmem>>, vector<1x128xf32>
    tpu.vector_store %arg15[%439, %c0_208], %438 {strides = array<i32>} : memref<16x128xf32, #tpu.memory_space<vmem>>, vector<1x128xf32>,
    %c15_i32_209 = arith.constant 15 : i32
    %c15_i32_210 = arith.constant 15 : i32
    %441 = arith.subi %c15_i32_210, %c15_i32_209 : i32
    %442 = arith.select %0, %441, %c15_i32_209 : i32
    %443 = arith.index_cast %442 : i32 to index
    %c0_211 = arith.constant 0 : index
    %444 = tpu.strided_load %arg12[%443, %c0_211] {strides = array<i32: 16, 1>} : memref<128x128xf32, #tpu.memory_space<vmem>>, vector<8x128xf32>
    %445 = arith.index_cast %442 : i32 to index
    %c0_212 = arith.constant 0 : index
    %446 = tpu.strided_load %arg13[%445, %c0_212] {strides = array<i32: 16, 1>} : memref<128x128xf32, #tpu.memory_space<vmem>>, vector<8x128xf32>
    %447 = arith.index_cast %442 : i32 to index
    %c0_213 = arith.constant 0 : index
    %448 = tpu.strided_load %arg14[%447, %c0_213] {strides = array<i32: 16, 1>} : memref<128x128xf32, #tpu.memory_space<vmem>>, vector<8x128xf32>
    %449 = arith.mulf %444, %435 : vector<8x128xf32>
    %450 = arith.addf %449, %446 : vector<8x128xf32>
    %451 = arith.mulf %448, %450 : vector<8x128xf32>
    %cst_214 = arith.constant dense<0.000000e+00> : vector<128xf32>
    %452 = vector.multi_reduction <add>, %451, %cst_214 [0] : vector<8x128xf32> to vector<128xf32>
    %453 = vector.shape_cast %452 : vector<128xf32> to vector<1x128xf32>
    %454 = arith.index_cast %442 : i32 to index
    %c0_215 = arith.constant 0 : index
    %455 = vector.load %arg15[%454, %c0_215] : memref<16x128xf32, #tpu.memory_space<vmem>>, vector<1x128xf32>
    tpu.vector_store %arg15[%454, %c0_215], %453 {strides = array<i32>} : memref<16x128xf32, #tpu.memory_space<vmem>>, vector<1x128xf32>,
    %c16_i32 = arith.constant 16 : i32
    %c0_216 = arith.constant 0 : index
    %c0_217 = arith.constant 0 : index
    %456 = vector.load %arg15[%c0_216, %c0_217] : memref<16x128xf32, #tpu.memory_space<vmem>>, vector<16x128xf32>
    %c0_218 = arith.constant 0 : index
    %c0_219 = arith.constant 0 : index
    %c0_220 = arith.constant 0 : index
    %457 = vector.load %arg9[%c0_218, %c0_219, %c0_220] : memref<1x1x128xf32, #tpu.memory_space<vmem>>, vector<1x1x128xf32>
    %458 = vector.shape_cast %457 : vector<1x1x128xf32> to vector<1x128xf32>
    %459 = vector.broadcast %458 : vector<1x128xf32> to vector<16x128xf32>
    %460 = arith.mulf %55, %459 : vector<16x128xf32>
    %461 = arith.addf %456, %460 : vector<16x128xf32>
    %462 = arith.negf %4 : vector<16x128xf32>
    %463 = math.exp %462 : vector<16x128xf32>
    %cst_221 = arith.constant 1.000000e+00 : f32
    %464 = vector.broadcast %cst_221 : f32 to vector<16x128xf32>
    %465 = arith.addf %464, %463 : vector<16x128xf32>
    %466 = arith.divf %464, %465 : vector<16x128xf32>
    %467 = arith.mulf %4, %466 : vector<16x128xf32>
    %468 = arith.mulf %461, %467 : vector<16x128xf32>
    %c0_i32_222 = arith.constant 0 : i32
    %469 = arith.cmpi eq, %arg1, %c0_i32_222 : i32
    %470 = arith.extui %469 : i1 to i32
    %c0_i32_223 = arith.constant 0 : i32
    %471 = arith.cmpi ne, %470, %c0_i32_223 : i32
    scf.if %471 {
      %cst_230 = arith.constant 0.000000e+00 : f32
      %478 = vector.broadcast %cst_230 : f32 to vector<16x128xf32>
      %c0_231 = arith.constant 0 : index
      %c0_232 = arith.constant 0 : index
      %c0_233 = arith.constant 0 : index
      %479 = vector.load %arg10[%c0_231, %c0_232, %c0_233] : memref<1x16x128xf32, #tpu.memory_space<vmem>>, vector<1x16x128xf32>
      %480 = vector.shape_cast %479 : vector<1x16x128xf32> to vector<16x128xf32>
      %481 = vector.shape_cast %478 : vector<16x128xf32> to vector<1x16x128xf32>
      tpu.vector_store %arg10[%c0_231, %c0_232, %c0_233], %481 {strides = array<i32>} : memref<1x16x128xf32, #tpu.memory_space<vmem>>, vector<1x16x128xf32>,
    } else {
    }
    %c0_224 = arith.constant 0 : index
    %c0_225 = arith.constant 0 : index
    %c0_226 = arith.constant 0 : index
    %472 = vector.load %arg10[%c0_224, %c0_225, %c0_226] : memref<1x16x128xf32, #tpu.memory_space<vmem>>, vector<1x16x128xf32>
    %473 = vector.shape_cast %472 : vector<1x16x128xf32> to vector<16x128xf32>
    %474 = arith.addf %473, %468 : vector<16x128xf32>
    %c0_227 = arith.constant 0 : index
    %c0_228 = arith.constant 0 : index
    %c0_229 = arith.constant 0 : index
    %475 = vector.load %arg10[%c0_227, %c0_228, %c0_229] : memref<1x16x128xf32, #tpu.memory_space<vmem>>, vector<1x16x128xf32>
    %476 = vector.shape_cast %475 : vector<1x16x128xf32> to vector<16x128xf32>
    %477 = vector.shape_cast %474 : vector<16x128xf32> to vector<1x16x128xf32>
    tpu.vector_store %arg10[%c0_227, %c0_228, %c0_229], %477 {strides = array<i32>} : memref<1x16x128xf32, #tpu.memory_space<vmem>>, vector<1x16x128xf32>,
    return
  }
  func.func @transform_0(%arg0: i32, %arg1: i32) -> (i32, i32, i32) {
    %c0_i32 = arith.constant 0 : i32
    %c0_i32_0 = arith.constant 0 : i32
    %c0_i32_1 = arith.constant 0 : i32
    return %arg0, %c0_i32, %c0_i32_0 : i32, i32, i32
  }
  func.func @transform_1(%arg0: i32, %arg1: i32) -> (i32, i32, i32) {
    %c0_i32 = arith.constant 0 : i32
    %c0_i32_0 = arith.constant 0 : i32
    %c0_i32_1 = arith.constant 0 : i32
    return %arg1, %c0_i32, %c0_i32_0 : i32, i32, i32
  }
  func.func @transform_2(%arg0: i32, %arg1: i32) -> (i32, i32, i32) {
    %c0_i32 = arith.constant 0 : i32
    %c0_i32_0 = arith.constant 0 : i32
    %c0_i32_1 = arith.constant 0 : i32
    return %arg1, %c0_i32, %c0_i32_0 : i32, i32, i32
  }
  func.func @transform_3(%arg0: i32, %arg1: i32) -> (i32, i32, i32) {
    %c0_i32 = arith.constant 0 : i32
    %c0_i32_0 = arith.constant 0 : i32
    %c0_i32_1 = arith.constant 0 : i32
    return %arg1, %c0_i32, %c0_i32_0 : i32, i32, i32
  }
  func.func @transform_4(%arg0: i32, %arg1: i32) -> (i32, i32, i32) {
    %c0_i32 = arith.constant 0 : i32
    %c0_i32_0 = arith.constant 0 : i32
    %c0_i32_1 = arith.constant 0 : i32
    return %arg1, %c0_i32, %c0_i32_0 : i32, i32, i32
  }
  func.func @transform_5(%arg0: i32, %arg1: i32) -> (i32, i32, i32) {
    %c0_i32 = arith.constant 0 : i32
    %c0_i32_0 = arith.constant 0 : i32
    %c0_i32_1 = arith.constant 0 : i32
    return %arg1, %c0_i32, %c0_i32_0 : i32, i32, i32
  }
  func.func @transform_6(%arg0: i32, %arg1: i32) -> (i32, i32, i32) {
    %c0_i32 = arith.constant 0 : i32
    %c0_i32_0 = arith.constant 0 : i32
    %c0_i32_1 = arith.constant 0 : i32
    return %arg1, %c0_i32, %c0_i32_0 : i32, i32, i32
  }
  func.func @transform_7(%arg0: i32, %arg1: i32) -> (i32, i32, i32) {
    %c0_i32 = arith.constant 0 : i32
    %c0_i32_0 = arith.constant 0 : i32
    %c0_i32_1 = arith.constant 0 : i32
    return %arg1, %c0_i32, %c0_i32_0 : i32, i32, i32
  }
  func.func @transform_8(%arg0: i32, %arg1: i32) -> (i32, i32, i32) {
    %c0_i32 = arith.constant 0 : i32
    %c0_i32_0 = arith.constant 0 : i32
    %c0_i32_1 = arith.constant 0 : i32
    return %arg0, %c0_i32, %c0_i32_0 : i32, i32, i32
  }
}

</mosaic_0001>

<llo_original>
// kernel: _lambda_.5
$region0: #{_lambda_.5}
  #allocation0 [shape = 'u32[]', space=smem, size = 0x4, offset = 0x4, fixed_abs, tag = 'smem constant byte address 0x4 - core index']
  #allocation1 [shape = 'u32[144,128]{1,0:T(1,128)}', space=vmem, size = 0x12000, scoped, tag = 'internal scratch']
  #allocation2 [shape = 'f32[32,64]{1,0:T(8,128)}', space=vmem, size = 0x4000, scoped, tag = 'scratch operand']
  %s0 = inlined_call_operand.vmem [shape: f32[32,128], index: 0, kind: input, shape index: {}]
  %s1 = inlined_call_operand.vmem [shape: f32[128,64], index: 1, kind: input, shape index: {}]
  %s2 = inlined_call_operand.hbm [shape: f32[32,64], index: 2, kind: output, shape index: {}]
  %s3 = sld [smem:[#allocation0]]
  $region26: #{_lambda_.5} parent=0
    _
  %s5 = ssub.s32 1, %s3
  %s6 = scalar_select 0, %s5, %s3
  $region1: #{_lambda_.5} parent=0
    #allocation3 [shape = 'u8[16384]{0}', space=vmem, size = 0x4000, scoped, tag = 'output window, operand 0, single buffered']
    #allocation4 [shape = 's32[1]{0}', space=sflag, size = 0x4, scoped, tag = 'scoped memory for _lambda_.5']
    %7 = vsyncpa [#allocation4], 0
    // Predicated region
    $region2: #{_lambda_.5} parent=1 // pred_check
      _
    $region3: #{_lambda_.5} parent=1 // pred_check_branch
      %9 = sbr.rel (0) target = $region5
    $region4: #{_lambda_.5} parent=1 // pred_region
      _
    $region5: #{_lambda_.5} parent=1 // pred_fallthru
      _
    // Predicated region
    $region6: #{_lambda_.5} parent=1 // pred_check
      _
    $region7: #{_lambda_.5} parent=1 // pred_check_branch
      %11 = sbr.rel (0) target = $region9
    $region8: #{_lambda_.5} parent=1 // pred_region
      _
    $region9: #{_lambda_.5} parent=1 // pred_fallthru
      _
    %p13 = scmp.eq.s32.totalorder 0, 0
    // Predicated region
    $region10: #{_lambda_.5} parent=1 // pred_check
      %p14 = pneg %p13
    $region11: #{_lambda_.5} parent=1 // pred_check_branch
      %16 = sbr.rel (%p14) target = $region13
    $region12: #{_lambda_.5} parent=1 // pred_region
      %vm17 = vcmask 523264
      %18 = vst.msk [vmem:[#allocation2] sm:$0xff] %vm17, 0.0
      %19 = vst.msk [vmem:[#allocation2 + $0x8] sm:$0xff] %vm17, 0.0
      %20 = vst.msk [vmem:[#allocation2 + $0x10] sm:$0xff] %vm17, 0.0
      %21 = vst.msk [vmem:[#allocation2 + $0x18] sm:$0xff] %vm17, 0.0
    $region13: #{_lambda_.5} parent=1 // pred_fallthru
      _
    %v22 = vld [vmem:[#allocation2] sm:$0xff]
    %v23 = vld [vmem:[#allocation2 + $0x8] sm:$0xff]
    %v24 = vld [vmem:[#allocation2 + $0x10] sm:$0xff]
    %v25 = vld [vmem:[#allocation2 + $0x18] sm:$0xff]
    %v26 = vld [vmem:[%s0] sm:$0xff]
    %v27 = vld [vmem:[%s0 + $0x8] sm:$0xff]
    %v28 = vld [vmem:[%s0 + $0x10] sm:$0xff]
    %v29 = vld [vmem:[%s0 + $0x18] sm:$0xff]
    %v30 = vpack.c.bf16 %v27, %v26
    %v31 = vpack.c.bf16 %v29, %v28
    %v32 = vld [vmem:[%s1] sm:$0xff]
    %v33 = vld [vmem:[%s1 + $0x8] sm:$0xff]
    %v34 = vld [vmem:[%s1 + $0x10] sm:$0xff]
    %v35 = vld [vmem:[%s1 + $0x18] sm:$0xff]
    %v36 = vld [vmem:[%s1 + $0x20] sm:$0xff]
    %v37 = vld [vmem:[%s1 + $0x28] sm:$0xff]
    %v38 = vld [vmem:[%s1 + $0x30] sm:$0xff]
    %v39 = vld [vmem:[%s1 + $0x38] sm:$0xff]
    %v40 = vld [vmem:[%s1 + $0x40] sm:$0xff]
    %v41 = vld [vmem:[%s1 + $0x48] sm:$0xff]
    %v42 = vld [vmem:[%s1 + $0x50] sm:$0xff]
    %v43 = vld [vmem:[%s1 + $0x58] sm:$0xff]
    %v44 = vld [vmem:[%s1 + $0x60] sm:$0xff]
    %v45 = vld [vmem:[%s1 + $0x68] sm:$0xff]
    %v46 = vld [vmem:[%s1 + $0x70] sm:$0xff]
    %v47 = vld [vmem:[%s1 + $0x78] sm:$0xff]
    %v48 = vpack.c.bf16 %v33, %v32
    %v49 = vpack.c.bf16 %v35, %v34
    %v50 = vpack.c.bf16 %v37, %v36
    %v51 = vpack.c.bf16 %v39, %v38
    %v52 = vpack.c.bf16 %v41, %v40
    %v53 = vpack.c.bf16 %v43, %v42
    %v54 = vpack.c.bf16 %v45, %v44
    %v55 = vpack.c.bf16 %v47, %v46
    %56 = vmatprep.subr.bf16.mxu0 0
    %57 = vmatpush1.bf16.msra.mxu0 %v48
    %58 = vmatprep.subr.bf16.mxu0 0
    %59 = vmatpush1.bf16.msra.mxu0 %v49
    %60 = vmatprep.subr.bf16.mxu0 0
    %61 = vmatpush1.bf16.msra.mxu0 %v50
    %62 = vmatprep.subr.bf16.mxu0 0
    %63 = vmatpush1.bf16.msra.mxu0 %v51
    %64 = vmatprep.subr.bf16.mxu0 0
    %65 = vmatpush1.bf16.msra.mxu0 %v52
    %66 = vmatprep.subr.bf16.mxu0 0
    %67 = vmatpush1.bf16.msra.mxu0 %v53
    %68 = vmatprep.subr.bf16.mxu0 0
    %69 = vmatpush1.bf16.msra.mxu0 %v54
    %70 = vmatprep.subr.bf16.mxu0 0
    %71 = vmatpush1.bf16.msra.mxu0 %v55
    %72 = vmatprep.subr.bf16.mxu0 0
    %73 = vmatpush1.bf16.msra.mxu0 0
    %74 = vmatprep.subr.bf16.mxu0 0
    %75 = vmatpush1.bf16.msra.mxu0 0
    %76 = vmatprep.subr.bf16.mxu0 0
    %77 = vmatpush1.bf16.msra.mxu0 0
    %78 = vmatprep.subr.bf16.mxu0 0
    %79 = vmatpush1.bf16.msra.mxu0 0
    %80 = vmatprep.subr.bf16.mxu0 0
    %81 = vmatpush1.bf16.msra.mxu0 0
    %82 = vmatprep.subr.bf16.mxu0 0
    %83 = vmatpush1.bf16.msra.mxu0 0
    %84 = vmatprep.subr.bf16.mxu0 0
    %85 = vmatpush1.bf16.msra.mxu0 0
    %86 = vmatprep.subr.bf16.mxu0 0
    %87 = vmatpush1.bf16.msra.mxu0 0
    %88 = vmatprep.mubr.bf16.mxu0 0
    %89 = vmatmul.mubr.bf16.gmra.mrb[0].mxu0 %v30
    %v90 = vpop.f32.mrb[0].mxu0
    %v91 = vadd.f32 0.0, %v90
    %v92 = vpop.f32.mrb[0].mxu0
    %v93 = vpop.f32.mrb[0].mxu0
    %v94 = vadd.f32 0.0, %v93
    %v95 = vpop.f32.mrb[0].mxu0
    %96 = vmatprep.mubr.bf16.mxu0 0
    %97 = vmatmul.mubr.bf16.gmra.mrb[0].mxu0 %v31
    %v98 = vpop.f32.mrb[0].mxu0
    %v99 = vadd.f32 0.0, %v98
    %v100 = vpop.f32.mrb[0].mxu0
    %v101 = vpop.f32.mrb[0].mxu0
    %v102 = vadd.f32 0.0, %v101
    %v103 = vpop.f32.mrb[0].mxu0
    %104 = vdwg.mxu0
    %v105 = vadd.f32 %v22, %v91
    %v106 = vadd.f32 %v23, %v94
    %v107 = vadd.f32 %v24, %v99
    %v108 = vadd.f32 %v25, %v102
    %vm109 = vcmask 523264
    %110 = vst.msk [vmem:[#allocation2] sm:$0xff] %vm109, %v105
    %111 = vst.msk [vmem:[#allocation2 + $0x8] sm:$0xff] %vm109, %v106
    %112 = vst.msk [vmem:[#allocation2 + $0x10] sm:$0xff] %vm109, %v107
    %113 = vst.msk [vmem:[#allocation2 + $0x18] sm:$0xff] %vm109, %v108
    // Predicated region
    $region14: #{_lambda_.5} parent=1 // pred_check
      %p114 = pneg %p13
    $region15: #{_lambda_.5} parent=1 // pred_check_branch
      %116 = sbr.rel (%p114) target = $region17
    $region16: #{_lambda_.5} parent=1 // pred_region
      %v117 = vld [vmem:[#allocation2] sm:$0xff]
      %v118 = vld [vmem:[#allocation2 + $0x8] sm:$0xff]
      %v119 = vld [vmem:[#allocation2 + $0x10] sm:$0xff]
      %v120 = vld [vmem:[#allocation2 + $0x18] sm:$0xff]
      %121 = vst.msk [vmem:[#allocation3] sm:$0xff] %vm109, %v117
      %122 = vst.msk [vmem:[#allocation3 + $0x8] sm:$0xff] %vm109, %v118
      %123 = vst.msk [vmem:[#allocation3 + $0x10] sm:$0xff] %vm109, %v119
      %124 = vst.msk [vmem:[#allocation3 + $0x18] sm:$0xff] %vm109, %v120
    $region17: #{_lambda_.5} parent=1 // pred_fallthru
      _
    // Predicated region
    $region18: #{_lambda_.5} parent=1 // pred_check
      _
    $region19: #{_lambda_.5} parent=1 // pred_check_branch
      %126 = sbr.rel (0) target = $region21
    $region20: #{_lambda_.5} parent=1 // pred_region
      %s128 = ssub.s32 512, 512
      %129 = vsyncadd [#allocation4], %s128
      %s130 = sshll.u32 [#allocation3], 4
      %s131 = int_to_ptr.vmem [resolvable:$true] %s130
      %136 = dma.vmem_to_hbm [thread:$0]  %s131, 512, %s2, [#allocation4], 128, 128, 8
    $region21: #{_lambda_.5} parent=1 // pred_fallthru
      _
    // Predicated region
    $region22: #{_lambda_.5} parent=1 // pred_check
      _
    $region23: #{_lambda_.5} parent=1 // pred_check_branch
      %138 = sbr.rel (0) target = $region25
    $region24: #{_lambda_.5} parent=1 // pred_region
      %139 = dma.done [#allocation4], 512
    $region25: #{_lambda_.5} parent=1 // pred_fallthru
      _
    %140 = vsyncpa [#allocation4], 1

// kernel: _lambda_.3
$region0: #{_lambda_.3}
  #allocation0 [shape = 'u32[]', space=smem, size = 0x4, offset = 0x4, fixed_abs, tag = 'smem constant byte address 0x4 - core index']
  #allocation1 [shape = 'u32[144,128]{1,0:T(1,128)}', space=vmem, size = 0x12000, scoped, tag = 'internal scratch']
  #allocation2 [shape = 'f32[32,256]{1,0:T(8,128)}', space=vmem, size = 0x8000, scoped, tag = 'scratch operand']
  %s0 = inlined_call_operand.hbm [shape: f32[32,64], index: 0, kind: input, shape index: {}]
  %s1 = inlined_call_operand.hbm [shape: f32[64,256], index: 1, kind: input, shape index: {}]
  %s2 = inlined_call_operand.vmem [shape: f32[32,256], index: 2, kind: output, shape index: {}]
  %s3 = sld [smem:[#allocation0]]
  $region34: #{_lambda_.3} parent=0
    _
  %s5 = ssub.s32 1, %s3
  %s6 = scalar_select 0, %s5, %s3
  $region1: #{_lambda_.3} parent=0
    #allocation3 [shape = 'u8[16384]{0}', space=vmem, size = 0x4000, scoped, tag = 'input window, operand 0, single buffered']
    #allocation4 [shape = 's32[1]{0}', space=sflag, size = 0x4, scoped, tag = 'scoped memory for _lambda_.3']
    #allocation5 [shape = 'u8[65536]{0}', space=vmem, size = 0x10000, scoped, tag = 'input window, operand 1, single buffered']
    #allocation6 [shape = 's32[1]{0}', space=sflag, size = 0x4, scoped, tag = 'scoped memory for _lambda_.3']
    %7 = vsyncpa [#allocation4], 0
    %8 = vsyncpa [#allocation6], 0
    // Predicated region
    $region2: #{_lambda_.3} parent=1 // pred_check
      _
    $region3: #{_lambda_.3} parent=1 // pred_check_branch
      %10 = sbr.rel (0) target = $region5
    $region4: #{_lambda_.3} parent=1 // pred_region
      %s12 = ssub.s32 512, 512
      %13 = vsyncadd [#allocation4], %s12
      %s14 = sshll.u32 [#allocation3], 4
      %s15 = int_to_ptr.vmem [resolvable:$true] %s14
      %20 = dma.hbm_to_vmem [thread:$0]  %s0, 512, %s15, [#allocation4], 128, 128, 8
    $region5: #{_lambda_.3} parent=1 // pred_fallthru
      _
    // Predicated region
    $region6: #{_lambda_.3} parent=1 // pred_check
      _
    $region7: #{_lambda_.3} parent=1 // pred_check_branch
      %22 = sbr.rel (0) target = $region9
    $region8: #{_lambda_.3} parent=1 // pred_region
      %s24 = ssub.s32 2048, 2048
      %25 = vsyncadd [#allocation6], %s24
      %s26 = sshll.u32 [#allocation5], 4
      %s27 = int_to_ptr.vmem [resolvable:$true] %s26
      %32 = dma.hbm_to_vmem [thread:$0]  %s1, 2048, %s27, [#allocation6], 256, 256, 16
    $region9: #{_lambda_.3} parent=1 // pred_fallthru
      _
    // Predicated region
    $region10: #{_lambda_.3} parent=1 // pred_check
      _
    $region11: #{_lambda_.3} parent=1 // pred_check_branch
      %34 = sbr.rel (0) target = $region13
    $region12: #{_lambda_.3} parent=1 // pred_region
      %35 = dma.done [#allocation4], 512
    $region13: #{_lambda_.3} parent=1 // pred_fallthru
      _
    // Predicated region
    $region14: #{_lambda_.3} parent=1 // pred_check
      _
    $region15: #{_lambda_.3} parent=1 // pred_check_branch
      %37 = sbr.rel (0) target = $region17
    $region16: #{_lambda_.3} parent=1 // pred_region
      %38 = dma.done [#allocation6], 2048
    $region17: #{_lambda_.3} parent=1 // pred_fallthru
      _
    %p40 = scmp.eq.s32.totalorder 0, 0
    // Predicated region
    $region18: #{_lambda_.3} parent=1 // pred_check
      %p41 = pneg %p40
    $region19: #{_lambda_.3} parent=1 // pred_check_branch
      %43 = sbr.rel (%p41) target = $region21
    $region20: #{_lambda_.3} parent=1 // pred_region
      %44 = vst [vmem:[#allocation2] sm:$0xff] 0.0
      %45 = vst [vmem:[#allocation2 + $0x8] sm:$0xff] 0.0
      %46 = vst [vmem:[#allocation2 + $0x10] sm:$0xff] 0.0
      %47 = vst [vmem:[#allocation2 + $0x18] sm:$0xff] 0.0
      %48 = vst [vmem:[#allocation2 + $0x20] sm:$0xff] 0.0
      %49 = vst [vmem:[#allocation2 + $0x28] sm:$0xff] 0.0
      %50 = vst [vmem:[#allocation2 + $0x30] sm:$0xff] 0.0
      %51 = vst [vmem:[#allocation2 + $0x38] sm:$0xff] 0.0
    $region21: #{_lambda_.3} parent=1 // pred_fallthru
      _
    %v52 = vld [vmem:[#allocation2] sm:$0xff]
    %v53 = vld [vmem:[#allocation2 + $0x8] sm:$0xff]
    %v54 = vld [vmem:[#allocation2 + $0x10] sm:$0xff]
    %v55 = vld [vmem:[#allocation2 + $0x18] sm:$0xff]
    %v56 = vld [vmem:[#allocation2 + $0x20] sm:$0xff]
    %v57 = vld [vmem:[#allocation2 + $0x28] sm:$0xff]
    %v58 = vld [vmem:[#allocation2 + $0x30] sm:$0xff]
    %v59 = vld [vmem:[#allocation2 + $0x38] sm:$0xff]
    %v60 = vld [vmem:[#allocation3] sm:$0xff]
    %v61 = vld [vmem:[#allocation3 + $0x8] sm:$0xff]
    %v62 = vld [vmem:[#allocation3 + $0x10] sm:$0xff]
    %v63 = vld [vmem:[#allocation3 + $0x18] sm:$0xff]
    %v64 = vpack.c.bf16 %v61, %v60
    %v65 = vpack.c.bf16 %v63, %v62
    %v66 = vld [vmem:[#allocation5] sm:$0xff]
    %v67 = vld [vmem:[#allocation5 + $0x8] sm:$0xff]
    %v68 = vld [vmem:[#allocation5 + $0x10] sm:$0xff]
    %v69 = vld [vmem:[#allocation5 + $0x18] sm:$0xff]
    %v70 = vld [vmem:[#allocation5 + $0x20] sm:$0xff]
    %v71 = vld [vmem:[#allocation5 + $0x28] sm:$0xff]
    %v72 = vld [vmem:[#allocation5 + $0x30] sm:$0xff]
    %v73 = vld [vmem:[#allocation5 + $0x38] sm:$0xff]
    %v74 = vld [vmem:[#allocation5 + $0x40] sm:$0xff]
    %v75 = vld [vmem:[#allocation5 + $0x48] sm:$0xff]
    %v76 = vld [vmem:[#allocation5 + $0x50] sm:$0xff]
    %v77 = vld [vmem:[#allocation5 + $0x58] sm:$0xff]
    %v78 = vld [vmem:[#allocation5 + $0x60] sm:$0xff]
    %v79 = vld [vmem:[#allocation5 + $0x68] sm:$0xff]
    %v80 = vld [vmem:[#allocation5 + $0x70] sm:$0xff]
    %v81 = vld [vmem:[#allocation5 + $0x78] sm:$0xff]
    %v82 = vpack.c.bf16 %v68, %v66
    %v83 = vpack.c.bf16 %v69, %v67
    %v84 = vpack.c.bf16 %v72, %v70
    %v85 = vpack.c.bf16 %v73, %v71
    %v86 = vpack.c.bf16 %v76, %v74
    %v87 = vpack.c.bf16 %v77, %v75
    %v88 = vpack.c.bf16 %v80, %v78
    %v89 = vpack.c.bf16 %v81, %v79
    %vm90 = vcmask 523264
    %v92 = vsel %vm90, %v64, 0
    %v95 = vsel %vm90, %v65, 0
    %97 = vmatprep.subr.bf16.mxu0 %v83
    %98 = vmatpush1.bf16.msra.mxu0 %v82
    %99 = vmatprep.subr.bf16.mxu0 %v85
    %100 = vmatpush1.bf16.msra.mxu0 %v84
    %101 = vmatprep.subr.bf16.mxu0 %v87
    %102 = vmatpush1.bf16.msra.mxu0 %v86
    %103 = vmatprep.subr.bf16.mxu0 %v89
    %104 = vmatpush1.bf16.msra.mxu0 %v88
    %105 = vmatprep.subr.bf16.mxu0 0
    %106 = vmatpush1.bf16.msra.mxu0 0
    %107 = vmatprep.subr.bf16.mxu0 0
    %108 = vmatpush1.bf16.msra.mxu0 0
    %109 = vmatprep.subr.bf16.mxu0 0
    %110 = vmatpush1.bf16.msra.mxu0 0
    %111 = vmatprep.subr.bf16.mxu0 0
    %112 = vmatpush1.bf16.msra.mxu0 0
    %113 = vmatprep.subr.bf16.mxu0 0
    %114 = vmatpush1.bf16.msra.mxu0 0
    %115 = vmatprep.subr.bf16.mxu0 0
    %116 = vmatpush1.bf16.msra.mxu0 0
    %117 = vmatprep.subr.bf16.mxu0 0
    %118 = vmatpush1.bf16.msra.mxu0 0
    %119 = vmatprep.subr.bf16.mxu0 0
    %120 = vmatpush1.bf16.msra.mxu0 0
    %121 = vmatprep.subr.bf16.mxu0 0
    %122 = vmatpush1.bf16.msra.mxu0 0
    %123 = vmatprep.subr.bf16.mxu0 0
    %124 = vmatpush1.bf16.msra.mxu0 0
    %125 = vmatprep.subr.bf16.mxu0 0
    %126 = vmatpush1.bf16.msra.mxu0 0
    %127 = vmatprep.subr.bf16.mxu0 0
    %128 = vmatpush1.bf16.msra.mxu0 0
    %129 = vmatprep.mubr.bf16.mxu0 0
    %130 = vmatmul.mubr.bf16.gmra.mrb[0].mxu0 %v92
    %v131 = vpop.f32.mrb[0].mxu0
    %v132 = vadd.f32 0.0, %v131
    %v133 = vpop.f32.mrb[0].mxu0
    %v134 = vadd.f32 0.0, %v133
    %v135 = vpop.f32.mrb[0].mxu0
    %v136 = vadd.f32 0.0, %v135
    %v137 = vpop.f32.mrb[0].mxu0
    %v138 = vadd.f32 0.0, %v137
    %139 = vmatprep.mubr.bf16.mxu0 0
    %140 = vmatmul.mubr.bf16.gmra.mrb[0].mxu0 %v95
    %v141 = vpop.f32.mrb[0].mxu0
    %v142 = vadd.f32 0.0, %v141
    %v143 = vpop.f32.mrb[0].mxu0
    %v144 = vadd.f32 0.0, %v143
    %v145 = vpop.f32.mrb[0].mxu0
    %v146 = vadd.f32 0.0, %v145
    %v147 = vpop.f32.mrb[0].mxu0
    %v148 = vadd.f32 0.0, %v147
    %149 = vdwg.mxu0
    %v150 = vadd.f32 %v52, %v132
    %v151 = vadd.f32 %v53, %v134
    %v152 = vadd.f32 %v54, %v136
    %v153 = vadd.f32 %v55, %v138
    %v154 = vadd.f32 %v56, %v142
    %v155 = vadd.f32 %v57, %v144
    %v156 = vadd.f32 %v58, %v146
    %v157 = vadd.f32 %v59, %v148
    %158 = vst [vmem:[#allocation2] sm:$0xff] %v150
    %159 = vst [vmem:[#allocation2 + $0x8] sm:$0xff] %v151
    %160 = vst [vmem:[#allocation2 + $0x10] sm:$0xff] %v152
    %161 = vst [vmem:[#allocation2 + $0x18] sm:$0xff] %v153
    %162 = vst [vmem:[#allocation2 + $0x20] sm:$0xff] %v154
    %163 = vst [vmem:[#allocation2 + $0x28] sm:$0xff] %v155
    %164 = vst [vmem:[#allocation2 + $0x30] sm:$0xff] %v156
    %165 = vst [vmem:[#allocation2 + $0x38] sm:$0xff] %v157
    // Predicated region
    $region22: #{_lambda_.3} parent=1 // pred_check
      %p166 = pneg %p40
    $region23: #{_lambda_.3} parent=1 // pred_check_branch
      %168 = sbr.rel (%p166) target = $region25
    $region24: #{_lambda_.3} parent=1 // pred_region
      %v169 = vld [vmem:[#allocation2] sm:$0xff]
      %v170 = vld [vmem:[#allocation2 + $0x8] sm:$0xff]
      %v171 = vld [vmem:[#allocation2 + $0x10] sm:$0xff]
      %v172 = vld [vmem:[#allocation2 + $0x18] sm:$0xff]
      %v173 = vld [vmem:[#allocation2 + $0x20] sm:$0xff]
      %v174 = vld [vmem:[#allocation2 + $0x28] sm:$0xff]
      %v175 = vld [vmem:[#allocation2 + $0x30] sm:$0xff]
      %v176 = vld [vmem:[#allocation2 + $0x38] sm:$0xff]
      %177 = vst [vmem:[%s2] sm:$0xff] %v169
      %178 = vst [vmem:[%s2 + $0x8] sm:$0xff] %v170
      %179 = vst [vmem:[%s2 + $0x10] sm:$0xff] %v171
      %180 = vst [vmem:[%s2 + $0x18] sm:$0xff] %v172
      %181 = vst [vmem:[%s2 + $0x20] sm:$0xff] %v173
      %182 = vst [vmem:[%s2 + $0x28] sm:$0xff] %v174
      %183 = vst [vmem:[%s2 + $0x30] sm:$0xff] %v175
      %184 = vst [vmem:[%s2 + $0x38] sm:$0xff] %v176
    $region25: #{_lambda_.3} parent=1 // pred_fallthru
      _
    // Predicated region
    $region26: #{_lambda_.3} parent=1 // pred_check
      _
    $region27: #{_lambda_.3} parent=1 // pred_check_branch
      %186 = sbr.rel (0) target = $region29
    $region28: #{_lambda_.3} parent=1 // pred_region
      _
    $region29: #{_lambda_.3} parent=1 // pred_fallthru
      _
    // Predicated region
    $region30: #{_lambda_.3} parent=1 // pred_check
      _
    $region31: #{_lambda_.3} parent=1 // pred_check_branch
      %188 = sbr.rel (0) target = $region33
    $region32: #{_lambda_.3} parent=1 // pred_region
      _
    $region33: #{_lambda_.3} parent=1 // pred_fallthru
      _
    %189 = vsyncpa [#allocation4], 1
    %190 = vsyncpa [#allocation6], 1

// kernel: _lambda_.4
$region0: #{_lambda_.4}
  #allocation0 [shape = 'u32[]', space=smem, size = 0x4, offset = 0x4, fixed_abs, tag = 'smem constant byte address 0x4 - core index']
  #allocation1 [shape = 'u32[144,128]{1,0:T(1,128)}', space=vmem, size = 0x12000, scoped, tag = 'internal scratch']
  #allocation2 [shape = 'f32[32,128]{1,0:T(8,128)}', space=vmem, size = 0x4000, scoped, tag = 'scratch operand']
  #allocation3 [shape = 'f32[128,128]{1,0:T(8,128)}', space=vmem, size = 0x10000, scoped, tag = 'scratch operand']
  #allocation4 [shape = 'f32[128,128]{1,0:T(8,128)}', space=vmem, size = 0x10000, scoped, tag = 'scratch operand']
  #allocation5 [shape = 'f32[128,128]{1,0:T(8,128)}', space=vmem, size = 0x10000, scoped, tag = 'scratch operand']
  #allocation6 [shape = 'f32[16,128]{1,0:T(8,128)}', space=vmem, size = 0x2000, scoped, tag = 'scratch operand']
  %s0 = inlined_call_operand.vmem [shape: f32[2,16,256], index: 0, kind: input, shape index: {}]
  %s1 = inlined_call_operand.vmem [shape: f32[2,4,128], index: 1, kind: input, shape index: {}]
  %s2 = inlined_call_operand.hbm [shape: f32[2,1,128], index: 2, kind: input, shape index: {}]
  %s3 = inlined_call_operand.vmem [shape: f32[2,128,128], index: 3, kind: input, shape index: {}]
  %s4 = inlined_call_operand.hbm [shape: f32[2,4,128], index: 4, kind: input, shape index: {}]
  %s5 = inlined_call_operand.hbm [shape: f32[2,1,128], index: 5, kind: input, shape index: {}]
  %s6 = inlined_call_operand.hbm [shape: f32[2,8,128], index: 6, kind: input, shape index: {}]
  %s7 = inlined_call_operand.hbm [shape: f32[2,1,128], index: 7, kind: input, shape index: {}]
  %s8 = inlined_call_operand.vmem [shape: f32[2,16,128], index: 8, kind: output, shape index: {}]
  %s9 = sld [smem:[#allocation0]]
  $region89: #{_lambda_.4} parent=0
    _
  %s11 = ssub.s32 1, %s9
  %s12 = scalar_select 0, %s11, %s9
  $region1: #{_lambda_.4} parent=0
    #allocation7 [shape = 'u8[1024]{0}', space=vmem, size = 0x400, scoped, tag = 'input window, operand 2']
    #allocation8 [shape = 's32[2]{0}', space=sflag, size = 0x8, scoped, tag = 'scoped memory for _lambda_.4']
    #allocation9 [shape = 'u8[4096]{0}', space=vmem, size = 0x1000, scoped, tag = 'input window, operand 4']
    #allocation10 [shape = 's32[2]{0}', space=sflag, size = 0x8, scoped, tag = 'scoped memory for _lambda_.4']
    #allocation11 [shape = 'u8[1024]{0}', space=vmem, size = 0x400, scoped, tag = 'input window, operand 5']
    #allocation12 [shape = 'u8[8192]{0}', space=vmem, size = 0x2000, scoped, tag = 'input window, operand 6']
    #allocation13 [shape = 's32[2]{0}', space=sflag, size = 0x8, scoped, tag = 'scoped memory for _lambda_.4']
    #allocation14 [shape = 'u8[1024]{0}', space=vmem, size = 0x400, scoped, tag = 'input window, operand 7']
    %13 = vsyncpa [#allocation8], 0
    %s14 = scalar_lea.sflag [#allocation8], 1
    %15 = vsyncpa %s14, 0
    %16 = vsyncpa [#allocation10], 0
    %s17 = scalar_lea.sflag [#allocation10], 1
    %18 = vsyncpa %s17, 0
    %19 = vsyncpa [#allocation13], 0
    %s20 = scalar_lea.sflag [#allocation13], 1
    %21 = vsyncpa %s20, 0
    loop: start=0, step=1, limit=6
    $region2: #{_lambda_.4} parent=1 // loop_pre_header
      _
    $region3: #{_lambda_.4} parent=1 // loop_header
      %s23 = sphi 0, %s27
      %p24 = scmp.ge.s32.totalorder %s23, 6
      %s30 = sphi 0, %s42
      %s31 = sphi 0, %s38
      %s32 = sphi 0, %s30
      %s33 = sphi 0, %s31
      %s34 = sphi 0, %s32
      %s35 = sphi 0, %s33
      %s45 = sphi 0, %s47
      %s48 = sphi 0, %s45
      %s49 = sphi 0, %s48
      %s65 = sphi 0, %s49
      %s71 = sphi 0, %s73
      %s74 = sphi 0, %s71
      %s75 = sphi 0, %s74
      %s91 = sphi 0, %s75
      %s97 = sphi 0, %s99
      %s100 = sphi 0, %s97
      %s101 = sphi 0, %s100
      %s117 = sphi 0, %s101
      %s123 = sphi 0, %s125
      %s126 = sphi 0, %s123
      %s127 = sphi 0, %s126
      %s143 = sphi 0, %s127
      %s149 = sphi 0, %s151
      %s152 = sphi 0, %s149
      %s153 = sphi 0, %s152
      %s169 = sphi 0, %s153
      %s175 = sphi 0, %s177
      %s178 = sphi 0, %s175
      %s179 = sphi 0, %s178
      %s195 = sphi 0, %s179
      %s201 = sphi 0, %s203
      %s204 = sphi 0, %s201
      %s205 = sphi 0, %s204
      %s221 = sphi 0, %s205
      %s227 = sphi 0, %s229
      %s230 = sphi 0, %s227
      %s231 = sphi 0, %s230
      %s247 = sphi 0, %s231
      %s253 = sphi 0, %s255
      %s256 = sphi 0, %s253
      %s257 = sphi 0, %s256
      %s273 = sphi 0, %s257
    $region4: #{_lambda_.4} parent=1 // loop_header_branch
      %26 = sbr.rel (%p24) target = $region8
    $region5: #{_lambda_.4} parent=1 // loop_body
      %s28 = ssub.s32 %s23, 1
      %s29 = ssub.s32 %s23, 2
      %s36 = sadd.s32 1, %s31
      %p37 = scmp.ge.s32.totalorder %s36, 2
      %s38 = scalar_select %p37, 0, %s36
      %s39 = sadd.s32 1, %s30
      %s40 = scalar_select %p37, %s39, %s30
      %p41 = scmp.ge.s32.totalorder %s40, 2
      %s42 = scalar_select %p41, 0, %s40
      %s43 = ssub.s32 %s30, %s42
      %p44 = scmp.eq.s32.totalorder %s43, 0
      %s46 = sadd.s32 %s45, 1
      %s47 = scalar_select %p44, %s45, %s46
      %p50 = pneg %p44
      %p51 = scmp.eq.s32.totalorder %s23, 3
      %p52 = por %p50, %p51
      %p53 = scmp.ne.s32.totalorder %s45, %s48
      %p54 = scmp.eq.s32.totalorder %s23, 0
      %p55 = por %p53, %p54
      %p56 = scmp.ne.s32.totalorder %s45, %s48
      %p57 = scmp.eq.s32.totalorder %s28, 3
      %p58 = por %p56, %p57
      %p59 = scmp.ne.s32.totalorder %s48, %s49
      %p60 = scmp.eq.s32.totalorder %s28, 0
      %p61 = por %p59, %p60
      %p62 = scmp.ne.s32.totalorder %s48, %s49
      %p63 = scmp.eq.s32.totalorder %s29, 3
      %p64 = por %p62, %p63
      %p66 = scmp.ne.s32.totalorder %s49, %s65
      %p67 = scmp.eq.s32.totalorder %s29, 0
      %p68 = por %p66, %p67
      %s69 = ssub.s32 %s31, %s38
      %p70 = scmp.eq.s32.totalorder %s69, 0
      %s72 = sadd.s32 %s71, 1
      %s73 = scalar_select %p70, %s71, %s72
      %p76 = pneg %p70
      %p77 = scmp.eq.s32.totalorder %s23, 3
      %p78 = por %p76, %p77
      %p79 = scmp.ne.s32.totalorder %s71, %s74
      %p80 = scmp.eq.s32.totalorder %s23, 0
      %p81 = por %p79, %p80
      %p82 = scmp.ne.s32.totalorder %s71, %s74
      %p83 = scmp.eq.s32.totalorder %s28, 3
      %p84 = por %p82, %p83
      %p85 = scmp.ne.s32.totalorder %s74, %s75
      %p86 = scmp.eq.s32.totalorder %s28, 0
      %p87 = por %p85, %p86
      %p88 = scmp.ne.s32.totalorder %s74, %s75
      %p89 = scmp.eq.s32.totalorder %s29, 3
      %p90 = por %p88, %p89
      %p92 = scmp.ne.s32.totalorder %s75, %s91
      %p93 = scmp.eq.s32.totalorder %s29, 0
      %p94 = por %p92, %p93
      %s95 = ssub.s32 %s31, %s38
      %p96 = scmp.eq.s32.totalorder %s95, 0
      %s98 = sadd.s32 %s97, 1
      %s99 = scalar_select %p96, %s97, %s98
      %p102 = pneg %p96
      %p103 = scmp.eq.s32.totalorder %s23, 3
      %p104 = por %p102, %p103
      %p105 = scmp.ne.s32.totalorder %s97, %s100
      %p106 = scmp.eq.s32.totalorder %s23, 0
      %p107 = por %p105, %p106
      %p108 = scmp.ne.s32.totalorder %s97, %s100
      %p109 = scmp.eq.s32.totalorder %s28, 3
      %p110 = por %p108, %p109
      %p111 = scmp.ne.s32.totalorder %s100, %s101
      %p112 = scmp.eq.s32.totalorder %s28, 0
      %p113 = por %p111, %p112
      %p114 = scmp.ne.s32.totalorder %s100, %s101
      %p115 = scmp.eq.s32.totalorder %s29, 3
      %p116 = por %p114, %p115
      %p118 = scmp.ne.s32.totalorder %s101, %s117
      %p119 = scmp.eq.s32.totalorder %s29, 0
      %p120 = por %p118, %p119
      %s121 = ssub.s32 %s31, %s38
      %p122 = scmp.eq.s32.totalorder %s121, 0
      %s124 = sadd.s32 %s123, 1
      %s125 = scalar_select %p122, %s123, %s124
      %p128 = pneg %p122
      %p129 = scmp.eq.s32.totalorder %s23, 3
      %p130 = por %p128, %p129
      %p131 = scmp.ne.s32.totalorder %s123, %s126
      %p132 = scmp.eq.s32.totalorder %s23, 0
      %p133 = por %p131, %p132
      %p134 = scmp.ne.s32.totalorder %s123, %s126
      %p135 = scmp.eq.s32.totalorder %s28, 3
      %p136 = por %p134, %p135
      %p137 = scmp.ne.s32.totalorder %s126, %s127
      %p138 = scmp.eq.s32.totalorder %s28, 0
      %p139 = por %p137, %p138
      %p140 = scmp.ne.s32.totalorder %s126, %s127
      %p141 = scmp.eq.s32.totalorder %s29, 3
      %p142 = por %p140, %p141
      %p144 = scmp.ne.s32.totalorder %s127, %s143
      %p145 = scmp.eq.s32.totalorder %s29, 0
      %p146 = por %p144, %p145
      %s147 = ssub.s32 %s31, %s38
      %p148 = scmp.eq.s32.totalorder %s147, 0
      %s150 = sadd.s32 %s149, 1
      %s151 = scalar_select %p148, %s149, %s150
      %p154 = pneg %p148
      %p155 = scmp.eq.s32.totalorder %s23, 3
      %p156 = por %p154, %p155
      %p157 = scmp.ne.s32.totalorder %s149, %s152
      %p158 = scmp.eq.s32.totalorder %s23, 0
      %p159 = por %p157, %p158
      %p160 = scmp.ne.s32.totalorder %s149, %s152
      %p161 = scmp.eq.s32.totalorder %s28, 3
      %p162 = por %p160, %p161
      %p163 = scmp.ne.s32.totalorder %s152, %s153
      %p164 = scmp.eq.s32.totalorder %s28, 0
      %p165 = por %p163, %p164
      %p166 = scmp.ne.s32.totalorder %s152, %s153
      %p167 = scmp.eq.s32.totalorder %s29, 3
      %p168 = por %p166, %p167
      %p170 = scmp.ne.s32.totalorder %s153, %s169
      %p171 = scmp.eq.s32.totalorder %s29, 0
      %p172 = por %p170, %p171
      %s173 = ssub.s32 %s31, %s38
      %p174 = scmp.eq.s32.totalorder %s173, 0
      %s176 = sadd.s32 %s175, 1
      %s177 = scalar_select %p174, %s175, %s176
      %p180 = pneg %p174
      %p181 = scmp.eq.s32.totalorder %s23, 3
      %p182 = por %p180, %p181
      %p183 = scmp.ne.s32.totalorder %s175, %s178
      %p184 = scmp.eq.s32.totalorder %s23, 0
      %p185 = por %p183, %p184
      %p186 = scmp.ne.s32.totalorder %s175, %s178
      %p187 = scmp.eq.s32.totalorder %s28, 3
      %p188 = por %p186, %p187
      %p189 = scmp.ne.s32.totalorder %s178, %s179
      %p190 = scmp.eq.s32.totalorder %s28, 0
      %p191 = por %p189, %p190
      %p192 = scmp.ne.s32.totalorder %s178, %s179
      %p193 = scmp.eq.s32.totalorder %s29, 3
      %p194 = por %p192, %p193
      %p196 = scmp.ne.s32.totalorder %s179, %s195
      %p197 = scmp.eq.s32.totalorder %s29, 0
      %p198 = por %p196, %p197
      %s199 = ssub.s32 %s31, %s38
      %p200 = scmp.eq.s32.totalorder %s199, 0
      %s202 = sadd.s32 %s201, 1
      %s203 = scalar_select %p200, %s201, %s202
      %p206 = pneg %p200
      %p207 = scmp.eq.s32.totalorder %s23, 3
      %p208 = por %p206, %p207
      %p209 = scmp.ne.s32.totalorder %s201, %s204
      %p210 = scmp.eq.s32.totalorder %s23, 0
      %p211 = por %p209, %p210
      %p212 = scmp.ne.s32.totalorder %s201, %s204
      %p213 = scmp.eq.s32.totalorder %s28, 3
      %p214 = por %p212, %p213
      %p215 = scmp.ne.s32.totalorder %s204, %s205
      %p216 = scmp.eq.s32.totalorder %s28, 0
      %p217 = por %p215, %p216
      %p218 = scmp.ne.s32.totalorder %s204, %s205
      %p219 = scmp.eq.s32.totalorder %s29, 3
      %p220 = por %p218, %p219
      %p222 = scmp.ne.s32.totalorder %s205, %s221
      %p223 = scmp.eq.s32.totalorder %s29, 0
      %p224 = por %p222, %p223
      %s225 = ssub.s32 %s31, %s38
      %p226 = scmp.eq.s32.totalorder %s225, 0
      %s228 = sadd.s32 %s227, 1
      %s229 = scalar_select %p226, %s227, %s228
      %p232 = pneg %p226
      %p233 = scmp.eq.s32.totalorder %s23, 3
      %p234 = por %p232, %p233
      %p235 = scmp.ne.s32.totalorder %s227, %s230
      %p236 = scmp.eq.s32.totalorder %s23, 0
      %p237 = por %p235, %p236
      %p238 = scmp.ne.s32.totalorder %s227, %s230
      %p239 = scmp.eq.s32.totalorder %s28, 3
      %p240 = por %p238, %p239
      %p241 = scmp.ne.s32.totalorder %s230, %s231
      %p242 = scmp.eq.s32.totalorder %s28, 0
      %p243 = por %p241, %p242
      %p244 = scmp.ne.s32.totalorder %s230, %s231
      %p245 = scmp.eq.s32.totalorder %s29, 3
      %p246 = por %p244, %p245
      %p248 = scmp.ne.s32.totalorder %s231, %s247
      %p249 = scmp.eq.s32.totalorder %s29, 0
      %p250 = por %p248, %p249
      %s251 = ssub.s32 %s30, %s42
      %p252 = scmp.eq.s32.totalorder %s251, 0
      %s254 = sadd.s32 %s253, 1
      %s255 = scalar_select %p252, %s253, %s254
      %p258 = pneg %p252
      %p259 = scmp.eq.s32.totalorder %s23, 3
      %p260 = por %p258, %p259
      %p261 = scmp.ne.s32.totalorder %s253, %s256
      %p262 = scmp.eq.s32.totalorder %s23, 0
      %p263 = por %p261, %p262
      %p264 = scmp.ne.s32.totalorder %s253, %s256
      %p265 = scmp.eq.s32.totalorder %s28, 3
      %p266 = por %p264, %p265
      %p267 = scmp.ne.s32.totalorder %s256, %s257
      %p268 = scmp.eq.s32.totalorder %s28, 0
      %p269 = por %p267, %p268
      %p270 = scmp.ne.s32.totalorder %s256, %s257
      %p271 = scmp.eq.s32.totalorder %s29, 3
      %p272 = por %p270, %p271
      %p274 = scmp.ne.s32.totalorder %s257, %s273
      %p275 = scmp.eq.s32.totalorder %s29, 0
      %p276 = por %p274, %p275
      %p277 = scmp.le.s32.totalorder 1, %s23
      %p278 = scmp.lt.s32.totalorder %s23, 5
      %p279 = pnand %p277, %p278
      %p280 = pneg %p279
      // Predicated region
      $region9: #{_lambda_.4} parent=5 // pred_check
        _
      $region10: #{_lambda_.4} parent=5 // pred_check_branch
        %282 = sbr.rel (%p279) target = $region12
      $region11: #{_lambda_.4} parent=5 // pred_region
        %s283 = ssub.s32 %s23, 1
      $region12: #{_lambda_.4} parent=5 // pred_fallthru
        _
      %p284 = scmp.lt.s32.totalorder %s23, 4
      // Predicated region
      $region13: #{_lambda_.4} parent=5 // pred_check
        %p285 = pneg %p284
      $region14: #{_lambda_.4} parent=5 // pred_check_branch
        %287 = sbr.rel (%p285) target = $region16
      $region15: #{_lambda_.4} parent=5 // pred_region
        // Predicated region
        $region17: #{_lambda_.4} parent=15 // pred_check
          %p288 = pneg %p55
        $region18: #{_lambda_.4} parent=15 // pred_check_branch
          %290 = sbr.rel (%p288) target = $region20
        $region19: #{_lambda_.4} parent=15 // pred_region
          %p291 = scmp.lt.s32.totalorder %s30, 1
          %s292 = scalar_select %p291, %s30, 1
          %s293 = smul.addr %s292, 4
          %s294 = smul.addr %s293, 8
          %s295 = scalar_lea.vmem %s0, %s294
        $region20: #{_lambda_.4} parent=15 // pred_fallthru
          _
        // Predicated region
        $region21: #{_lambda_.4} parent=15 // pred_check
          %p296 = pneg %p81
        $region22: #{_lambda_.4} parent=15 // pred_check_branch
          %298 = sbr.rel (%p296) target = $region24
        $region23: #{_lambda_.4} parent=15 // pred_region
          %p299 = scmp.lt.s32.totalorder %s31, 1
          %s300 = scalar_select %p299, %s31, 1
          %s301 = smul.addr %s300, 4
          %s302 = scalar_lea.vmem %s1, %s301
        $region24: #{_lambda_.4} parent=15 // pred_fallthru
          _
        // Predicated region
        $region25: #{_lambda_.4} parent=15 // pred_check
          %p303 = pneg %p107
        $region26: #{_lambda_.4} parent=15 // pred_check_branch
          %305 = sbr.rel (%p303) target = $region28
        $region27: #{_lambda_.4} parent=15 // pred_region
          %s306 = sand.u32 %s97, 1
          %s307 = scalar_lea.sflag [#allocation8], %s306
          %s308 = sand.u32 %s97, 1
          %s309 = scalar_lea.vmem [#allocation7], %s308
          %s311 = ssub.s32 16, 16
          %312 = vsyncadd %s307, %s311
          %s313 = smul.addr %s31, 16
          %s314 = scalar_lea.hbm %s2, %s313
          %s316 = sshll.u32 %s309, 4
          %s317 = int_to_ptr.vmem [resolvable:$true] %s316
          %319 = dma.hbm_to_vmem [thread:$0]  %s314, 16, %s317, %s307
        $region28: #{_lambda_.4} parent=15 // pred_fallthru
          _
        // Predicated region
        $region29: #{_lambda_.4} parent=15 // pred_check
          %p320 = pneg %p133
        $region30: #{_lambda_.4} parent=15 // pred_check_branch
          %322 = sbr.rel (%p320) target = $region32
        $region31: #{_lambda_.4} parent=15 // pred_region
          %p323 = scmp.lt.s32.totalorder %s31, 1
          %s324 = scalar_select %p323, %s31, 1
          %s325 = smul.addr %s324, 16
          %s326 = smul.addr %s325, 8
          %s327 = scalar_lea.vmem %s3, %s326
        $region32: #{_lambda_.4} parent=15 // pred_fallthru
          _
        // Predicated region
        $region33: #{_lambda_.4} parent=15 // pred_check
          %p328 = pneg %p159
        $region34: #{_lambda_.4} parent=15 // pred_check_branch
          %330 = sbr.rel (%p328) target = $region36
        $region35: #{_lambda_.4} parent=15 // pred_region
          %s331 = sand.u32 %s23, 1
          %s332 = scalar_lea.sflag [#allocation10], %s331
          %s333 = sand.u32 %s149, 1
          %s334 = smul.addr %s333, 4
          %s335 = scalar_lea.vmem [#allocation9], %s334
          %s337 = ssub.s32 64, 64
          %338 = vsyncadd %s332, %s337
          %s339 = smul.addr %s31, 64
          %s340 = scalar_lea.hbm %s4, %s339
          %s342 = sshll.u32 %s335, 4
          %s343 = int_to_ptr.vmem [resolvable:$true] %s342
          %345 = dma.hbm_to_vmem [thread:$0]  %s340, 64, %s343, %s332
        $region36: #{_lambda_.4} parent=15 // pred_fallthru
          _
        // Predicated region
        $region37: #{_lambda_.4} parent=15 // pred_check
          %p346 = pneg %p185
        $region38: #{_lambda_.4} parent=15 // pred_check_branch
          %348 = sbr.rel (%p346) target = $region40
        $region39: #{_lambda_.4} parent=15 // pred_region
          %s349 = sand.u32 %s23, 1
          %s350 = scalar_lea.sflag [#allocation10], %s349
          %s351 = sand.u32 %s175, 1
          %s352 = scalar_lea.vmem [#allocation11], %s351
          %s354 = ssub.s32 16, 16
          %355 = vsyncadd %s350, %s354
          %s356 = smul.addr %s31, 16
          %s357 = scalar_lea.hbm %s5, %s356
          %s359 = sshll.u32 %s352, 4
          %s360 = int_to_ptr.vmem [resolvable:$true] %s359
          %362 = dma.hbm_to_vmem [thread:$0]  %s357, 16, %s360, %s350
        $region40: #{_lambda_.4} parent=15 // pred_fallthru
          _
        // Predicated region
        $region41: #{_lambda_.4} parent=15 // pred_check
          %p363 = pneg %p211
        $region42: #{_lambda_.4} parent=15 // pred_check_branch
          %365 = sbr.rel (%p363) target = $region44
        $region43: #{_lambda_.4} parent=15 // pred_region
          %s366 = sand.u32 %s23, 1
          %s367 = scalar_lea.sflag [#allocation13], %s366
          %s368 = sand.u32 %s201, 1
          %s369 = smul.addr %s368, 8
          %s370 = scalar_lea.vmem [#allocation12], %s369
          %s372 = ssub.s32 128, 128
          %373 = vsyncadd %s367, %s372
          %s374 = smul.addr %s31, 128
          %s375 = scalar_lea.hbm %s6, %s374
          %s377 = sshll.u32 %s370, 4
          %s378 = int_to_ptr.vmem [resolvable:$true] %s377
          %380 = dma.hbm_to_vmem [thread:$0]  %s375, 128, %s378, %s367
        $region44: #{_lambda_.4} parent=15 // pred_fallthru
          _
        // Predicated region
        $region45: #{_lambda_.4} parent=15 // pred_check
          %p381 = pneg %p237
        $region46: #{_lambda_.4} parent=15 // pred_check_branch
          %383 = sbr.rel (%p381) target = $region48
        $region47: #{_lambda_.4} parent=15 // pred_region
          %s384 = sand.u32 %s23, 1
          %s385 = scalar_lea.sflag [#allocation13], %s384
          %s386 = sand.u32 %s227, 1
          %s387 = scalar_lea.vmem [#allocation14], %s386
          %s389 = ssub.s32 16, 16
          %390 = vsyncadd %s385, %s389
          %s391 = smul.addr %s31, 16
          %s392 = scalar_lea.hbm %s7, %s391
          %s394 = sshll.u32 %s387, 4
          %s395 = int_to_ptr.vmem [resolvable:$true] %s394
          %397 = dma.hbm_to_vmem [thread:$0]  %s392, 16, %s395, %s385
        $region48: #{_lambda_.4} parent=15 // pred_fallthru
          _
      $region16: #{_lambda_.4} parent=5 // pred_fallthru
        _
      %p398 = scmp.le.s32.totalorder 1, %s23
      %p399 = scmp.lt.s32.totalorder %s23, 5
      %p400 = pnand %p398, %p399
      %p401 = pneg %p400
      // Predicated region
      $region49: #{_lambda_.4} parent=5 // pred_check
        _
      $region50: #{_lambda_.4} parent=5 // pred_check_branch
        %403 = sbr.rel (%p400) target = $region52
      $region51: #{_lambda_.4} parent=5 // pred_region
        %s404 = ssub.s32 %s23, 1
        %s405 = sand.u32 %s100, 1
        %s406 = scalar_lea.sflag [#allocation8], %s405
        %s407 = sand.u32 %s100, 1
        %s408 = scalar_lea.vmem [#allocation7], %s407
        // Predicated region
        $region53: #{_lambda_.4} parent=51 // pred_check
          %p409 = pneg %p113
        $region54: #{_lambda_.4} parent=51 // pred_check_branch
          %411 = sbr.rel (%p409) target = $region56
        $region55: #{_lambda_.4} parent=51 // pred_region
          %412 = dma.done %s406, 16
        $region56: #{_lambda_.4} parent=51 // pred_fallthru
          _
        %s413 = sand.u32 %s28, 1
        %s414 = scalar_lea.sflag [#allocation10], %s413
        %s415 = sand.u32 %s152, 1
        %s416 = smul.addr %s415, 4
        %s417 = scalar_lea.vmem [#allocation9], %s416
        // Predicated region
        $region57: #{_lambda_.4} parent=51 // pred_check
          %p418 = pneg %p165
        $region58: #{_lambda_.4} parent=51 // pred_check_branch
          %420 = sbr.rel (%p418) target = $region60
        $region59: #{_lambda_.4} parent=51 // pred_region
          %421 = dma.done %s414, 64
        $region60: #{_lambda_.4} parent=51 // pred_fallthru
          _
        %s422 = sand.u32 %s28, 1
        %s423 = scalar_lea.sflag [#allocation10], %s422
        %s424 = sand.u32 %s178, 1
        %s425 = scalar_lea.vmem [#allocation11], %s424
        // Predicated region
        $region61: #{_lambda_.4} parent=51 // pred_check
          %p426 = pneg %p191
        $region62: #{_lambda_.4} parent=51 // pred_check_branch
          %428 = sbr.rel (%p426) target = $region64
        $region63: #{_lambda_.4} parent=51 // pred_region
          %429 = dma.done %s423, 16
        $region64: #{_lambda_.4} parent=51 // pred_fallthru
          _
        %s430 = sand.u32 %s28, 1
        %s431 = scalar_lea.sflag [#allocation13], %s430
        %s432 = sand.u32 %s204, 1
        %s433 = smul.addr %s432, 8
        %s434 = scalar_lea.vmem [#allocation12], %s433
        // Predicated region
        $region65: #{_lambda_.4} parent=51 // pred_check
          %p435 = pneg %p217
        $region66: #{_lambda_.4} parent=51 // pred_check_branch
          %437 = sbr.rel (%p435) target = $region68
        $region67: #{_lambda_.4} parent=51 // pred_region
          %438 = dma.done %s431, 128
        $region68: #{_lambda_.4} parent=51 // pred_fallthru
          _
        %s439 = sand.u32 %s28, 1
        %s440 = scalar_lea.sflag [#allocation13], %s439
        %s441 = sand.u32 %s230, 1
        %s442 = scalar_lea.vmem [#allocation14], %s441
        // Predicated region
        $region69: #{_lambda_.4} parent=51 // pred_check
          %p443 = pneg %p243
        $region70: #{_lambda_.4} parent=51 // pred_check_branch
          %445 = sbr.rel (%p443) target = $region72
        $region71: #{_lambda_.4} parent=51 // pred_region
          %446 = dma.done %s440, 16
        $region72: #{_lambda_.4} parent=51 // pred_fallthru
          _
        %p447 = scmp.lt.s32.totalorder %s32, 1
        %s448 = scalar_select %p447, %s32, 1
        %s449 = smul.addr %s448, 4
        %s450 = smul.addr %s449, 8
        %s451 = scalar_lea.vmem %s0, %s450
        %p452 = pneg %p61
        %p453 = pneg %p58
        %p454 = scmp.lt.s32.totalorder %s33, 1
        %s455 = scalar_select %p454, %s33, 1
        %s456 = smul.addr %s455, 4
        %s457 = scalar_lea.vmem %s1, %s456
        %p458 = pneg %p87
        %p459 = pneg %p84
        %s460 = sand.u32 %s100, 1
        %s461 = scalar_lea.sflag [#allocation8], %s460
        %s462 = sand.u32 %s100, 1
        %s463 = scalar_lea.vmem [#allocation7], %s462
        %p464 = pneg %p113
        %p465 = pneg %p110
        %p466 = scmp.lt.s32.totalorder %s33, 1
        %s467 = scalar_select %p466, %s33, 1
        %s468 = smul.addr %s467, 16
        %s469 = smul.addr %s468, 8
        %s470 = scalar_lea.vmem %s3, %s469
        %p471 = pneg %p139
        %p472 = pneg %p136
        %s473 = sand.u32 %s28, 1
        %s474 = scalar_lea.sflag [#allocation10], %s473
        %s475 = sand.u32 %s152, 1
        %s476 = smul.addr %s475, 4
        %s477 = scalar_lea.vmem [#allocation9], %s476
        %p478 = pneg %p165
        %p479 = pneg %p162
        %s480 = sand.u32 %s28, 1
        %s481 = scalar_lea.sflag [#allocation10], %s480
        %s482 = sand.u32 %s178, 1
        %s483 = scalar_lea.vmem [#allocation11], %s482
        %p484 = pneg %p191
        %p485 = pneg %p188
        %s486 = sand.u32 %s28, 1
        %s487 = scalar_lea.sflag [#allocation13], %s486
        %s488 = sand.u32 %s204, 1
        %s489 = smul.addr %s488, 8
        %s490 = scalar_lea.vmem [#allocation12], %s489
        %p491 = pneg %p217
        %p492 = pneg %p214
        %s493 = sand.u32 %s28, 1
        %s494 = scalar_lea.sflag [#allocation13], %s493
        %s495 = sand.u32 %s230, 1
        %s496 = scalar_lea.vmem [#allocation14], %s495
        %p497 = pneg %p243
        %p498 = pneg %p240
        %p499 = pneg %p269
        %p500 = pneg %p266
        %p501 = scmp.lt.s32.totalorder %s32, 1
        %s502 = scalar_select %p501, %s32, 1
        %s503 = smul.addr %s502, 2
        %s504 = smul.addr %s503, 8
        %s505 = scalar_lea.vmem %s8, %s504
        %p506 = scmp.lt.s32.totalorder %s32, 1
        %s507 = scalar_select %p506, %s32, 1
        %s508 = smul.addr %s507, 4
        %s509 = smul.addr %s508, 8
        %s510 = scalar_lea.vmem %s0, %s509
        %p511 = scmp.lt.s32.totalorder %s33, 1
        %s512 = scalar_select %p511, %s33, 1
        %s513 = smul.addr %s512, 4
        %s514 = scalar_lea.vmem %s1, %s513
        %p515 = scmp.lt.s32.totalorder %s33, 1
        %s516 = scalar_select %p515, %s33, 1
        %s517 = smul.addr %s516, 16
        %s518 = smul.addr %s517, 8
        %s519 = scalar_lea.vmem %s3, %s518
        %p520 = scmp.lt.s32.totalorder %s32, 1
        %s521 = scalar_select %p520, %s32, 1
        %s522 = smul.addr %s521, 2
        %s523 = smul.addr %s522, 8
        %s524 = scalar_lea.vmem %s8, %s523
        %p526 = scmp.eq.s32.totalorder %s33, 1
        %v527 = vld [vmem:[%s510] sm:$0xff]
        %v528 = vld [vmem:[%s510 + $0x10] sm:$0xff]
        %v529 = vld [vmem:[%s510 + $0x8] sm:$0xff]
        %v530 = vld [vmem:[%s510 + $0x18] sm:$0xff]
        %531 = vst [vmem:[#allocation2] sm:$0xff] 0.0
        %532 = vst [vmem:[#allocation2 + $0x18] sm:$0xff] 0.0
        %533 = vst [vmem:[#allocation2 + $0x8] sm:$0xff] %v527
        %534 = vst [vmem:[#allocation2 + $0x10] sm:$0xff] %v528
        %v535 = vld [vmem:[%s408] sm:$0x1]
        %v537 = vlaneseq
        %v538 = vshrl.u32 %v537, 7
        %v539 = vsub.s32 0, %v538
        %v540 = vrot.slane %v535, %v539
        %s542 = scalar_select %p526, 3, 4294967293
        %s543 = sadd.s32 %s542, 8
        %v544 = vld [vmem:[%s514] sm:$0x1]
        %s545 = scalar_lea.vmem [#allocation2], %s543
        %v546 = vld [vmem:[%s545] sm:$0xff]
        %v547 = vld [vmem:[%s545 + $0x8] sm:$0xff]
        %v548 = vlaneseq
        %v549 = vshrl.u32 %v548, 7
        %v550 = vsub.s32 0, %v549
        %v551 = vrot.slane %v544, %v550
        %v552 = vmul.f32 %v551, %v546
        %v553 = vmul.f32 %v551, %v547
        %v554 = vadd.f32 %v540, %v552
        %v555 = vadd.f32 %v540, %v553
        %s556 = scalar_select %p526, 2, 4294967294
        %s557 = sadd.s32 %s556, 8
        %v558 = vld [vmem:[%s514 + $0x1] sm:$0x1]
        %s559 = scalar_lea.vmem [#allocation2], %s557
        %v560 = vld [vmem:[%s559] sm:$0xff]
        %v561 = vld [vmem:[%s559 + $0x8] sm:$0xff]
        %v562 = vlaneseq
        %v563 = vshrl.u32 %v562, 7
        %v564 = vsub.s32 0, %v563
        %v565 = vrot.slane %v558, %v564
        %v566 = vmul.f32 %v565, %v560
        %v567 = vmul.f32 %v565, %v561
        %v568 = vadd.f32 %v554, %v566
        %v569 = vadd.f32 %v555, %v567
        %s570 = scalar_select %p526, 1, 4294967295
        %s571 = sadd.s32 %s570, 8
        %v572 = vld [vmem:[%s514 + $0x2] sm:$0x1]
        %s573 = scalar_lea.vmem [#allocation2], %s571
        %v574 = vld [vmem:[%s573] sm:$0xff]
        %v575 = vld [vmem:[%s573 + $0x8] sm:$0xff]
        %v576 = vlaneseq
        %v577 = vshrl.u32 %v576, 7
        %v578 = vsub.s32 0, %v577
        %v579 = vrot.slane %v572, %v578
        %v580 = vmul.f32 %v579, %v574
        %v581 = vmul.f32 %v579, %v575
        %v582 = vadd.f32 %v568, %v580
        %v583 = vadd.f32 %v569, %v581
        %v584 = vld [vmem:[%s514 + $0x3] sm:$0x1]
        %v585 = vld [vmem:[#allocation2 + $0x8] sm:$0xff]
        %v586 = vld [vmem:[#allocation2 + $0x10] sm:$0xff]
        %v587 = vlaneseq
        %v588 = vshrl.u32 %v587, 7
        %v589 = vsub.s32 0, %v588
        %v590 = vrot.slane %v584, %v589
        %v591 = vmul.f32 %v590, %v585
        %v592 = vmul.f32 %v590, %v586
        %v593 = vadd.f32 %v582, %v591
        %v594 = vadd.f32 %v583, %v592
        %v595 = vxor.u32 %v593, 2147483648
        %v596 = vxor.u32 %v594, 2147483648
        %v597 = vmul.f32 %v595, 1.442695
        %v598 = vpow.pop %v597
        %v599 = vmul.f32 %v596, 1.442695
        %v600 = vpow.pop %v599
        %v601 = vadd.f32 %v598, 1.0
        %v602 = vadd.f32 %v600, 1.0
        %v603 = vrcp.pop %v601
        %v604 = vmul.f32 1.0, %v603
        %v605 = vrcp.pop %v602
        %v606 = vmul.f32 1.0, %v605
        %v607 = vmul.f32 %v593, %v604
        %v608 = vmul.f32 %v594, %v606
        %v609 = vpack.c.bf16 %v608, %v607
        %v610 = vld [vmem:[%s519] sm:$0xff]
        %v611 = vld [vmem:[%s519 + $0x8] sm:$0xff]
        %v612 = vld [vmem:[%s519 + $0x10] sm:$0xff]
        %v613 = vld [vmem:[%s519 + $0x18] sm:$0xff]
        %v614 = vld [vmem:[%s519 + $0x20] sm:$0xff]
        %v615 = vld [vmem:[%s519 + $0x28] sm:$0xff]
        %v616 = vld [vmem:[%s519 + $0x30] sm:$0xff]
        %v617 = vld [vmem:[%s519 + $0x38] sm:$0xff]
        %v618 = vld [vmem:[%s519 + $0x40] sm:$0xff]
        %v619 = vld [vmem:[%s519 + $0x48] sm:$0xff]
        %v620 = vld [vmem:[%s519 + $0x50] sm:$0xff]
        %v621 = vld [vmem:[%s519 + $0x58] sm:$0xff]
        %v622 = vld [vmem:[%s519 + $0x60] sm:$0xff]
        %v623 = vld [vmem:[%s519 + $0x68] sm:$0xff]
        %v624 = vld [vmem:[%s519 + $0x70] sm:$0xff]
        %v625 = vld [vmem:[%s519 + $0x78] sm:$0xff]
        %v626 = vpack.c.bf16 %v611, %v610
        %v627 = vpack.c.bf16 %v613, %v612
        %v628 = vpack.c.bf16 %v615, %v614
        %v629 = vpack.c.bf16 %v617, %v616
        %v630 = vpack.c.bf16 %v619, %v618
        %v631 = vpack.c.bf16 %v621, %v620
        %v632 = vpack.c.bf16 %v623, %v622
        %v633 = vpack.c.bf16 %v625, %v624
        %634 = vmatprep.subr.bf16.mxu0 0
        %635 = vmatpush1.bf16.msra.mxu0 %v626
        %636 = vmatprep.subr.bf16.mxu0 0
        %637 = vmatpush1.bf16.msra.mxu0 %v627
        %638 = vmatprep.subr.bf16.mxu0 0
        %639 = vmatpush1.bf16.msra.mxu0 %v628
        %640 = vmatprep.subr.bf16.mxu0 0
        %641 = vmatpush1.bf16.msra.mxu0 %v629
        %642 = vmatprep.subr.bf16.mxu0 0
        %643 = vmatpush1.bf16.msra.mxu0 %v630
        %644 = vmatprep.subr.bf16.mxu0 0
        %645 = vmatpush1.bf16.msra.mxu0 %v631
        %646 = vmatprep.subr.bf16.mxu0 0
        %647 = vmatpush1.bf16.msra.mxu0 %v632
        %648 = vmatprep.subr.bf16.mxu0 0
        %649 = vmatpush1.bf16.msra.mxu0 %v633
        %650 = vmatprep.subr.bf16.mxu0 0
        %651 = vmatpush1.bf16.msra.mxu0 0
        %652 = vmatprep.subr.bf16.mxu0 0
        %653 = vmatpush1.bf16.msra.mxu0 0
        %654 = vmatprep.subr.bf16.mxu0 0
        %655 = vmatpush1.bf16.msra.mxu0 0
        %656 = vmatprep.subr.bf16.mxu0 0
        %657 = vmatpush1.bf16.msra.mxu0 0
        %658 = vmatprep.subr.bf16.mxu0 0
        %659 = vmatpush1.bf16.msra.mxu0 0
        %660 = vmatprep.subr.bf16.mxu0 0
        %661 = vmatpush1.bf16.msra.mxu0 0
        %662 = vmatprep.subr.bf16.mxu0 0
        %663 = vmatpush1.bf16.msra.mxu0 0
        %664 = vmatprep.subr.bf16.mxu0 0
        %665 = vmatpush1.bf16.msra.mxu0 0
        %666 = vmatprep.mubr.bf16.mxu0 0
        %667 = vmatmul.mubr.bf16.gmra.mrb[0].mxu0 %v609
        %v668 = vpop.f32.mrb[0].mxu0
        %v669 = vadd.f32 0.0, %v668
        %v670 = vpop.f32.mrb[0].mxu0
        %v671 = vpop.f32.mrb[0].mxu0
        %v672 = vadd.f32 0.0, %v671
        %v673 = vpop.f32.mrb[0].mxu0
        %674 = vdwg.mxu0
        %v675 = vld [vmem:[%s425] sm:$0x1]
        %v677 = vlaneseq
        %v678 = vshrl.u32 %v677, 7
        %v679 = vsub.s32 0, %v678
        %v680 = vrot.slane %v675, %v679
        %v682 = vld [vmem:[%s417] sm:$0x1]
        %684 = vset.pattern.permute.xlu0 0
        %685 = vperm.xlu0 %684, %v669
        %v686 = vpop.permute.xlu0 %685
        %689 = vset.pattern.permute.xlu0 0
        %690 = vperm.xlu0 %689, %v672
        %v691 = vpop.permute.xlu0 %690
        %v693 = vlaneseq
        %v694 = vshrl.u32 %v693, 7
        %v695 = vsub.s32 0, %v694
        %v696 = vrot.slane %v682, %v695
        %v697 = vmul.f32 %v686, %v696
        %v698 = vmul.f32 %v691, %v696
        %v699 = vadd.f32 %v680, %v697
        %v700 = vadd.f32 %v680, %v698
        %v701 = vld [vmem:[%s417 + $0x1] sm:$0x1]
        %702 = vset.pattern.permute.xlu0 1
        %703 = vperm.xlu0 %702, %v669
        %v704 = vpop.permute.xlu0 %703
        %706 = vset.pattern.permute.xlu0 1
        %707 = vperm.xlu0 %706, %v672
        %v708 = vpop.permute.xlu0 %707
        %v710 = vlaneseq
        %v711 = vshrl.u32 %v710, 7
        %v712 = vsub.s32 0, %v711
        %v713 = vrot.slane %v701, %v712
        %v714 = vmul.f32 %v704, %v713
        %v715 = vmul.f32 %v708, %v713
        %v716 = vadd.f32 %v699, %v714
        %v717 = vadd.f32 %v700, %v715
        %v718 = vld [vmem:[%s417 + $0x2] sm:$0x1]
        %719 = vset.pattern.permute.xlu0 2
        %720 = vperm.xlu0 %719, %v669
        %v721 = vpop.permute.xlu0 %720
        %723 = vset.pattern.permute.xlu0 2
        %724 = vperm.xlu0 %723, %v672
        %v725 = vpop.permute.xlu0 %724
        %v727 = vlaneseq
        %v728 = vshrl.u32 %v727, 7
        %v729 = vsub.s32 0, %v728
        %v730 = vrot.slane %v718, %v729
        %v731 = vmul.f32 %v721, %v730
        %v732 = vmul.f32 %v725, %v730
        %v733 = vadd.f32 %v716, %v731
        %v734 = vadd.f32 %v717, %v732
        %v735 = vld [vmem:[%s417 + $0x3] sm:$0x1]
        %736 = vset.pattern.permute.xlu0 3
        %737 = vperm.xlu0 %736, %v669
        %v738 = vpop.permute.xlu0 %737
        %740 = vset.pattern.permute.xlu0 3
        %741 = vperm.xlu0 %740, %v672
        %v742 = vpop.permute.xlu0 %741
        %v744 = vlaneseq
        %v745 = vshrl.u32 %v744, 7
        %v746 = vsub.s32 0, %v745
        %v747 = vrot.slane %v735, %v746
        %v748 = vmul.f32 %v738, %v747
        %v749 = vmul.f32 %v742, %v747
        %v750 = vadd.f32 %v733, %v748
        %v751 = vadd.f32 %v734, %v749
        %vm752 = vcmp.gt.f32.partialorder %v750, 20.0
        %vm753 = vcmp.gt.f32.partialorder %v751, 20.0
        %v754 = vmin.f32 %v750, 20.0
        %v755 = vmin.f32 %v751, 20.0
        %v756 = vmul.f32 %v754, 1.442695
        %v757 = vpow.pop %v756
        %v758 = vmul.f32 %v755, 1.442695
        %v759 = vpow.pop %v758
        %v760 = vadd.f32 %v757, 1.0
        %v761 = vadd.f32 %v759, 1.0
        %v762 = vlog2.pop %v760
        %v763 = vmul.f32 %v762, 0.6931472
        %v764 = vlog2.pop %v761
        %v765 = vmul.f32 %v764, 0.6931472
        %v766 = vsel %vm752, %v750, %v763
        %v767 = vsel %vm753, %v751, %v765
        %v768 = vmul.f32 %v766, %v607
        %v769 = vmul.f32 %v767, %v608
        %v770 = vld [vmem:[%s434] sm:$0x1]
        %v771 = vlaneseq
        %v772 = vshrl.u32 %v771, 7
        %v773 = vsub.s32 0, %v772
        %v774 = vrot.slane %v770, %v773
        %v775 = vmul.f32 %v766, %v774
        %v776 = vmul.f32 %v767, %v774
        %v777 = vmul.f32 %v775, 1.442695
        %v778 = vpow.pop %v777
        %v779 = vmul.f32 %v776, 1.442695
        %v780 = vpow.pop %v779
        %781 = vst [vmem:[#allocation3] sm:$0xff] %v778
        %782 = vst [vmem:[#allocation3 + $0x8] sm:$0xff] %v780
        %783 = vset.pattern.permute.xlu0 4
        %784 = vperm.xlu0 %783, %v669
        %v785 = vpop.permute.xlu0 %784
        %787 = vset.pattern.permute.xlu0 4
        %788 = vperm.xlu0 %787, %v672
        %v789 = vpop.permute.xlu0 %788
        %v791 = vmul.f32 %v785, %v768
        %v792 = vmul.f32 %v789, %v769
        %793 = vst [vmem:[#allocation4] sm:$0xff] %v791
        %794 = vst [vmem:[#allocation4 + $0x8] sm:$0xff] %v792
        %795 = vset.pattern.permute.xlu0 12
        %796 = vperm.xlu0 %795, %v669
        %v797 = vpop.permute.xlu0 %796
        %799 = vset.pattern.permute.xlu0 12
        %800 = vperm.xlu0 %799, %v672
        %v801 = vpop.permute.xlu0 %800
        %803 = vst [vmem:[#allocation5] sm:$0xff] %v797
        %804 = vst [vmem:[#allocation5 + $0x8] sm:$0xff] %v801
        %v805 = vld [vmem:[%s434 + $0x1] sm:$0x1]
        %v806 = vlaneseq
        %v807 = vshrl.u32 %v806, 7
        %v808 = vsub.s32 0, %v807
        %v809 = vrot.slane %v805, %v808
        %v810 = vmul.f32 %v766, %v809
        %v811 = vmul.f32 %v767, %v809
        %v812 = vmul.f32 %v810, 1.442695
        %v813 = vpow.pop %v812
        %v814 = vmul.f32 %v811, 1.442695
        %v815 = vpow.pop %v814
        %816 = vst [vmem:[#allocation3 + $0x10] sm:$0xff] %v813
        %817 = vst [vmem:[#allocation3 + $0x18] sm:$0xff] %v815
        %818 = vset.pattern.permute.xlu0 5
        %819 = vperm.xlu0 %818, %v669
        %v820 = vpop.permute.xlu0 %819
        %822 = vset.pattern.permute.xlu0 5
        %823 = vperm.xlu0 %822, %v672
        %v824 = vpop.permute.xlu0 %823
        %v826 = vmul.f32 %v820, %v768
        %v827 = vmul.f32 %v824, %v769
        %828 = vst [vmem:[#allocation4 + $0x10] sm:$0xff] %v826
        %829 = vst [vmem:[#allocation4 + $0x18] sm:$0xff] %v827
        %830 = vset.pattern.permute.xlu0 13
        %831 = vperm.xlu0 %830, %v669
        %v832 = vpop.permute.xlu0 %831
        %834 = vset.pattern.permute.xlu0 13
        %835 = vperm.xlu0 %834, %v672
        %v836 = vpop.permute.xlu0 %835
        %838 = vst [vmem:[#allocation5 + $0x10] sm:$0xff] %v832
        %839 = vst [vmem:[#allocation5 + $0x18] sm:$0xff] %v836
        %v840 = vld [vmem:[%s434 + $0x2] sm:$0x1]
        %v841 = vlaneseq
        %v842 = vshrl.u32 %v841, 7
        %v843 = vsub.s32 0, %v842
        %v844 = vrot.slane %v840, %v843
        %v845 = vmul.f32 %v766, %v844
        %v846 = vmul.f32 %v767, %v844
        %v847 = vmul.f32 %v845, 1.442695
        %v848 = vpow.pop %v847
        %v849 = vmul.f32 %v846, 1.442695
        %v850 = vpow.pop %v849
        %851 = vst [vmem:[#allocation3 + $0x20] sm:$0xff] %v848
        %852 = vst [vmem:[#allocation3 + $0x28] sm:$0xff] %v850
        %853 = vset.pattern.permute.xlu0 6
        %854 = vperm.xlu0 %853, %v669
        %v855 = vpop.permute.xlu0 %854
        %857 = vset.pattern.permute.xlu0 6
        %858 = vperm.xlu0 %857, %v672
        %v859 = vpop.permute.xlu0 %858
        %v861 = vmul.f32 %v855, %v768
        %v862 = vmul.f32 %v859, %v769
        %863 = vst [vmem:[#allocation4 + $0x20] sm:$0xff] %v861
        %864 = vst [vmem:[#allocation4 + $0x28] sm:$0xff] %v862
        %865 = vset.pattern.permute.xlu0 14
        %866 = vperm.xlu0 %865, %v669
        %v867 = vpop.permute.xlu0 %866
        %869 = vset.pattern.permute.xlu0 14
        %870 = vperm.xlu0 %869, %v672
        %v871 = vpop.permute.xlu0 %870
        %873 = vst [vmem:[#allocation5 + $0x20] sm:$0xff] %v867
        %874 = vst [vmem:[#allocation5 + $0x28] sm:$0xff] %v871
        %v875 = vld [vmem:[%s434 + $0x3] sm:$0x1]
        %v876 = vlaneseq
        %v877 = vshrl.u32 %v876, 7
        %v878 = vsub.s32 0, %v877
        %v879 = vrot.slane %v875, %v878
        %v880 = vmul.f32 %v766, %v879
        %v881 = vmul.f32 %v767, %v879
        %v882 = vmul.f32 %v880, 1.442695
        %v883 = vpow.pop %v882
        %v884 = vmul.f32 %v881, 1.442695
        %v885 = vpow.pop %v884
        %886 = vst [vmem:[#allocation3 + $0x30] sm:$0xff] %v883
        %887 = vst [vmem:[#allocation3 + $0x38] sm:$0xff] %v885
        %888 = vset.pattern.permute.xlu0 7
        %889 = vperm.xlu0 %888, %v669
        %v890 = vpop.permute.xlu0 %889
        %892 = vset.pattern.permute.xlu0 7
        %893 = vperm.xlu0 %892, %v672
        %v894 = vpop.permute.xlu0 %893
        %v896 = vmul.f32 %v890, %v768
        %v897 = vmul.f32 %v894, %v769
        %898 = vst [vmem:[#allocation4 + $0x30] sm:$0xff] %v896
        %899 = vst [vmem:[#allocation4 + $0x38] sm:$0xff] %v897
        %900 = vset.pattern.permute.xlu0 15
        %901 = vperm.xlu0 %900, %v669
        %v902 = vpop.permute.xlu0 %901
        %904 = vset.pattern.permute.xlu0 15
        %905 = vperm.xlu0 %904, %v672
        %v906 = vpop.permute.xlu0 %905
        %908 = vst [vmem:[#allocation5 + $0x30] sm:$0xff] %v902
        %909 = vst [vmem:[#allocation5 + $0x38] sm:$0xff] %v906
        %v910 = vld [vmem:[%s434 + $0x4] sm:$0x1]
        %v911 = vlaneseq
        %v912 = vshrl.u32 %v911, 7
        %v913 = vsub.s32 0, %v912
        %v914 = vrot.slane %v910, %v913
        %v915 = vmul.f32 %v766, %v914
        %v916 = vmul.f32 %v767, %v914
        %v917 = vmul.f32 %v915, 1.442695
        %v918 = vpow.pop %v917
        %v919 = vmul.f32 %v916, 1.442695
        %v920 = vpow.pop %v919
        %921 = vst [vmem:[#allocation3 + $0x40] sm:$0xff] %v918
        %922 = vst [vmem:[#allocation3 + $0x48] sm:$0xff] %v920
        %923 = vset.pattern.permute.xlu0 8
        %924 = vperm.xlu0 %923, %v669
        %v925 = vpop.permute.xlu0 %924
        %927 = vset.pattern.permute.xlu0 8
        %928 = vperm.xlu0 %927, %v672
        %v929 = vpop.permute.xlu0 %928
        %v931 = vmul.f32 %v925, %v768
        %v932 = vmul.f32 %v929, %v769
        %933 = vst [vmem:[#allocation4 + $0x40] sm:$0xff] %v931
        %934 = vst [vmem:[#allocation4 + $0x48] sm:$0xff] %v932
        %935 = vset.pattern.permute.xlu0 16
        %936 = vperm.xlu0 %935, %v669
        %v937 = vpop.permute.xlu0 %936
        %939 = vset.pattern.permute.xlu0 16
        %940 = vperm.xlu0 %939, %v672
        %v941 = vpop.permute.xlu0 %940
        %943 = vst [vmem:[#allocation5 + $0x40] sm:$0xff] %v937
        %944 = vst [vmem:[#allocation5 + $0x48] sm:$0xff] %v941
        %v945 = vld [vmem:[%s434 + $0x5] sm:$0x1]
        %v946 = vlaneseq
        %v947 = vshrl.u32 %v946, 7
        %v948 = vsub.s32 0, %v947
        %v949 = vrot.slane %v945, %v948
        %v950 = vmul.f32 %v766, %v949
        %v951 = vmul.f32 %v767, %v949
        %v952 = vmul.f32 %v950, 1.442695
        %v953 = vpow.pop %v952
        %v954 = vmul.f32 %v951, 1.442695
        %v955 = vpow.pop %v954
        %956 = vst [vmem:[#allocation3 + $0x50] sm:$0xff] %v953
        %957 = vst [vmem:[#allocation3 + $0x58] sm:$0xff] %v955
        %958 = vset.pattern.permute.xlu0 9
        %959 = vperm.xlu0 %958, %v669
        %v960 = vpop.permute.xlu0 %959
        %962 = vset.pattern.permute.xlu0 9
        %963 = vperm.xlu0 %962, %v672
        %v964 = vpop.permute.xlu0 %963
        %v966 = vmul.f32 %v960, %v768
        %v967 = vmul.f32 %v964, %v769
        %968 = vst [vmem:[#allocation4 + $0x50] sm:$0xff] %v966
        %969 = vst [vmem:[#allocation4 + $0x58] sm:$0xff] %v967
        %970 = vset.pattern.permute.xlu0 17
        %971 = vperm.xlu0 %970, %v669
        %v972 = vpop.permute.xlu0 %971
        %974 = vset.pattern.permute.xlu0 17
        %975 = vperm.xlu0 %974, %v672
        %v976 = vpop.permute.xlu0 %975
        %978 = vst [vmem:[#allocation5 + $0x50] sm:$0xff] %v972
        %979 = vst [vmem:[#allocation5 + $0x58] sm:$0xff] %v976
        %v980 = vld [vmem:[%s434 + $0x6] sm:$0x1]
        %v981 = vlaneseq
        %v982 = vshrl.u32 %v981, 7
        %v983 = vsub.s32 0, %v982
        %v984 = vrot.slane %v980, %v983
        %v985 = vmul.f32 %v766, %v984
        %v986 = vmul.f32 %v767, %v984
        %v987 = vmul.f32 %v985, 1.442695
        %v988 = vpow.pop %v987
        %v989 = vmul.f32 %v986, 1.442695
        %v990 = vpow.pop %v989
        %991 = vst [vmem:[#allocation3 + $0x60] sm:$0xff] %v988
        %992 = vst [vmem:[#allocation3 + $0x68] sm:$0xff] %v990
        %993 = vset.pattern.permute.xlu0 10
        %994 = vperm.xlu0 %993, %v669
        %v995 = vpop.permute.xlu0 %994
        %997 = vset.pattern.permute.xlu0 10
        %998 = vperm.xlu0 %997, %v672
        %v999 = vpop.permute.xlu0 %998
        %v1001 = vmul.f32 %v995, %v768
        %v1002 = vmul.f32 %v999, %v769
        %1003 = vst [vmem:[#allocation4 + $0x60] sm:$0xff] %v1001
        %1004 = vst [vmem:[#allocation4 + $0x68] sm:$0xff] %v1002
        %1005 = vset.pattern.permute.xlu0 18
        %1006 = vperm.xlu0 %1005, %v669
        %v1007 = vpop.permute.xlu0 %1006
        %1009 = vset.pattern.permute.xlu0 18
        %1010 = vperm.xlu0 %1009, %v672
        %v1011 = vpop.permute.xlu0 %1010
        %1013 = vst [vmem:[#allocation5 + $0x60] sm:$0xff] %v1007
        %1014 = vst [vmem:[#allocation5 + $0x68] sm:$0xff] %v1011
        %v1015 = vld [vmem:[%s434 + $0x7] sm:$0x1]
        %v1016 = vlaneseq
        %v1017 = vshrl.u32 %v1016, 7
        %v1018 = vsub.s32 0, %v1017
        %v1019 = vrot.slane %v1015, %v1018
        %v1020 = vmul.f32 %v766, %v1019
        %v1021 = vmul.f32 %v767, %v1019
        %v1022 = vmul.f32 %v1020, 1.442695
        %v1023 = vpow.pop %v1022
        %v1024 = vmul.f32 %v1021, 1.442695
        %v1025 = vpow.pop %v1024
        %1026 = vst [vmem:[#allocation3 + $0x70] sm:$0xff] %v1023
        %1027 = vst [vmem:[#allocation3 + $0x78] sm:$0xff] %v1025
        %1028 = vset.pattern.permute.xlu0 11
        %1029 = vperm.xlu0 %1028, %v669
        %v1030 = vpop.permute.xlu0 %1029
        %1032 = vset.pattern.permute.xlu0 11
        %1033 = vperm.xlu0 %1032, %v672
        %v1034 = vpop.permute.xlu0 %1033
        %v1036 = vmul.f32 %v1030, %v768
        %v1037 = vmul.f32 %v1034, %v769
        %1038 = vst [vmem:[#allocation4 + $0x70] sm:$0xff] %v1036
        %1039 = vst [vmem:[#allocation4 + $0x78] sm:$0xff] %v1037
        %1040 = vset.pattern.permute.xlu0 19
        %1041 = vperm.xlu0 %1040, %v669
        %v1042 = vpop.permute.xlu0 %1041
        %1044 = vset.pattern.permute.xlu0 19
        %1045 = vperm.xlu0 %1044, %v672
        %v1046 = vpop.permute.xlu0 %1045
        %1048 = vst [vmem:[#allocation5 + $0x70] sm:$0xff] %v1042
        %1049 = vst [vmem:[#allocation5 + $0x78] sm:$0xff] %v1046
        %s1050 = scalar_select %p526, 15, 0
        %s1051 = scalar_lea.vmem [#allocation3], %s1050
        %v1052 = vld [vmem:[%s1051] ss:$16 sm:$0x3]
        %v1053 = vld [vmem:[%s1051] ss:$16 sm:$0xc]
        %v1054 = vor.u32 %v1052, %v1053
        %v1055 = vld [vmem:[%s1051] ss:$16 sm:$0x30]
        %v1056 = vor.u32 %v1054, %v1055
        %v1057 = vld [vmem:[%s1051] ss:$16 sm:$0xc0]
        %v1058 = vor.u32 %v1056, %v1057
        %s1059 = scalar_lea.vmem [#allocation4], %s1050
        %v1060 = vld [vmem:[%s1059] ss:$16 sm:$0x3]
        %v1061 = vld [vmem:[%s1059] ss:$16 sm:$0xc]
        %v1062 = vor.u32 %v1060, %v1061
        %v1063 = vld [vmem:[%s1059] ss:$16 sm:$0x30]
        %v1064 = vor.u32 %v1062, %v1063
        %v1065 = vld [vmem:[%s1059] ss:$16 sm:$0xc0]
        %v1066 = vor.u32 %v1064, %v1065
        %s1067 = scalar_lea.vmem [#allocation5], %s1050
        %v1068 = vld [vmem:[%s1067] ss:$16 sm:$0x3]
        %v1069 = vld [vmem:[%s1067] ss:$16 sm:$0xc]
        %v1070 = vor.u32 %v1068, %v1069
        %v1071 = vld [vmem:[%s1067] ss:$16 sm:$0x30]
        %v1072 = vor.u32 %v1070, %v1071
        %v1073 = vld [vmem:[%s1067] ss:$16 sm:$0xc0]
        %v1074 = vor.u32 %v1072, %v1073
        %v1075 = vmul.f32 %v1058, 0.0
        %v1076 = vadd.f32 %v1075, %v1066
        %v1077 = vmul.f32 %v1074, %v1076
        %v1078 = vrot.slane %v1077, 4
        %v1079 = vadd.f32 %v1077, %v1078
        %v1080 = vrot.slane %v1079, 2
        %v1081 = vadd.f32 %v1079, %v1080
        %v1082 = vrot.slane %v1081, 1
        %v1083 = vadd.f32 %v1081, %v1082
        %s1084 = scalar_lea.vmem [#allocation6], %s1050
        %1085 = vst [vmem:[%s1084] sm:$0x1] %v1083
        %s1086 = scalar_select %p526, 14, 1
        %s1087 = scalar_lea.vmem [#allocation3], %s1086
        %v1088 = vld [vmem:[%s1087] ss:$16 sm:$0x3]
        %v1089 = vld [vmem:[%s1087] ss:$16 sm:$0xc]
        %v1090 = vor.u32 %v1088, %v1089
        %v1091 = vld [vmem:[%s1087] ss:$16 sm:$0x30]
        %v1092 = vor.u32 %v1090, %v1091
        %v1093 = vld [vmem:[%s1087] ss:$16 sm:$0xc0]
        %v1094 = vor.u32 %v1092, %v1093
        %s1095 = scalar_lea.vmem [#allocation4], %s1086
        %v1096 = vld [vmem:[%s1095] ss:$16 sm:$0x3]
        %v1097 = vld [vmem:[%s1095] ss:$16 sm:$0xc]
        %v1098 = vor.u32 %v1096, %v1097
        %v1099 = vld [vmem:[%s1095] ss:$16 sm:$0x30]
        %v1100 = vor.u32 %v1098, %v1099
        %v1101 = vld [vmem:[%s1095] ss:$16 sm:$0xc0]
        %v1102 = vor.u32 %v1100, %v1101
        %s1103 = scalar_lea.vmem [#allocation5], %s1086
        %v1104 = vld [vmem:[%s1103] ss:$16 sm:$0x3]
        %v1105 = vld [vmem:[%s1103] ss:$16 sm:$0xc]
        %v1106 = vor.u32 %v1104, %v1105
        %v1107 = vld [vmem:[%s1103] ss:$16 sm:$0x30]
        %v1108 = vor.u32 %v1106, %v1107
        %v1109 = vld [vmem:[%s1103] ss:$16 sm:$0xc0]
        %v1110 = vor.u32 %v1108, %v1109
        %v1111 = vmul.f32 %v1094, %v1076
        %v1112 = vadd.f32 %v1111, %v1102
        %v1113 = vmul.f32 %v1110, %v1112
        %v1114 = vrot.slane %v1113, 4
        %v1115 = vadd.f32 %v1113, %v1114
        %v1116 = vrot.slane %v1115, 2
        %v1117 = vadd.f32 %v1115, %v1116
        %v1118 = vrot.slane %v1117, 1
        %v1119 = vadd.f32 %v1117, %v1118
        %s1120 = scalar_lea.vmem [#allocation6], %s1086
        %1121 = vst [vmem:[%s1120] sm:$0x1] %v1119
        %s1122 = scalar_select %p526, 13, 2
        %s1123 = scalar_lea.vmem [#allocation3], %s1122
        %v1124 = vld [vmem:[%s1123] ss:$16 sm:$0x3]
        %v1125 = vld [vmem:[%s1123] ss:$16 sm:$0xc]
        %v1126 = vor.u32 %v1124, %v1125
        %v1127 = vld [vmem:[%s1123] ss:$16 sm:$0x30]
        %v1128 = vor.u32 %v1126, %v1127
        %v1129 = vld [vmem:[%s1123] ss:$16 sm:$0xc0]
        %v1130 = vor.u32 %v1128, %v1129
        %s1131 = scalar_lea.vmem [#allocation4], %s1122
        %v1132 = vld [vmem:[%s1131] ss:$16 sm:$0x3]
        %v1133 = vld [vmem:[%s1131] ss:$16 sm:$0xc]
        %v1134 = vor.u32 %v1132, %v1133
        %v1135 = vld [vmem:[%s1131] ss:$16 sm:$0x30]
        %v1136 = vor.u32 %v1134, %v1135
        %v1137 = vld [vmem:[%s1131] ss:$16 sm:$0xc0]
        %v1138 = vor.u32 %v1136, %v1137
        %s1139 = scalar_lea.vmem [#allocation5], %s1122
        %v1140 = vld [vmem:[%s1139] ss:$16 sm:$0x3]
        %v1141 = vld [vmem:[%s1139] ss:$16 sm:$0xc]
        %v1142 = vor.u32 %v1140, %v1141
        %v1143 = vld [vmem:[%s1139] ss:$16 sm:$0x30]
        %v1144 = vor.u32 %v1142, %v1143
        %v1145 = vld [vmem:[%s1139] ss:$16 sm:$0xc0]
        %v1146 = vor.u32 %v1144, %v1145
        %v1147 = vmul.f32 %v1130, %v1112
        %v1148 = vadd.f32 %v1147, %v1138
        %v1149 = vmul.f32 %v1146, %v1148
        %v1150 = vrot.slane %v1149, 4
        %v1151 = vadd.f32 %v1149, %v1150
        %v1152 = vrot.slane %v1151, 2
        %v1153 = vadd.f32 %v1151, %v1152
        %v1154 = vrot.slane %v1153, 1
        %v1155 = vadd.f32 %v1153, %v1154
        %s1156 = scalar_lea.vmem [#allocation6], %s1122
        %1157 = vst [vmem:[%s1156] sm:$0x1] %v1155
        %s1158 = scalar_select %p526, 12, 3
        %s1159 = scalar_lea.vmem [#allocation3], %s1158
        %v1160 = vld [vmem:[%s1159] ss:$16 sm:$0x3]
        %v1161 = vld [vmem:[%s1159] ss:$16 sm:$0xc]
        %v1162 = vor.u32 %v1160, %v1161
        %v1163 = vld [vmem:[%s1159] ss:$16 sm:$0x30]
        %v1164 = vor.u32 %v1162, %v1163
        %v1165 = vld [vmem:[%s1159] ss:$16 sm:$0xc0]
        %v1166 = vor.u32 %v1164, %v1165
        %s1167 = scalar_lea.vmem [#allocation4], %s1158
        %v1168 = vld [vmem:[%s1167] ss:$16 sm:$0x3]
        %v1169 = vld [vmem:[%s1167] ss:$16 sm:$0xc]
        %v1170 = vor.u32 %v1168, %v1169
        %v1171 = vld [vmem:[%s1167] ss:$16 sm:$0x30]
        %v1172 = vor.u32 %v1170, %v1171
        %v1173 = vld [vmem:[%s1167] ss:$16 sm:$0xc0]
        %v1174 = vor.u32 %v1172, %v1173
        %s1175 = scalar_lea.vmem [#allocation5], %s1158
        %v1176 = vld [vmem:[%s1175] ss:$16 sm:$0x3]
        %v1177 = vld [vmem:[%s1175] ss:$16 sm:$0xc]
        %v1178 = vor.u32 %v1176, %v1177
        %v1179 = vld [vmem:[%s1175] ss:$16 sm:$0x30]
        %v1180 = vor.u32 %v1178, %v1179
        %v1181 = vld [vmem:[%s1175] ss:$16 sm:$0xc0]
        %v1182 = vor.u32 %v1180, %v1181
        %v1183 = vmul.f32 %v1166, %v1148
        %v1184 = vadd.f32 %v1183, %v1174
        %v1185 = vmul.f32 %v1182, %v1184
        %v1186 = vrot.slane %v1185, 4
        %v1187 = vadd.f32 %v1185, %v1186
        %v1188 = vrot.slane %v1187, 2
        %v1189 = vadd.f32 %v1187, %v1188
        %v1190 = vrot.slane %v1189, 1
        %v1191 = vadd.f32 %v1189, %v1190
        %s1192 = scalar_lea.vmem [#allocation6], %s1158
        %1193 = vst [vmem:[%s1192] sm:$0x1] %v1191
        %s1194 = scalar_select %p526, 11, 4
        %s1195 = scalar_lea.vmem [#allocation3], %s1194
        %v1196 = vld [vmem:[%s1195] ss:$16 sm:$0x3]
        %v1197 = vld [vmem:[%s1195] ss:$16 sm:$0xc]
        %v1198 = vor.u32 %v1196, %v1197
        %v1199 = vld [vmem:[%s1195] ss:$16 sm:$0x30]
        %v1200 = vor.u32 %v1198, %v1199
        %v1201 = vld [vmem:[%s1195] ss:$16 sm:$0xc0]
        %v1202 = vor.u32 %v1200, %v1201
        %s1203 = scalar_lea.vmem [#allocation4], %s1194
        %v1204 = vld [vmem:[%s1203] ss:$16 sm:$0x3]
        %v1205 = vld [vmem:[%s1203] ss:$16 sm:$0xc]
        %v1206 = vor.u32 %v1204, %v1205
        %v1207 = vld [vmem:[%s1203] ss:$16 sm:$0x30]
        %v1208 = vor.u32 %v1206, %v1207
        %v1209 = vld [vmem:[%s1203] ss:$16 sm:$0xc0]
        %v1210 = vor.u32 %v1208, %v1209
        %s1211 = scalar_lea.vmem [#allocation5], %s1194
        %v1212 = vld [vmem:[%s1211] ss:$16 sm:$0x3]
        %v1213 = vld [vmem:[%s1211] ss:$16 sm:$0xc]
        %v1214 = vor.u32 %v1212, %v1213
        %v1215 = vld [vmem:[%s1211] ss:$16 sm:$0x30]
        %v1216 = vor.u32 %v1214, %v1215
        %v1217 = vld [vmem:[%s1211] ss:$16 sm:$0xc0]
        %v1218 = vor.u32 %v1216, %v1217
        %v1219 = vmul.f32 %v1202, %v1184
        %v1220 = vadd.f32 %v1219, %v1210
        %v1221 = vmul.f32 %v1218, %v1220
        %v1222 = vrot.slane %v1221, 4
        %v1223 = vadd.f32 %v1221, %v1222
        %v1224 = vrot.slane %v1223, 2
        %v1225 = vadd.f32 %v1223, %v1224
        %v1226 = vrot.slane %v1225, 1
        %v1227 = vadd.f32 %v1225, %v1226
        %s1228 = scalar_lea.vmem [#allocation6], %s1194
        %1229 = vst [vmem:[%s1228] sm:$0x1] %v1227
        %s1230 = scalar_select %p526, 10, 5
        %s1231 = scalar_lea.vmem [#allocation3], %s1230
        %v1232 = vld [vmem:[%s1231] ss:$16 sm:$0x3]
        %v1233 = vld [vmem:[%s1231] ss:$16 sm:$0xc]
        %v1234 = vor.u32 %v1232, %v1233
        %v1235 = vld [vmem:[%s1231] ss:$16 sm:$0x30]
        %v1236 = vor.u32 %v1234, %v1235
        %v1237 = vld [vmem:[%s1231] ss:$16 sm:$0xc0]
        %v1238 = vor.u32 %v1236, %v1237
        %s1239 = scalar_lea.vmem [#allocation4], %s1230
        %v1240 = vld [vmem:[%s1239] ss:$16 sm:$0x3]
        %v1241 = vld [vmem:[%s1239] ss:$16 sm:$0xc]
        %v1242 = vor.u32 %v1240, %v1241
        %v1243 = vld [vmem:[%s1239] ss:$16 sm:$0x30]
        %v1244 = vor.u32 %v1242, %v1243
        %v1245 = vld [vmem:[%s1239] ss:$16 sm:$0xc0]
        %v1246 = vor.u32 %v1244, %v1245
        %s1247 = scalar_lea.vmem [#allocation5], %s1230
        %v1248 = vld [vmem:[%s1247] ss:$16 sm:$0x3]
        %v1249 = vld [vmem:[%s1247] ss:$16 sm:$0xc]
        %v1250 = vor.u32 %v1248, %v1249
        %v1251 = vld [vmem:[%s1247] ss:$16 sm:$0x30]
        %v1252 = vor.u32 %v1250, %v1251
        %v1253 = vld [vmem:[%s1247] ss:$16 sm:$0xc0]
        %v1254 = vor.u32 %v1252, %v1253
        %v1255 = vmul.f32 %v1238, %v1220
        %v1256 = vadd.f32 %v1255, %v1246
        %v1257 = vmul.f32 %v1254, %v1256
        %v1258 = vrot.slane %v1257, 4
        %v1259 = vadd.f32 %v1257, %v1258
        %v1260 = vrot.slane %v1259, 2
        %v1261 = vadd.f32 %v1259, %v1260
        %v1262 = vrot.slane %v1261, 1
        %v1263 = vadd.f32 %v1261, %v1262
        %s1264 = scalar_lea.vmem [#allocation6], %s1230
        %1265 = vst [vmem:[%s1264] sm:$0x1] %v1263
        %s1266 = scalar_select %p526, 9, 6
        %s1267 = scalar_lea.vmem [#allocation3], %s1266
        %v1268 = vld [vmem:[%s1267] ss:$16 sm:$0x3]
        %v1269 = vld [vmem:[%s1267] ss:$16 sm:$0xc]
        %v1270 = vor.u32 %v1268, %v1269
        %v1271 = vld [vmem:[%s1267] ss:$16 sm:$0x30]
        %v1272 = vor.u32 %v1270, %v1271
        %v1273 = vld [vmem:[%s1267] ss:$16 sm:$0xc0]
        %v1274 = vor.u32 %v1272, %v1273
        %s1275 = scalar_lea.vmem [#allocation4], %s1266
        %v1276 = vld [vmem:[%s1275] ss:$16 sm:$0x3]
        %v1277 = vld [vmem:[%s1275] ss:$16 sm:$0xc]
        %v1278 = vor.u32 %v1276, %v1277
        %v1279 = vld [vmem:[%s1275] ss:$16 sm:$0x30]
        %v1280 = vor.u32 %v1278, %v1279
        %v1281 = vld [vmem:[%s1275] ss:$16 sm:$0xc0]
        %v1282 = vor.u32 %v1280, %v1281
        %s1283 = scalar_lea.vmem [#allocation5], %s1266
        %v1284 = vld [vmem:[%s1283] ss:$16 sm:$0x3]
        %v1285 = vld [vmem:[%s1283] ss:$16 sm:$0xc]
        %v1286 = vor.u32 %v1284, %v1285
        %v1287 = vld [vmem:[%s1283] ss:$16 sm:$0x30]
        %v1288 = vor.u32 %v1286, %v1287
        %v1289 = vld [vmem:[%s1283] ss:$16 sm:$0xc0]
        %v1290 = vor.u32 %v1288, %v1289
        %v1291 = vmul.f32 %v1274, %v1256
        %v1292 = vadd.f32 %v1291, %v1282
        %v1293 = vmul.f32 %v1290, %v1292
        %v1294 = vrot.slane %v1293, 4
        %v1295 = vadd.f32 %v1293, %v1294
        %v1296 = vrot.slane %v1295, 2
        %v1297 = vadd.f32 %v1295, %v1296
        %v1298 = vrot.slane %v1297, 1
        %v1299 = vadd.f32 %v1297, %v1298
        %s1300 = scalar_lea.vmem [#allocation6], %s1266
        %1301 = vst [vmem:[%s1300] sm:$0x1] %v1299
        %s1302 = scalar_select %p526, 8, 7
        %s1303 = scalar_lea.vmem [#allocation3], %s1302
        %v1304 = vld [vmem:[%s1303] ss:$16 sm:$0x3]
        %v1305 = vld [vmem:[%s1303] ss:$16 sm:$0xc]
        %v1306 = vor.u32 %v1304, %v1305
        %v1307 = vld [vmem:[%s1303] ss:$16 sm:$0x30]
        %v1308 = vor.u32 %v1306, %v1307
        %v1309 = vld [vmem:[%s1303] ss:$16 sm:$0xc0]
        %v1310 = vor.u32 %v1308, %v1309
        %s1311 = scalar_lea.vmem [#allocation4], %s1302
        %v1312 = vld [vmem:[%s1311] ss:$16 sm:$0x3]
        %v1313 = vld [vmem:[%s1311] ss:$16 sm:$0xc]
        %v1314 = vor.u32 %v1312, %v1313
        %v1315 = vld [vmem:[%s1311] ss:$16 sm:$0x30]
        %v1316 = vor.u32 %v1314, %v1315
        %v1317 = vld [vmem:[%s1311] ss:$16 sm:$0xc0]
        %v1318 = vor.u32 %v1316, %v1317
        %s1319 = scalar_lea.vmem [#allocation5], %s1302
        %v1320 = vld [vmem:[%s1319] ss:$16 sm:$0x3]
        %v1321 = vld [vmem:[%s1319] ss:$16 sm:$0xc]
        %v1322 = vor.u32 %v1320, %v1321
        %v1323 = vld [vmem:[%s1319] ss:$16 sm:$0x30]
        %v1324 = vor.u32 %v1322, %v1323
        %v1325 = vld [vmem:[%s1319] ss:$16 sm:$0xc0]
        %v1326 = vor.u32 %v1324, %v1325
        %v1327 = vmul.f32 %v1310, %v1292
        %v1328 = vadd.f32 %v1327, %v1318
        %v1329 = vmul.f32 %v1326, %v1328
        %v1330 = vrot.slane %v1329, 4
        %v1331 = vadd.f32 %v1329, %v1330
        %v1332 = vrot.slane %v1331, 2
        %v1333 = vadd.f32 %v1331, %v1332
        %v1334 = vrot.slane %v1333, 1
        %v1335 = vadd.f32 %v1333, %v1334
        %s1336 = scalar_lea.vmem [#allocation6], %s1302
        %1337 = vst [vmem:[%s1336] sm:$0x1] %v1335
        %s1338 = scalar_select %p526, 7, 8
        %s1339 = scalar_lea.vmem [#allocation3], %s1338
        %v1340 = vld [vmem:[%s1339] ss:$16 sm:$0x3]
        %v1341 = vld [vmem:[%s1339] ss:$16 sm:$0xc]
        %v1342 = vor.u32 %v1340, %v1341
        %v1343 = vld [vmem:[%s1339] ss:$16 sm:$0x30]
        %v1344 = vor.u32 %v1342, %v1343
        %v1345 = vld [vmem:[%s1339] ss:$16 sm:$0xc0]
        %v1346 = vor.u32 %v1344, %v1345
        %s1347 = scalar_lea.vmem [#allocation4], %s1338
        %v1348 = vld [vmem:[%s1347] ss:$16 sm:$0x3]
        %v1349 = vld [vmem:[%s1347] ss:$16 sm:$0xc]
        %v1350 = vor.u32 %v1348, %v1349
        %v1351 = vld [vmem:[%s1347] ss:$16 sm:$0x30]
        %v1352 = vor.u32 %v1350, %v1351
        %v1353 = vld [vmem:[%s1347] ss:$16 sm:$0xc0]
        %v1354 = vor.u32 %v1352, %v1353
        %s1355 = scalar_lea.vmem [#allocation5], %s1338
        %v1356 = vld [vmem:[%s1355] ss:$16 sm:$0x3]
        %v1357 = vld [vmem:[%s1355] ss:$16 sm:$0xc]
        %v1358 = vor.u32 %v1356, %v1357
        %v1359 = vld [vmem:[%s1355] ss:$16 sm:$0x30]
        %v1360 = vor.u32 %v1358, %v1359
        %v1361 = vld [vmem:[%s1355] ss:$16 sm:$0xc0]
        %v1362 = vor.u32 %v1360, %v1361
        %v1363 = vmul.f32 %v1346, %v1328
        %v1364 = vadd.f32 %v1363, %v1354
        %v1365 = vmul.f32 %v1362, %v1364
        %v1366 = vrot.slane %v1365, 4
        %v1367 = vadd.f32 %v1365, %v1366
        %v1368 = vrot.slane %v1367, 2
        %v1369 = vadd.f32 %v1367, %v1368
        %v1370 = vrot.slane %v1369, 1
        %v1371 = vadd.f32 %v1369, %v1370
        %s1372 = scalar_lea.vmem [#allocation6], %s1338
        %1373 = vst [vmem:[%s1372] sm:$0x1] %v1371
        %s1374 = scalar_select %p526, 6, 9
        %s1375 = scalar_lea.vmem [#allocation3], %s1374
        %v1376 = vld [vmem:[%s1375] ss:$16 sm:$0x3]
        %v1377 = vld [vmem:[%s1375] ss:$16 sm:$0xc]
        %v1378 = vor.u32 %v1376, %v1377
        %v1379 = vld [vmem:[%s1375] ss:$16 sm:$0x30]
        %v1380 = vor.u32 %v1378, %v1379
        %v1381 = vld [vmem:[%s1375] ss:$16 sm:$0xc0]
        %v1382 = vor.u32 %v1380, %v1381
        %s1383 = scalar_lea.vmem [#allocation4], %s1374
        %v1384 = vld [vmem:[%s1383] ss:$16 sm:$0x3]
        %v1385 = vld [vmem:[%s1383] ss:$16 sm:$0xc]
        %v1386 = vor.u32 %v1384, %v1385
        %v1387 = vld [vmem:[%s1383] ss:$16 sm:$0x30]
        %v1388 = vor.u32 %v1386, %v1387
        %v1389 = vld [vmem:[%s1383] ss:$16 sm:$0xc0]
        %v1390 = vor.u32 %v1388, %v1389
        %s1391 = scalar_lea.vmem [#allocation5], %s1374
        %v1392 = vld [vmem:[%s1391] ss:$16 sm:$0x3]
        %v1393 = vld [vmem:[%s1391] ss:$16 sm:$0xc]
        %v1394 = vor.u32 %v1392, %v1393
        %v1395 = vld [vmem:[%s1391] ss:$16 sm:$0x30]
        %v1396 = vor.u32 %v1394, %v1395
        %v1397 = vld [vmem:[%s1391] ss:$16 sm:$0xc0]
        %v1398 = vor.u32 %v1396, %v1397
        %v1399 = vmul.f32 %v1382, %v1364
        %v1400 = vadd.f32 %v1399, %v1390
        %v1401 = vmul.f32 %v1398, %v1400
        %v1402 = vrot.slane %v1401, 4
        %v1403 = vadd.f32 %v1401, %v1402
        %v1404 = vrot.slane %v1403, 2
        %v1405 = vadd.f32 %v1403, %v1404
        %v1406 = vrot.slane %v1405, 1
        %v1407 = vadd.f32 %v1405, %v1406
        %s1408 = scalar_lea.vmem [#allocation6], %s1374
        %1409 = vst [vmem:[%s1408] sm:$0x1] %v1407
        %s1410 = scalar_select %p526, 5, 10
        %s1411 = scalar_lea.vmem [#allocation3], %s1410
        %v1412 = vld [vmem:[%s1411] ss:$16 sm:$0x3]
        %v1413 = vld [vmem:[%s1411] ss:$16 sm:$0xc]
        %v1414 = vor.u32 %v1412, %v1413
        %v1415 = vld [vmem:[%s1411] ss:$16 sm:$0x30]
        %v1416 = vor.u32 %v1414, %v1415
        %v1417 = vld [vmem:[%s1411] ss:$16 sm:$0xc0]
        %v1418 = vor.u32 %v1416, %v1417
        %s1419 = scalar_lea.vmem [#allocation4], %s1410
        %v1420 = vld [vmem:[%s1419] ss:$16 sm:$0x3]
        %v1421 = vld [vmem:[%s1419] ss:$16 sm:$0xc]
        %v1422 = vor.u32 %v1420, %v1421
        %v1423 = vld [vmem:[%s1419] ss:$16 sm:$0x30]
        %v1424 = vor.u32 %v1422, %v1423
        %v1425 = vld [vmem:[%s1419] ss:$16 sm:$0xc0]
        %v1426 = vor.u32 %v1424, %v1425
        %s1427 = scalar_lea.vmem [#allocation5], %s1410
        %v1428 = vld [vmem:[%s1427] ss:$16 sm:$0x3]
        %v1429 = vld [vmem:[%s1427] ss:$16 sm:$0xc]
        %v1430 = vor.u32 %v1428, %v1429
        %v1431 = vld [vmem:[%s1427] ss:$16 sm:$0x30]
        %v1432 = vor.u32 %v1430, %v1431
        %v1433 = vld [vmem:[%s1427] ss:$16 sm:$0xc0]
        %v1434 = vor.u32 %v1432, %v1433
        %v1435 = vmul.f32 %v1418, %v1400
        %v1436 = vadd.f32 %v1435, %v1426
        %v1437 = vmul.f32 %v1434, %v1436
        %v1438 = vrot.slane %v1437, 4
        %v1439 = vadd.f32 %v1437, %v1438
        %v1440 = vrot.slane %v1439, 2
        %v1441 = vadd.f32 %v1439, %v1440
        %v1442 = vrot.slane %v1441, 1
        %v1443 = vadd.f32 %v1441, %v1442
        %s1444 = scalar_lea.vmem [#allocation6], %s1410
        %1445 = vst [vmem:[%s1444] sm:$0x1] %v1443
        %s1446 = scalar_select %p526, 4, 11
        %s1447 = scalar_lea.vmem [#allocation3], %s1446
        %v1448 = vld [vmem:[%s1447] ss:$16 sm:$0x3]
        %v1449 = vld [vmem:[%s1447] ss:$16 sm:$0xc]
        %v1450 = vor.u32 %v1448, %v1449
        %v1451 = vld [vmem:[%s1447] ss:$16 sm:$0x30]
        %v1452 = vor.u32 %v1450, %v1451
        %v1453 = vld [vmem:[%s1447] ss:$16 sm:$0xc0]
        %v1454 = vor.u32 %v1452, %v1453
        %s1455 = scalar_lea.vmem [#allocation4], %s1446
        %v1456 = vld [vmem:[%s1455] ss:$16 sm:$0x3]
        %v1457 = vld [vmem:[%s1455] ss:$16 sm:$0xc]
        %v1458 = vor.u32 %v1456, %v1457
        %v1459 = vld [vmem:[%s1455] ss:$16 sm:$0x30]
        %v1460 = vor.u32 %v1458, %v1459
        %v1461 = vld [vmem:[%s1455] ss:$16 sm:$0xc0]
        %v1462 = vor.u32 %v1460, %v1461
        %s1463 = scalar_lea.vmem [#allocation5], %s1446
        %v1464 = vld [vmem:[%s1463] ss:$16 sm:$0x3]
        %v1465 = vld [vmem:[%s1463] ss:$16 sm:$0xc]
        %v1466 = vor.u32 %v1464, %v1465
        %v1467 = vld [vmem:[%s1463] ss:$16 sm:$0x30]
        %v1468 = vor.u32 %v1466, %v1467
        %v1469 = vld [vmem:[%s1463] ss:$16 sm:$0xc0]
        %v1470 = vor.u32 %v1468, %v1469
        %v1471 = vmul.f32 %v1454, %v1436
        %v1472 = vadd.f32 %v1471, %v1462
        %v1473 = vmul.f32 %v1470, %v1472
        %v1474 = vrot.slane %v1473, 4
        %v1475 = vadd.f32 %v1473, %v1474
        %v1476 = vrot.slane %v1475, 2
        %v1477 = vadd.f32 %v1475, %v1476
        %v1478 = vrot.slane %v1477, 1
        %v1479 = vadd.f32 %v1477, %v1478
        %s1480 = scalar_lea.vmem [#allocation6], %s1446
        %1481 = vst [vmem:[%s1480] sm:$0x1] %v1479
        %s1482 = scalar_select %p526, 3, 12
        %s1483 = scalar_lea.vmem [#allocation3], %s1482
        %v1484 = vld [vmem:[%s1483] ss:$16 sm:$0x3]
        %v1485 = vld [vmem:[%s1483] ss:$16 sm:$0xc]
        %v1486 = vor.u32 %v1484, %v1485
        %v1487 = vld [vmem:[%s1483] ss:$16 sm:$0x30]
        %v1488 = vor.u32 %v1486, %v1487
        %v1489 = vld [vmem:[%s1483] ss:$16 sm:$0xc0]
        %v1490 = vor.u32 %v1488, %v1489
        %s1491 = scalar_lea.vmem [#allocation4], %s1482
        %v1492 = vld [vmem:[%s1491] ss:$16 sm:$0x3]
        %v1493 = vld [vmem:[%s1491] ss:$16 sm:$0xc]
        %v1494 = vor.u32 %v1492, %v1493
        %v1495 = vld [vmem:[%s1491] ss:$16 sm:$0x30]
        %v1496 = vor.u32 %v1494, %v1495
        %v1497 = vld [vmem:[%s1491] ss:$16 sm:$0xc0]
        %v1498 = vor.u32 %v1496, %v1497
        %s1499 = scalar_lea.vmem [#allocation5], %s1482
        %v1500 = vld [vmem:[%s1499] ss:$16 sm:$0x3]
        %v1501 = vld [vmem:[%s1499] ss:$16 sm:$0xc]
        %v1502 = vor.u32 %v1500, %v1501
        %v1503 = vld [vmem:[%s1499] ss:$16 sm:$0x30]
        %v1504 = vor.u32 %v1502, %v1503
        %v1505 = vld [vmem:[%s1499] ss:$16 sm:$0xc0]
        %v1506 = vor.u32 %v1504, %v1505
        %v1507 = vmul.f32 %v1490, %v1472
        %v1508 = vadd.f32 %v1507, %v1498
        %v1509 = vmul.f32 %v1506, %v1508
        %v1510 = vrot.slane %v1509, 4
        %v1511 = vadd.f32 %v1509, %v1510
        %v1512 = vrot.slane %v1511, 2
        %v1513 = vadd.f32 %v1511, %v1512
        %v1514 = vrot.slane %v1513, 1
        %v1515 = vadd.f32 %v1513, %v1514
        %s1516 = scalar_lea.vmem [#allocation6], %s1482
        %1517 = vst [vmem:[%s1516] sm:$0x1] %v1515
        %s1518 = scalar_select %p526, 2, 13
        %s1519 = scalar_lea.vmem [#allocation3], %s1518
        %v1520 = vld [vmem:[%s1519] ss:$16 sm:$0x3]
        %v1521 = vld [vmem:[%s1519] ss:$16 sm:$0xc]
        %v1522 = vor.u32 %v1520, %v1521
        %v1523 = vld [vmem:[%s1519] ss:$16 sm:$0x30]
        %v1524 = vor.u32 %v1522, %v1523
        %v1525 = vld [vmem:[%s1519] ss:$16 sm:$0xc0]
        %v1526 = vor.u32 %v1524, %v1525
        %s1527 = scalar_lea.vmem [#allocation4], %s1518
        %v1528 = vld [vmem:[%s1527] ss:$16 sm:$0x3]
        %v1529 = vld [vmem:[%s1527] ss:$16 sm:$0xc]
        %v1530 = vor.u32 %v1528, %v1529
        %v1531 = vld [vmem:[%s1527] ss:$16 sm:$0x30]
        %v1532 = vor.u32 %v1530, %v1531
        %v1533 = vld [vmem:[%s1527] ss:$16 sm:$0xc0]
        %v1534 = vor.u32 %v1532, %v1533
        %s1535 = scalar_lea.vmem [#allocation5], %s1518
        %v1536 = vld [vmem:[%s1535] ss:$16 sm:$0x3]
        %v1537 = vld [vmem:[%s1535] ss:$16 sm:$0xc]
        %v1538 = vor.u32 %v1536, %v1537
        %v1539 = vld [vmem:[%s1535] ss:$16 sm:$0x30]
        %v1540 = vor.u32 %v1538, %v1539
        %v1541 = vld [vmem:[%s1535] ss:$16 sm:$0xc0]
        %v1542 = vor.u32 %v1540, %v1541
        %v1543 = vmul.f32 %v1526, %v1508
        %v1544 = vadd.f32 %v1543, %v1534
        %v1545 = vmul.f32 %v1542, %v1544
        %v1546 = vrot.slane %v1545, 4
        %v1547 = vadd.f32 %v1545, %v1546
        %v1548 = vrot.slane %v1547, 2
        %v1549 = vadd.f32 %v1547, %v1548
        %v1550 = vrot.slane %v1549, 1
        %v1551 = vadd.f32 %v1549, %v1550
        %s1552 = scalar_lea.vmem [#allocation6], %s1518
        %1553 = vst [vmem:[%s1552] sm:$0x1] %v1551
        %s1554 = scalar_select %p526, 1, 14
        %s1555 = scalar_lea.vmem [#allocation3], %s1554
        %v1556 = vld [vmem:[%s1555] ss:$16 sm:$0x3]
        %v1557 = vld [vmem:[%s1555] ss:$16 sm:$0xc]
        %v1558 = vor.u32 %v1556, %v1557
        %v1559 = vld [vmem:[%s1555] ss:$16 sm:$0x30]
        %v1560 = vor.u32 %v1558, %v1559
        %v1561 = vld [vmem:[%s1555] ss:$16 sm:$0xc0]
        %v1562 = vor.u32 %v1560, %v1561
        %s1563 = scalar_lea.vmem [#allocation4], %s1554
        %v1564 = vld [vmem:[%s1563] ss:$16 sm:$0x3]
        %v1565 = vld [vmem:[%s1563] ss:$16 sm:$0xc]
        %v1566 = vor.u32 %v1564, %v1565
        %v1567 = vld [vmem:[%s1563] ss:$16 sm:$0x30]
        %v1568 = vor.u32 %v1566, %v1567
        %v1569 = vld [vmem:[%s1563] ss:$16 sm:$0xc0]
        %v1570 = vor.u32 %v1568, %v1569
        %s1571 = scalar_lea.vmem [#allocation5], %s1554
        %v1572 = vld [vmem:[%s1571] ss:$16 sm:$0x3]
        %v1573 = vld [vmem:[%s1571] ss:$16 sm:$0xc]
        %v1574 = vor.u32 %v1572, %v1573
        %v1575 = vld [vmem:[%s1571] ss:$16 sm:$0x30]
        %v1576 = vor.u32 %v1574, %v1575
        %v1577 = vld [vmem:[%s1571] ss:$16 sm:$0xc0]
        %v1578 = vor.u32 %v1576, %v1577
        %v1579 = vmul.f32 %v1562, %v1544
        %v1580 = vadd.f32 %v1579, %v1570
        %v1581 = vmul.f32 %v1578, %v1580
        %v1582 = vrot.slane %v1581, 4
        %v1583 = vadd.f32 %v1581, %v1582
        %v1584 = vrot.slane %v1583, 2
        %v1585 = vadd.f32 %v1583, %v1584
        %v1586 = vrot.slane %v1585, 1
        %v1587 = vadd.f32 %v1585, %v1586
        %s1588 = scalar_lea.vmem [#allocation6], %s1554
        %1589 = vst [vmem:[%s1588] sm:$0x1] %v1587
        %s1590 = scalar_select %p526, 0, 15
        %s1591 = scalar_lea.vmem [#allocation3], %s1590
        %v1592 = vld [vmem:[%s1591] ss:$16 sm:$0x3]
        %v1593 = vld [vmem:[%s1591] ss:$16 sm:$0xc]
        %v1594 = vor.u32 %v1592, %v1593
        %v1595 = vld [vmem:[%s1591] ss:$16 sm:$0x30]
        %v1596 = vor.u32 %v1594, %v1595
        %v1597 = vld [vmem:[%s1591] ss:$16 sm:$0xc0]
        %v1598 = vor.u32 %v1596, %v1597
        %s1599 = scalar_lea.vmem [#allocation4], %s1590
        %v1600 = vld [vmem:[%s1599] ss:$16 sm:$0x3]
        %v1601 = vld [vmem:[%s1599] ss:$16 sm:$0xc]
        %v1602 = vor.u32 %v1600, %v1601
        %v1603 = vld [vmem:[%s1599] ss:$16 sm:$0x30]
        %v1604 = vor.u32 %v1602, %v1603
        %v1605 = vld [vmem:[%s1599] ss:$16 sm:$0xc0]
        %v1606 = vor.u32 %v1604, %v1605
        %s1607 = scalar_lea.vmem [#allocation5], %s1590
        %v1608 = vld [vmem:[%s1607] ss:$16 sm:$0x3]
        %v1609 = vld [vmem:[%s1607] ss:$16 sm:$0xc]
        %v1610 = vor.u32 %v1608, %v1609
        %v1611 = vld [vmem:[%s1607] ss:$16 sm:$0x30]
        %v1612 = vor.u32 %v1610, %v1611
        %v1613 = vld [vmem:[%s1607] ss:$16 sm:$0xc0]
        %v1614 = vor.u32 %v1612, %v1613
        %v1615 = vmul.f32 %v1598, %v1580
        %v1616 = vadd.f32 %v1615, %v1606
        %v1617 = vmul.f32 %v1614, %v1616
        %v1618 = vrot.slane %v1617, 4
        %v1619 = vadd.f32 %v1617, %v1618
        %v1620 = vrot.slane %v1619, 2
        %v1621 = vadd.f32 %v1619, %v1620
        %v1622 = vrot.slane %v1621, 1
        %v1623 = vadd.f32 %v1621, %v1622
        %s1624 = scalar_lea.vmem [#allocation6], %s1590
        %1625 = vst [vmem:[%s1624] sm:$0x1] %v1623
        %v1626 = vld [vmem:[#allocation6] sm:$0xff]
        %v1627 = vld [vmem:[#allocation6 + $0x8] sm:$0xff]
        %v1628 = vld [vmem:[%s442] sm:$0x1]
        %v1630 = vlaneseq
        %v1631 = vshrl.u32 %v1630, 7
        %v1632 = vsub.s32 0, %v1631
        %v1633 = vrot.slane %v1628, %v1632
        %v1635 = vmul.f32 %v607, %v1633
        %v1636 = vmul.f32 %v608, %v1633
        %v1637 = vadd.f32 %v1626, %v1635
        %v1638 = vadd.f32 %v1627, %v1636
        %v1639 = vxor.u32 %v529, 2147483648
        %v1640 = vxor.u32 %v530, 2147483648
        %v1641 = vmul.f32 %v1639, 1.442695
        %v1642 = vpow.pop %v1641
        %v1643 = vmul.f32 %v1640, 1.442695
        %v1644 = vpow.pop %v1643
        %v1645 = vadd.f32 %v1642, 1.0
        %v1646 = vadd.f32 %v1644, 1.0
        %v1647 = vrcp.pop %v1645
        %v1648 = vmul.f32 1.0, %v1647
        %v1649 = vrcp.pop %v1646
        %v1650 = vmul.f32 1.0, %v1649
        %v1651 = vmul.f32 %v529, %v1648
        %v1652 = vmul.f32 %v530, %v1650
        %v1653 = vmul.f32 %v1637, %v1651
        %v1654 = vmul.f32 %v1638, %v1652
        %p1655 = scmp.eq.s32.totalorder %s33, 0
        // Predicated region
        $region73: #{_lambda_.4} parent=51 // pred_check
          %p1656 = pneg %p1655
        $region74: #{_lambda_.4} parent=51 // pred_check_branch
          %1658 = sbr.rel (%p1656) target = $region76
        $region75: #{_lambda_.4} parent=51 // pred_region
          %1659 = vst [vmem:[%s524] sm:$0xff] 0.0
          %1660 = vst [vmem:[%s524 + $0x8] sm:$0xff] 0.0
        $region76: #{_lambda_.4} parent=51 // pred_fallthru
          _
        %v1661 = vld [vmem:[%s524] sm:$0xff]
        %v1662 = vld [vmem:[%s524 + $0x8] sm:$0xff]
        %v1663 = vadd.f32 %v1661, %v1653
        %v1664 = vadd.f32 %v1662, %v1654
        %1665 = vst [vmem:[%s524] sm:$0xff] %v1663
        %1666 = vst [vmem:[%s524 + $0x8] sm:$0xff] %v1664
        %p1667 = scmp.lt.s32.totalorder %s32, 1
        %s1668 = scalar_select %p1667, %s32, 1
        %s1669 = smul.addr %s1668, 2
        %s1670 = smul.addr %s1669, 8
        %s1671 = scalar_lea.vmem %s8, %s1670
        // Predicated region
        $region77: #{_lambda_.4} parent=51 // pred_check
          %p1672 = pneg %p266
        $region78: #{_lambda_.4} parent=51 // pred_check_branch
          %1674 = sbr.rel (%p1672) target = $region80
        $region79: #{_lambda_.4} parent=51 // pred_region
          _
        $region80: #{_lambda_.4} parent=51 // pred_fallthru
          _
      $region52: #{_lambda_.4} parent=5 // pred_fallthru
        _
      %p1675 = scmp.le.s32.totalorder 2, %s23
      // Predicated region
      $region81: #{_lambda_.4} parent=5 // pred_check
        %p1676 = pneg %p1675
      $region82: #{_lambda_.4} parent=5 // pred_check_branch
        %1678 = sbr.rel (%p1676) target = $region84
      $region83: #{_lambda_.4} parent=5 // pred_region
        %s1679 = ssub.s32 %s23, 2
        // Predicated region
        $region85: #{_lambda_.4} parent=83 // pred_check
          %p1680 = pneg %p272
        $region86: #{_lambda_.4} parent=83 // pred_check_branch
          %1682 = sbr.rel (%p1680) target = $region88
        $region87: #{_lambda_.4} parent=83 // pred_region
          %p1683 = scmp.lt.s32.totalorder %s34, 1
          %s1684 = scalar_select %p1683, %s34, 1
          %s1685 = smul.addr %s1684, 2
          %s1686 = smul.addr %s1685, 8
          %s1687 = scalar_lea.vmem %s8, %s1686
        $region88: #{_lambda_.4} parent=83 // pred_fallthru
          _
      $region84: #{_lambda_.4} parent=5 // pred_fallthru
        _
    $region6: #{_lambda_.4} parent=1 // loop_footer
      %s27 = sadd.s32 1, %s23
    $region7: #{_lambda_.4} parent=1 // loop_footer_branch
      %22 = sbr.rel target = $region3
    $region8: #{_lambda_.4} parent=1 // loop_exit
      _
    %1688 = vsyncpa [#allocation8], 1
    %s1689 = scalar_lea.sflag [#allocation8], 1
    %1690 = vsyncpa %s1689, 1
    %1691 = vsyncpa [#allocation10], 1
    %s1692 = scalar_lea.sflag [#allocation10], 1
    %1693 = vsyncpa %s1692, 1
    %1694 = vsyncpa [#allocation13], 1
    %s1695 = scalar_lea.sflag [#allocation13], 1
    %1696 = vsyncpa %s1695, 1

</llo_original>
